<compile_context>
chip_gen: v6e
topology: v6e:2x2x1
jax: 0.10.0
libtpu: 0.0.40
codegen_flags: <defaults>
</compile_context>

<pallas_src>
import math
import functools

import jax
import jax.numpy as jnp
from jax.experimental import pallas as pl
from jax.experimental.pallas import tpu as pltpu

RMS_EPS = 1e-5


# ------------------------------ tiling helper ------------------------------

def _pick_tile(dim, target, align):
    """Largest `align`-multiple divisor of `dim` that is <= target; full dim if small
    or if no aligned divisor exists (full-dim blocks are always legal)."""
    if dim <= target:
        return dim
    t = (target // align) * align
    while t >= align:
        if dim % t == 0:
            return t
        t -= align
    return dim


# ------------------- fused RMSNorm + (QKV) projection kernel -------------------

def _rmsnorm_matmul_kernel(x_ref, lnw_ref, w_ref, o_ref, *, eps):
    x = x_ref[...].astype(jnp.float32)
    var = jnp.mean(x * x, axis=-1, keepdims=True)
    h = x * jax.lax.rsqrt(var + eps) * lnw_ref[...]
    o_ref[...] = jnp.dot(h, w_ref[...],
                         preferred_element_type=jnp.float32).astype(o_ref.dtype)


def rmsnorm_matmul(x2d, ln_w, w, eps=RMS_EPS):
    M, H = x2d.shape
    _, N = w.shape
    tm = _pick_tile(M, 256, 8)
    tn = _pick_tile(N, 256, 128)
    return pl.pallas_call(
        functools.partial(_rmsnorm_matmul_kernel, eps=eps),
        out_shape=jax.ShapeDtypeStruct((M, N), jnp.float32),
        grid=(M // tm, N // tn),
        in_specs=[pl.BlockSpec((tm, H), lambda i, j: (i, 0)),
                  pl.BlockSpec((1, H), lambda i, j: (0, 0)),
                  pl.BlockSpec((H, tn), lambda i, j: (0, j))],
        out_specs=pl.BlockSpec((tm, tn), lambda i, j: (i, j)),
        compiler_params=pltpu.CompilerParams(
            dimension_semantics=("parallel", "parallel")),
    )(x2d, ln_w.reshape(1, H), w)


# ------------------------- o_proj + residual kernel -------------------------

def _matmul_residual_kernel(x_ref, w_ref, r_ref, o_ref):
    o_ref[...] = (r_ref[...] +
                  jnp.dot(x_ref[...], w_ref[...],
                          preferred_element_type=jnp.float32)).astype(o_ref.dtype)


def matmul_residual(x2d, w, res2d):
    M, K = x2d.shape
    _, N = w.shape
    tm = _pick_tile(M, 256, 8)
    tn = _pick_tile(N, 256, 128)
    return pl.pallas_call(
        _matmul_residual_kernel,
        out_shape=jax.ShapeDtypeStruct((M, N), jnp.float32),
        grid=(M // tm, N // tn),
        in_specs=[pl.BlockSpec((tm, K), lambda i, j: (i, 0)),
                  pl.BlockSpec((K, tn), lambda i, j: (0, j)),
                  pl.BlockSpec((tm, tn), lambda i, j: (i, j))],
        out_specs=pl.BlockSpec((tm, tn), lambda i, j: (i, j)),
        input_output_aliases={2: 0},       # residual buffer reused as the output
        compiler_params=pltpu.CompilerParams(
            dimension_semantics=("parallel", "parallel")),
    )(x2d, w, res2d)


# -------------- fused post-LN + gated MLP + residual kernel --------------

def _fused_mlp_kernel(x_ref, lnw_ref, wg_ref, wu_ref, wd_ref, o_ref, acc_ref, *, eps):
    j = pl.program_id(1)
    x = x_ref[...].astype(jnp.float32)

    @pl.when(j == 0)
    def _init():
        acc_ref[...] = x                       # residual

    var = jnp.mean(x * x, axis=-1, keepdims=True)
    h = x * jax.lax.rsqrt(var + eps) * lnw_ref[...]
    g = jnp.dot(h, wg_ref[...], preferred_element_type=jnp.float32)
    u = jnp.dot(h, wu_ref[...], preferred_element_type=jnp.float32)
    a = (g * jax.nn.sigmoid(g)) * u            # SiLU(gate) * up
    acc_ref[...] += jnp.dot(a, wd_ref[...], preferred_element_type=jnp.float32)

    @pl.when(j == pl.num_programs(1) - 1)
    def _finalize():
        o_ref[...] = acc_ref[...].astype(o_ref.dtype)


def fused_mlp(x2d, ln_w, wg, wu, wd, eps=RMS_EPS):
    M, H = x2d.shape
    _, I = wg.shape
    tm = _pick_tile(M, 128, 8)
    ti = _pick_tile(I, 256, 128)
    return pl.pallas_call(
        functools.partial(_fused_mlp_kernel, eps=eps),
        out_shape=jax.ShapeDtypeStruct((M, H), jnp.float32),
        grid=(M // tm, I // ti),
        in_specs=[pl.BlockSpec((tm, H), lambda i, j: (i, 0)),
                  pl.BlockSpec((1, H), lambda i, j: (0, 0)),
                  pl.BlockSpec((H, ti), lambda i, j: (0, j)),
                  pl.BlockSpec((H, ti), lambda i, j: (0, j)),
                  pl.BlockSpec((ti, H), lambda i, j: (j, 0))],
        out_specs=pl.BlockSpec((tm, H), lambda i, j: (i, 0)),
        scratch_shapes=[pltpu.VMEM((tm, H), jnp.float32)],
        input_output_aliases={0: 0},           # residual / x buffer reused as output
        compiler_params=pltpu.CompilerParams(
            dimension_semantics=("parallel", "arbitrary")),
    )(x2d, ln_w.reshape(1, H), wg, wu, wd)


# -------------------- flash attention (RoPE fused in-kernel) --------------------

def _rope_rotation_matrix(D):
    # xr = x @ R gives xr[2i] = -x[2i+1], xr[2i+1] = x[2i]  (interleaved complex rotate)
    i = jnp.arange(D // 2)
    R = jnp.zeros((D, D), jnp.float32)
    R = R.at[2 * i + 1, 2 * i].set(-1.0)
    R = R.at[2 * i, 2 * i + 1].set(1.0)
    return R


def _flash_attn_kernel(rot_ref, cq_ref, sq_ref, ck_ref, sk_ref, msk_ref,
                       q_ref, k_ref, v_ref, o_ref,
                       m_sc, l_sc, acc_sc, *, scale):
    qi = pl.program_id(1)
    ki = pl.program_id(2)
    tq = q_ref.shape[0]
    tk = k_ref.shape[0]

    @pl.when(ki == 0)
    def _init():
        m_sc[...] = jnp.full_like(m_sc, -jnp.inf)
        l_sc[...] = jnp.zeros_like(l_sc)
        acc_sc[...] = jnp.zeros_like(acc_sc)

    # skip KV blocks that lie entirely above the causal diagonal
    @pl.when(ki * tk <= qi * tq + (tq - 1))
    def _update():
        rot = rot_ref[...]

        def rope(x, cos, sin):
            # x: (T, Hh, D); cos/sin: (T, D) with each frequency repeated twice
            T, Hh, D = x.shape
            xr = jnp.dot(x.reshape(T * Hh, D), rot,
                         preferred_element_type=jnp.float32).reshape(T, Hh, D)
            return x * cos[:, None, :] + xr * sin[:, None, :]

        q = rope(q_ref[...].astype(jnp.float32), cq_ref[...], sq_ref[...])  # (tq,Hh,D)
        k = rope(k_ref[...].astype(jnp.float32), ck_ref[...], sk_ref[...])  # (tk,Hh,D)
        v = v_ref[...].astype(jnp.float32)                                  # (tk,Hh,D)

        s = jnp.einsum('qhd,khd->hqk', q, k,
                       preferred_element_type=jnp.float32) * scale          # (Hh,tq,tk)

        row = qi * tq + jax.lax.broadcasted_iota(jnp.int32, (tq, tk), 0)
        col = ki * tk + jax.lax.broadcasted_iota(jnp.int32, (tq, tk), 1)
        s = jnp.where((col <= row)[None], s, jnp.float32(-1e30))            # causal
        s = s + (1.0 - msk_ref[...])[None] * jnp.float32(-1e30)             # key padding

        m_prev = m_sc[...]
        m_new = jnp.maximum(m_prev, s.max(axis=-1, keepdims=True))
        alpha = jnp.exp(m_prev - m_new)
        p = jnp.exp(s - m_new)
        l_sc[...] = alpha * l_sc[...] + p.sum(axis=-1, keepdims=True)
        acc_sc[...] = alpha * acc_sc[...] + jnp.einsum(
            'hqk,khd->hqd', p, v, preferred_element_type=jnp.float32)
        m_sc[...] = m_new

    @pl.when(ki == pl.num_programs(2) - 1)
    def _finalize():
        out = acc_sc[...] / l_sc[...]                                       # (Hh,tq,D)
        o_ref[...] = jnp.transpose(out, (1, 0, 2)).astype(o_ref.dtype)      # (tq,Hh,D)


def flash_attention(qkv, cos_f, sin_f, rot, attn_mask):
    """qkv: (B, N, 3, Hh, D); cos_f/sin_f: (N, D); rot: (D, D); attn_mask: (B, N)."""
    B, N, _three, Hh, D = qkv.shape
    tq = _pick_tile(N, 128, 8)
    tk = N if N <= 128 else _pick_tile(N, 128, 128)
    mask3 = attn_mask.astype(jnp.float32).reshape(B, 1, N)

    def _q_map(b, qi, ki): return (b, qi, 0, 0, 0)
    def _k_map(b, qi, ki): return (b, ki, 1, 0, 0)
    def _v_map(b, qi, ki): return (b, ki, 2, 0, 0)

    return pl.pallas_call(
        functools.partial(_flash_attn_kernel, scale=1.0 / math.sqrt(D)),
        out_shape=jax.ShapeDtypeStruct((B, N, Hh, D), jnp.float32),
        grid=(B, N // tq, N // tk),
        in_specs=[
            pl.BlockSpec((D, D), lambda b, qi, ki: (0, 0)),                 # rot
            pl.BlockSpec((tq, D), lambda b, qi, ki: (qi, 0)),               # cos (q rows)
            pl.BlockSpec((tq, D), lambda b, qi, ki: (qi, 0)),               # sin (q rows)
            pl.BlockSpec((tk, D), lambda b, qi, ki: (ki, 0)),               # cos (k rows)
            pl.BlockSpec((tk, D), lambda b, qi, ki: (ki, 0)),               # sin (k rows)
            pl.BlockSpec((None, 1, tk), lambda b, qi, ki: (b, 0, ki)),      # key-pad mask
            pl.BlockSpec((None, tq, None, Hh, D), _q_map),                  # q
            pl.BlockSpec((None, tk, None, Hh, D), _k_map),                  # k
            pl.BlockSpec((None, tk, None, Hh, D), _v_map),                  # v
        ],
        out_specs=pl.BlockSpec((None, tq, Hh, D), lambda b, qi, ki: (b, qi, 0, 0)),
        scratch_shapes=[pltpu.VMEM((Hh, tq, 1), jnp.float32),
                        pltpu.VMEM((Hh, tq, 1), jnp.float32),
                        pltpu.VMEM((Hh, tq, D), jnp.float32)],
        compiler_params=pltpu.CompilerParams(
            dimension_semantics=("parallel", "parallel", "arbitrary")),
    )(rot, cos_f, sin_f, cos_f, sin_f, mask3, qkv, qkv, qkv)


# ---------------------------- MossBlock forward ----------------------------

def moss_block_forward(params, hidden_states, attention_mask, num_heads):
    """MossBlock._forward with past_key_values=None, eval mode (dropout = identity)."""
    B, N, H = hidden_states.shape
    D = H // num_heads
    M = B * N
    x2 = hidden_states.astype(jnp.float32).reshape(M, H)

    # fused input RMSNorm + QKV projection over a concatenated (H, 3H) weight
    wqkv = jnp.concatenate([params["wq"], params["wk"], params["wv"]], axis=1)
    qkv = rmsnorm_matmul(x2, params["ln1_w"], wqkv)          # (M, 3H)
    qkv = qkv.reshape(B, N, 3, num_heads, D)                 # pure view, no copy

    # tiny RoPE tables (rotation itself happens inside the attention kernel)
    inv_freq = 1.0 / (10000.0 ** (jnp.arange(0, D, 2, dtype=jnp.float32) / D))
    freqs = jnp.outer(jnp.arange(N, dtype=jnp.float32), inv_freq)    # (N, D/2)
    cos_f = jnp.repeat(jnp.cos(freqs), 2, axis=-1)                   # (N, D)
    sin_f = jnp.repeat(jnp.sin(freqs), 2, axis=-1)
    rot = _rope_rotation_matrix(D)

    # flash attention (RoPE + causal + key-padding masks fused, start_pos = 0)
    attn = flash_attention(qkv, cos_f, sin_f, rot, attention_mask)   # (B, N, Hh, D)

    # o_proj + residual
    x2 = matmul_residual(attn.reshape(M, H), params["wo"], x2)

    # post-attention RMSNorm + gated MLP + residual, single fused kernel
    out = fused_mlp(x2, params["ln2_w"], params["wg"], params["wu"], params["wd"])

    # TODO(synk): kv-cache (use_cache / past_key_values) and PREFIX_TUNING branches are
    # inference-cache plumbing not exercised with start_pos=0; not implemented.
    return out.reshape(B, N, H)


# ---------------------------- pure-JAX reference ----------------------------

def ref_forward(params, hidden_states, attention_mask, num_heads):
    B, N, H = hidden_states.shape
    D = H // num_heads
    x = hidden_states.astype(jnp.float32)

    def rms(h, w):
        var = jnp.mean(h * h, axis=-1, keepdims=True)
        return h * jax.lax.rsqrt(var + RMS_EPS) * w

    h1 = rms(x, params["ln1_w"])
    q = (h1 @ params["wq"]).reshape(B, N, num_heads, D)
    k = (h1 @ params["wk"]).reshape(B, N, num_heads, D)
    v = (h1 @ params["wv"]).reshape(B, N, num_heads, D)

    inv_freq = 1.0 / (10000.0 ** (jnp.arange(0, D, 2, dtype=jnp.float32) / D))
    freqs = jnp.outer(jnp.arange(N, dtype=jnp.float32), inv_freq)
    c = jnp.cos(freqs)[None, :, None, :]
    s = jnp.sin(freqs)[None, :, None, :]

    def rope(a):
        ap = a.reshape(B, N, num_heads, D // 2, 2)
        ae, ao = ap[..., 0], ap[..., 1]
        return jnp.stack([ae * c - ao * s, ae * s + ao * c],
                         axis=-1).reshape(B, N, num_heads, D)

    q, k = rope(q), rope(k)
    qT, kT, vT = (a.transpose(0, 2, 1, 3) for a in (q, k, v))
    sc = jnp.einsum("bhqd,bhkd->bhqk", qT, kT) / math.sqrt(D)
    causal = jnp.triu(jnp.full((N, N), -jnp.inf, dtype=jnp.float32), 1)
    sc = sc + causal[None, None]
    kpm = (1.0 - attention_mask.astype(jnp.float32))[:, None, None, :] \
        * jnp.finfo(jnp.float32).min
    p = jax.nn.softmax(sc + kpm, axis=-1)
    o = jnp.einsum("bhqk,bhkd->bhqd", p, vT).transpose(0, 2, 1, 3).reshape(B, N, H)
    x = x + o @ params["wo"]
    h2 = rms(x, params["ln2_w"])
    g = h2 @ params["wg"]
    u = h2 @ params["wu"]
    return x + (jax.nn.silu(g) * u) @ params["wd"]


# ---------------------------- main ----------------------------

if __name__ == "__main__":
    B, N, H, NUM_HEADS, INTER = 2, 8, 32, 4, 64

    key = jax.random.PRNGKey(0)
    ks = jax.random.split(key, 9)
    params = {
        "ln1_w": jnp.ones((H,), jnp.float32),      # RMSNormalize init = ones
        "ln2_w": jnp.ones((H,), jnp.float32),
        "wq": jax.random.normal(ks[0], (H, H), jnp.float32) * 0.05,
        "wk": jax.random.normal(ks[1], (H, H), jnp.float32) * 0.05,
        "wv": jax.random.normal(ks[2], (H, H), jnp.float32) * 0.05,
        "wo": jax.random.normal(ks[3], (H, H), jnp.float32) * 0.05,
        "wg": jax.random.normal(ks[4], (H, INTER), jnp.float32) * 0.05,
        "wu": jax.random.normal(ks[5], (H, INTER), jnp.float32) * 0.05,
        "wd": jax.random.normal(ks[6], (INTER, H), jnp.float32) * 0.05,
    }

    hidden_states = jax.random.normal(ks[7], (B, N, H), jnp.float32)
    attention_mask = jnp.ones((B, N), jnp.float32)   # default mask in the module

    fwd = jax.jit(moss_block_forward, static_argnums=3)
    out = fwd(params, hidden_states, attention_mask, NUM_HEADS)
    out = jax.block_until_ready(out)

    ref = ref_forward(params, hidden_states, attention_mask, NUM_HEADS)
    assert out.shape == (B, N, H)
    assert bool(jnp.allclose(out, ref, atol=2e-3, rtol=2e-3)), "mismatch vs reference"

    print("KERNEL_OK")
</pallas_src>

<mosaic_0001>
module attributes {stable_mosaic.version = 11 : i64} {
  func.func @_rmsnorm_matmul_kernel(%arg0: i32, %arg1: i32, %arg2: memref<16x32xf32, #tpu.memory_space<vmem>>, %arg3: memref<1x32xf32, #tpu.memory_space<vmem>>, %arg4: memref<32x96xf32, #tpu.memory_space<vmem>>, %arg5: memref<16x96xf32, #tpu.memory_space<vmem>>) attributes {dimension_semantics = [#tpu.dimension_semantics<parallel>, #tpu.dimension_semantics<parallel>], iteration_bounds = array<i64: 1, 1>, scalar_prefetch = 0 : i64, scratch_operands = 0 : i64, tpu.core_type = #tpu.core_type<tc>, window_params = [{transform_indices = @transform_0, window_bounds = array<i64: 16, 32>}, {pipeline_mode = #tpu.pipeline_mode<synchronous>, transform_indices = @transform_1, window_bounds = array<i64: 1, 32>}, {transform_indices = @transform_2, window_bounds = array<i64: 32, 96>}, {transform_indices = @transform_3, window_bounds = array<i64: 16, 96>}]} {
    %c0 = arith.constant 0 : index
    %c0_0 = arith.constant 0 : index
    %0 = vector.load %arg2[%c0, %c0_0] : memref<16x32xf32, #tpu.memory_space<vmem>>, vector<16x32xf32>
    %1 = arith.mulf %0, %0 : vector<16x32xf32>
    %cst = arith.constant dense<0.000000e+00> : vector<16xf32>
    %2 = vector.multi_reduction <add>, %1, %cst [1] : vector<16x32xf32> to vector<16xf32>
    %3 = vector.shape_cast %2 : vector<16xf32> to vector<16x1xf32>
    %cst_1 = arith.constant 3.200000e+01 : f32
    %4 = vector.broadcast %cst_1 : f32 to vector<16x1xf32>
    %5 = arith.divf %3, %4 : vector<16x1xf32>
    %cst_2 = arith.constant 9.99999974E-6 : f32
    %6 = vector.broadcast %cst_2 : f32 to vector<16x1xf32>
    %7 = arith.addf %5, %6 : vector<16x1xf32>
    %8 = math.rsqrt %7 : vector<16x1xf32>
    %9 = vector.broadcast %8 : vector<16x1xf32> to vector<16x32xf32>
    %10 = arith.mulf %0, %9 : vector<16x32xf32>
    %c0_3 = arith.constant 0 : index
    %c0_4 = arith.constant 0 : index
    %11 = vector.load %arg3[%c0_3, %c0_4] : memref<1x32xf32, #tpu.memory_space<vmem>>, vector<1x32xf32>
    %12 = vector.broadcast %11 : vector<1x32xf32> to vector<16x32xf32>
    %13 = arith.mulf %10, %12 : vector<16x32xf32>
    %c0_5 = arith.constant 0 : index
    %c0_6 = arith.constant 0 : index
    %14 = vector.load %arg4[%c0_5, %c0_6] : memref<32x96xf32, #tpu.memory_space<vmem>>, vector<32x96xf32>
    %cst_7 = arith.constant dense<0.000000e+00> : vector<16x96xf32>
    %15 = tpu.matmul %13, %14, %cst_7 {dimension_numbers = #tpu.dot_dimension_numbers<[1], [0], [0], [1], [0, 0, 1, 1], [], []>} : vector<16x32xf32>, vector<32x96xf32>, vector<16x96xf32> -> vector<16x96xf32>
    %c0_8 = arith.constant 0 : index
    %c0_9 = arith.constant 0 : index
    %16 = vector.load %arg5[%c0_8, %c0_9] : memref<16x96xf32, #tpu.memory_space<vmem>>, vector<16x96xf32>
    tpu.vector_store %arg5[%c0_8, %c0_9], %15 {strides = array<i32>} : memref<16x96xf32, #tpu.memory_space<vmem>>, vector<16x96xf32>,
    return
  }
  func.func @transform_0(%arg0: i32, %arg1: i32) -> (i32, i32) {
    %c0_i32 = arith.constant 0 : i32
    %c0_i32_0 = arith.constant 0 : i32
    return %arg0, %c0_i32 : i32, i32
  }
  func.func @transform_1(%arg0: i32, %arg1: i32) -> (i32, i32) {
    %c0_i32 = arith.constant 0 : i32
    %c0_i32_0 = arith.constant 0 : i32
    %c0_i32_1 = arith.constant 0 : i32
    return %c0_i32, %c0_i32_0 : i32, i32
  }
  func.func @transform_2(%arg0: i32, %arg1: i32) -> (i32, i32) {
    %c0_i32 = arith.constant 0 : i32
    %c0_i32_0 = arith.constant 0 : i32
    return %c0_i32, %arg1 : i32, i32
  }
  func.func @transform_3(%arg0: i32, %arg1: i32) -> (i32, i32) {
    %c0_i32 = arith.constant 0 : i32
    return %arg0, %arg1 : i32, i32
  }
}

module attributes {stable_mosaic.version = 11 : i64} {
  func.func @_flash_attn_kernel(%arg0: i32, %arg1: i32, %arg2: i32, %arg3: memref<8x8xf32, #tpu.memory_space<vmem>>, %arg4: memref<8x8xf32, #tpu.memory_space<vmem>>, %arg5: memref<8x8xf32, #tpu.memory_space<vmem>>, %arg6: memref<8x8xf32, #tpu.memory_space<vmem>>, %arg7: memref<8x8xf32, #tpu.memory_space<vmem>>, %arg8: memref<1x1x8xf32, #tpu.memory_space<vmem>>, %arg9: memref<1x8x1x4x8xf32, #tpu.memory_space<vmem>>, %arg10: memref<1x8x1x4x8xf32, #tpu.memory_space<vmem>>, %arg11: memref<1x8x1x4x8xf32, #tpu.memory_space<vmem>>, %arg12: memref<1x8x4x8xf32, #tpu.memory_space<vmem>>, %arg13: memref<4x8x1xf32, #tpu.memory_space<vmem>>, %arg14: memref<4x8x1xf32, #tpu.memory_space<vmem>>, %arg15: memref<4x8x8xf32, #tpu.memory_space<vmem>>) attributes {dimension_semantics = [#tpu.dimension_semantics<parallel>, #tpu.dimension_semantics<parallel>, #tpu.dimension_semantics<arbitrary>], iteration_bounds = array<i64: 2, 1, 1>, scalar_prefetch = 0 : i64, scratch_operands = 3 : i64, tpu.core_type = #tpu.core_type<tc>, window_params = [{pipeline_mode = #tpu.pipeline_mode<synchronous>, transform_indices = @transform_0, window_bounds = array<i64: 8, 8>}, {transform_indices = @transform_1, window_bounds = array<i64: 8, 8>}, {transform_indices = @transform_2, window_bounds = array<i64: 8, 8>}, {transform_indices = @transform_3, window_bounds = array<i64: 8, 8>}, {transform_indices = @transform_4, window_bounds = array<i64: 8, 8>}, {transform_indices = @transform_5, window_bounds = array<i64: 1, 1, 8>}, {transform_indices = @transform_6, window_bounds = array<i64: 1, 8, 1, 4, 8>}, {transform_indices = @transform_7, window_bounds = array<i64: 1, 8, 1, 4, 8>}, {transform_indices = @transform_8, window_bounds = array<i64: 1, 8, 1, 4, 8>}, {transform_indices = @transform_9, window_bounds = array<i64: 1, 8, 4, 8>}]} {
    %c0_i32 = arith.constant 0 : i32
    %0 = arith.cmpi eq, %arg2, %c0_i32 : i32
    %1 = arith.extui %0 : i1 to i32
    %c0_i32_0 = arith.constant 0 : i32
    %2 = arith.cmpi ne, %1, %c0_i32_0 : i32
    scf.if %2 {
      %cst = arith.constant 0xFF800000 : f32
      %12 = vector.broadcast %cst : f32 to vector<4x8x1xf32>
      %c0 = arith.constant 0 : index
      %c0_5 = arith.constant 0 : index
      %c0_6 = arith.constant 0 : index
      %13 = vector.load %arg13[%c0, %c0_5, %c0_6] : memref<4x8x1xf32, #tpu.memory_space<vmem>>, vector<4x8x1xf32>
      tpu.vector_store %arg13[%c0, %c0_5, %c0_6], %12 {strides = array<i32>} : memref<4x8x1xf32, #tpu.memory_space<vmem>>, vector<4x8x1xf32>,
      %cst_7 = arith.constant 0.000000e+00 : f32
      %14 = vector.broadcast %cst_7 : f32 to vector<4x8x1xf32>
      %c0_8 = arith.constant 0 : index
      %c0_9 = arith.constant 0 : index
      %c0_10 = arith.constant 0 : index
      %15 = vector.load %arg14[%c0_8, %c0_9, %c0_10] : memref<4x8x1xf32, #tpu.memory_space<vmem>>, vector<4x8x1xf32>
      tpu.vector_store %arg14[%c0_8, %c0_9, %c0_10], %14 {strides = array<i32>} : memref<4x8x1xf32, #tpu.memory_space<vmem>>, vector<4x8x1xf32>,
      %cst_11 = arith.constant 0.000000e+00 : f32
      %16 = vector.broadcast %cst_11 : f32 to vector<4x8x8xf32>
      %c0_12 = arith.constant 0 : index
      %c0_13 = arith.constant 0 : index
      %c0_14 = arith.constant 0 : index
      %17 = vector.load %arg15[%c0_12, %c0_13, %c0_14] : memref<4x8x8xf32, #tpu.memory_space<vmem>>, vector<4x8x8xf32>
      tpu.vector_store %arg15[%c0_12, %c0_13, %c0_14], %16 {strides = array<i32>} : memref<4x8x8xf32, #tpu.memory_space<vmem>>, vector<4x8x8xf32>,
    } else {
    }
    %c8_i32 = arith.constant 8 : i32
    %3 = arith.muli %arg2, %c8_i32 : i32
    %c8_i32_1 = arith.constant 8 : i32
    %4 = arith.muli %arg1, %c8_i32_1 : i32
    %c7_i32 = arith.constant 7 : i32
    %5 = arith.addi %4, %c7_i32 : i32
    %6 = arith.cmpi sle, %3, %5 : i32
    %7 = arith.extui %6 : i1 to i32
    %c0_i32_2 = arith.constant 0 : i32
    %8 = arith.cmpi ne, %7, %c0_i32_2 : i32
    scf.if %8 {
      %c0 = arith.constant 0 : index
      %c0_5 = arith.constant 0 : index
      %12 = vector.load %arg3[%c0, %c0_5] : memref<8x8xf32, #tpu.memory_space<vmem>>, vector<8x8xf32>
      %c0_6 = arith.constant 0 : index
      %c0_7 = arith.constant 0 : index
      %c0_8 = arith.constant 0 : index
      %c0_9 = arith.constant 0 : index
      %c0_10 = arith.constant 0 : index
      %13 = vector.load %arg9[%c0_6, %c0_7, %c0_8, %c0_9, %c0_10] : memref<1x8x1x4x8xf32, #tpu.memory_space<vmem>>, vector<1x8x1x4x8xf32>
      %14 = vector.shape_cast %13 : vector<1x8x1x4x8xf32> to vector<8x4x8xf32>
      %c0_11 = arith.constant 0 : index
      %c0_12 = arith.constant 0 : index
      %15 = vector.load %arg4[%c0_11, %c0_12] : memref<8x8xf32, #tpu.memory_space<vmem>>, vector<8x8xf32>
      %c0_13 = arith.constant 0 : index
      %c0_14 = arith.constant 0 : index
      %16 = vector.load %arg5[%c0_13, %c0_14] : memref<8x8xf32, #tpu.memory_space<vmem>>, vector<8x8xf32>
      %17 = vector.shape_cast %14 : vector<8x4x8xf32> to vector<32x8xf32>
      %cst = arith.constant dense<0.000000e+00> : vector<32x8xf32>
      %18 = tpu.matmul %17, %12, %cst {dimension_numbers = #tpu.dot_dimension_numbers<[1], [0], [0], [1], [0, 0, 1, 1], [], []>} : vector<32x8xf32>, vector<8x8xf32>, vector<32x8xf32> -> vector<32x8xf32>
      %19 = vector.shape_cast %18 : vector<32x8xf32> to vector<8x4x8xf32>
      %20 = vector.shape_cast %15 : vector<8x8xf32> to vector<8x1x8xf32>
      %21 = vector.broadcast %20 : vector<8x1x8xf32> to vector<8x4x8xf32>
      %22 = arith.mulf %14, %21 : vector<8x4x8xf32>
      %23 = vector.shape_cast %16 : vector<8x8xf32> to vector<8x1x8xf32>
      %24 = vector.broadcast %23 : vector<8x1x8xf32> to vector<8x4x8xf32>
      %25 = arith.mulf %19, %24 : vector<8x4x8xf32>
      %26 = arith.addf %22, %25 : vector<8x4x8xf32>
      %c0_15 = arith.constant 0 : index
      %c0_16 = arith.constant 0 : index
      %c0_17 = arith.constant 0 : index
      %c0_18 = arith.constant 0 : index
      %c0_19 = arith.constant 0 : index
      %27 = vector.load %arg10[%c0_15, %c0_16, %c0_17, %c0_18, %c0_19] : memref<1x8x1x4x8xf32, #tpu.memory_space<vmem>>, vector<1x8x1x4x8xf32>
      %28 = vector.shape_cast %27 : vector<1x8x1x4x8xf32> to vector<8x4x8xf32>
      %c0_20 = arith.constant 0 : index
      %c0_21 = arith.constant 0 : index
      %29 = vector.load %arg6[%c0_20, %c0_21] : memref<8x8xf32, #tpu.memory_space<vmem>>, vector<8x8xf32>
      %c0_22 = arith.constant 0 : index
      %c0_23 = arith.constant 0 : index
      %30 = vector.load %arg7[%c0_22, %c0_23] : memref<8x8xf32, #tpu.memory_space<vmem>>, vector<8x8xf32>
      %31 = vector.shape_cast %28 : vector<8x4x8xf32> to vector<32x8xf32>
      %cst_24 = arith.constant dense<0.000000e+00> : vector<32x8xf32>
      %32 = tpu.matmul %31, %12, %cst_24 {dimension_numbers = #tpu.dot_dimension_numbers<[1], [0], [0], [1], [0, 0, 1, 1], [], []>} : vector<32x8xf32>, vector<8x8xf32>, vector<32x8xf32> -> vector<32x8xf32>
      %33 = vector.shape_cast %32 : vector<32x8xf32> to vector<8x4x8xf32>
      %34 = vector.shape_cast %29 : vector<8x8xf32> to vector<8x1x8xf32>
      %35 = vector.broadcast %34 : vector<8x1x8xf32> to vector<8x4x8xf32>
      %36 = arith.mulf %28, %35 : vector<8x4x8xf32>
      %37 = vector.shape_cast %30 : vector<8x8xf32> to vector<8x1x8xf32>
      %38 = vector.broadcast %37 : vector<8x1x8xf32> to vector<8x4x8xf32>
      %39 = arith.mulf %33, %38 : vector<8x4x8xf32>
      %40 = arith.addf %36, %39 : vector<8x4x8xf32>
      %c0_25 = arith.constant 0 : index
      %c0_26 = arith.constant 0 : index
      %c0_27 = arith.constant 0 : index
      %c0_28 = arith.constant 0 : index
      %c0_29 = arith.constant 0 : index
      %41 = vector.load %arg11[%c0_25, %c0_26, %c0_27, %c0_28, %c0_29] : memref<1x8x1x4x8xf32, #tpu.memory_space<vmem>>, vector<1x8x1x4x8xf32>
      %42 = vector.shape_cast %41 : vector<1x8x1x4x8xf32> to vector<8x4x8xf32>
      "tpu.trace_start"() <{level = 10 : i32, message = "qhd,khd->hqk"}> : () -> ()
      %cst_30 = arith.constant dense<0.000000e+00> : vector<4x8x8xf32>
      %43 = tpu.matmul %26, %40, %cst_30 {dimension_numbers = #tpu.dot_dimension_numbers<[2], [2], [0], [0], [0, 1, 0, 0, 1, 0], [1], [1]>} : vector<8x4x8xf32>, vector<8x4x8xf32>, vector<4x8x8xf32> -> vector<4x8x8xf32>
      "tpu.trace_stop"() : () -> ()
      %cst_31 = arith.constant 0.353553385 : f32
      %44 = vector.broadcast %cst_31 : f32 to vector<4x8x8xf32>
      %45 = arith.mulf %43, %44 : vector<4x8x8xf32>
      %c8_i32_32 = arith.constant 8 : i32
      %46 = arith.muli %arg1, %c8_i32_32 : i32
      %47 = tpu.iota {dimensions = array<i32: 0>} : vector<8x8xi32>
      %48 = vector.broadcast %46 : i32 to vector<8x8xi32>
      %49 = arith.addi %48, %47 : vector<8x8xi32>
      %c8_i32_33 = arith.constant 8 : i32
      %50 = arith.muli %arg2, %c8_i32_33 : i32
      %51 = tpu.iota {dimensions = array<i32: 1>} : vector<8x8xi32>
      %52 = vector.broadcast %50 : i32 to vector<8x8xi32>
      %53 = arith.addi %52, %51 : vector<8x8xi32>
      %54 = arith.cmpi sle, %53, %49 : vector<8x8xi32>
      %55 = vector.shape_cast %54 : vector<8x8xi1> to vector<1x8x8xi1>
      %cst_34 = arith.constant -1.000000e+30 : f32
      %56 = vector.shape_cast %55 : vector<1x8x8xi1> to vector<1x8x8xi1>
      %57 = vector.broadcast %56 : vector<1x8x8xi1> to vector<4x8x8xi1>
      %58 = vector.broadcast %cst_34 : f32 to vector<4x8x8xf32>
      %59 = arith.select %57, %45, %58 : vector<4x8x8xi1>, vector<4x8x8xf32>
      %c0_35 = arith.constant 0 : index
      %c0_36 = arith.constant 0 : index
      %c0_37 = arith.constant 0 : index
      %60 = vector.load %arg8[%c0_35, %c0_36, %c0_37] : memref<1x1x8xf32, #tpu.memory_space<vmem>>, vector<1x1x8xf32>
      %61 = vector.shape_cast %60 : vector<1x1x8xf32> to vector<1x8xf32>
      %cst_38 = arith.constant 1.000000e+00 : f32
      %62 = vector.broadcast %cst_38 : f32 to vector<1x8xf32>
      %63 = arith.subf %62, %61 : vector<1x8xf32>
      %64 = vector.shape_cast %63 : vector<1x8xf32> to vector<1x1x8xf32>
      %cst_39 = arith.constant -1.000000e+30 : f32
      %65 = vector.broadcast %cst_39 : f32 to vector<1x1x8xf32>
      %66 = arith.mulf %64, %65 : vector<1x1x8xf32>
      %67 = vector.broadcast %66 : vector<1x1x8xf32> to vector<4x8x8xf32>
      %68 = arith.addf %59, %67 : vector<4x8x8xf32>
      %c0_40 = arith.constant 0 : index
      %c0_41 = arith.constant 0 : index
      %c0_42 = arith.constant 0 : index
      %69 = vector.load %arg13[%c0_40, %c0_41, %c0_42] : memref<4x8x1xf32, #tpu.memory_space<vmem>>, vector<4x8x1xf32>
      %cst_43 = arith.constant dense<0xFF800000> : vector<4x8xf32>
      %70 = vector.multi_reduction <maximumf>, %68, %cst_43 [2] : vector<4x8x8xf32> to vector<4x8xf32>
      %71 = vector.shape_cast %70 : vector<4x8xf32> to vector<4x8x1xf32>
      %72 = arith.maximumf %69, %71 : vector<4x8x1xf32>
      %73 = arith.subf %69, %72 : vector<4x8x1xf32>
      %74 = math.exp %73 : vector<4x8x1xf32>
      %75 = vector.broadcast %72 : vector<4x8x1xf32> to vector<4x8x8xf32>
      %76 = arith.subf %68, %75 : vector<4x8x8xf32>
      %77 = math.exp %76 : vector<4x8x8xf32>
      %c0_44 = arith.constant 0 : index
      %c0_45 = arith.constant 0 : index
      %c0_46 = arith.constant 0 : index
      %78 = vector.load %arg14[%c0_44, %c0_45, %c0_46] : memref<4x8x1xf32, #tpu.memory_space<vmem>>, vector<4x8x1xf32>
      %79 = arith.mulf %74, %78 : vector<4x8x1xf32>
      %cst_47 = arith.constant dense<0.000000e+00> : vector<4x8xf32>
      %80 = vector.multi_reduction <add>, %77, %cst_47 [2] : vector<4x8x8xf32> to vector<4x8xf32>
      %81 = vector.shape_cast %80 : vector<4x8xf32> to vector<4x8x1xf32>
      %82 = arith.addf %79, %81 : vector<4x8x1xf32>
      %c0_48 = arith.constant 0 : index
      %c0_49 = arith.constant 0 : index
      %c0_50 = arith.constant 0 : index
      %83 = vector.load %arg14[%c0_48, %c0_49, %c0_50] : memref<4x8x1xf32, #tpu.memory_space<vmem>>, vector<4x8x1xf32>
      tpu.vector_store %arg14[%c0_48, %c0_49, %c0_50], %82 {strides = array<i32>} : memref<4x8x1xf32, #tpu.memory_space<vmem>>, vector<4x8x1xf32>,
      %c0_51 = arith.constant 0 : index
      %c0_52 = arith.constant 0 : index
      %c0_53 = arith.constant 0 : index
      %84 = vector.load %arg15[%c0_51, %c0_52, %c0_53] : memref<4x8x8xf32, #tpu.memory_space<vmem>>, vector<4x8x8xf32>
      %85 = vector.broadcast %74 : vector<4x8x1xf32> to vector<4x8x8xf32>
      %86 = arith.mulf %85, %84 : vector<4x8x8xf32>
      "tpu.trace_start"() <{level = 10 : i32, message = "hqk,khd->hqd"}> : () -> ()
      %cst_54 = arith.constant dense<0.000000e+00> : vector<4x8x8xf32>
      %87 = tpu.matmul %77, %42, %cst_54 {dimension_numbers = #tpu.dot_dimension_numbers<[2], [0], [1], [2], [0, 0, 0, 1, 1, 2], [0], [1]>} : vector<4x8x8xf32>, vector<8x4x8xf32>, vector<4x8x8xf32> -> vector<4x8x8xf32>
      "tpu.trace_stop"() : () -> ()
      %88 = arith.addf %86, %87 : vector<4x8x8xf32>
      %c0_55 = arith.constant 0 : index
      %c0_56 = arith.constant 0 : index
      %c0_57 = arith.constant 0 : index
      %89 = vector.load %arg15[%c0_55, %c0_56, %c0_57] : memref<4x8x8xf32, #tpu.memory_space<vmem>>, vector<4x8x8xf32>
      tpu.vector_store %arg15[%c0_55, %c0_56, %c0_57], %88 {strides = array<i32>} : memref<4x8x8xf32, #tpu.memory_space<vmem>>, vector<4x8x8xf32>,
      %c0_58 = arith.constant 0 : index
      %c0_59 = arith.constant 0 : index
      %c0_60 = arith.constant 0 : index
      %90 = vector.load %arg13[%c0_58, %c0_59, %c0_60] : memref<4x8x1xf32, #tpu.memory_space<vmem>>, vector<4x8x1xf32>
      tpu.vector_store %arg13[%c0_58, %c0_59, %c0_60], %72 {strides = array<i32>} : memref<4x8x1xf32, #tpu.memory_space<vmem>>, vector<4x8x1xf32>,
    } else {
    }
    %c0_i32_3 = arith.constant 0 : i32
    %9 = arith.cmpi eq, %arg2, %c0_i32_3 : i32
    %10 = arith.extui %9 : i1 to i32
    %c0_i32_4 = arith.constant 0 : i32
    %11 = arith.cmpi ne, %10, %c0_i32_4 : i32
    scf.if %11 {
      %c0 = arith.constant 0 : index
      %c0_5 = arith.constant 0 : index
      %c0_6 = arith.constant 0 : index
      %12 = vector.load %arg15[%c0, %c0_5, %c0_6] : memref<4x8x8xf32, #tpu.memory_space<vmem>>, vector<4x8x8xf32>
      %c0_7 = arith.constant 0 : index
      %c0_8 = arith.constant 0 : index
      %c0_9 = arith.constant 0 : index
      %13 = vector.load %arg14[%c0_7, %c0_8, %c0_9] : memref<4x8x1xf32, #tpu.memory_space<vmem>>, vector<4x8x1xf32>
      %14 = vector.broadcast %13 : vector<4x8x1xf32> to vector<4x8x8xf32>
      %15 = arith.divf %12, %14 : vector<4x8x8xf32>
      %16 = tpu.transpose %15, [1, 0, 2] : vector<4x8x8xf32> -> vector<8x4x8xf32>
      %c0_10 = arith.constant 0 : index
      %c0_11 = arith.constant 0 : index
      %c0_12 = arith.constant 0 : index
      %c0_13 = arith.constant 0 : index
      %17 = vector.load %arg12[%c0_10, %c0_11, %c0_12, %c0_13] : memref<1x8x4x8xf32, #tpu.memory_space<vmem>>, vector<1x8x4x8xf32>
      %18 = vector.shape_cast %17 : vector<1x8x4x8xf32> to vector<8x4x8xf32>
      %19 = vector.shape_cast %16 : vector<8x4x8xf32> to vector<1x8x4x8xf32>
      tpu.vector_store %arg12[%c0_10, %c0_11, %c0_12, %c0_13], %19 {strides = array<i32>} : memref<1x8x4x8xf32, #tpu.memory_space<vmem>>, vector<1x8x4x8xf32>,
    } else {
    }
    return
  }
  func.func @transform_0(%arg0: i32, %arg1: i32, %arg2: i32) -> (i32, i32) {
    %c0_i32 = arith.constant 0 : i32
    %c0_i32_0 = arith.constant 0 : i32
    %c0_i32_1 = arith.constant 0 : i32
    return %c0_i32, %c0_i32_0 : i32, i32
  }
  func.func @transform_1(%arg0: i32, %arg1: i32, %arg2: i32) -> (i32, i32) {
    %c0_i32 = arith.constant 0 : i32
    %c0_i32_0 = arith.constant 0 : i32
    return %arg1, %c0_i32 : i32, i32
  }
  func.func @transform_2(%arg0: i32, %arg1: i32, %arg2: i32) -> (i32, i32) {
    %c0_i32 = arith.constant 0 : i32
    %c0_i32_0 = arith.constant 0 : i32
    return %arg1, %c0_i32 : i32, i32
  }
  func.func @transform_3(%arg0: i32, %arg1: i32, %arg2: i32) -> (i32, i32) {
    %c0_i32 = arith.constant 0 : i32
    %c0_i32_0 = arith.constant 0 : i32
    return %arg2, %c0_i32 : i32, i32
  }
  func.func @transform_4(%arg0: i32, %arg1: i32, %arg2: i32) -> (i32, i32) {
    %c0_i32 = arith.constant 0 : i32
    %c0_i32_0 = arith.constant 0 : i32
    return %arg2, %c0_i32 : i32, i32
  }
  func.func @transform_5(%arg0: i32, %arg1: i32, %arg2: i32) -> (i32, i32, i32) {
    %c0_i32 = arith.constant 0 : i32
    %c0_i32_0 = arith.constant 0 : i32
    return %arg0, %c0_i32, %arg2 : i32, i32, i32
  }
  func.func @transform_6(%arg0: i32, %arg1: i32, %arg2: i32) -> (i32, i32, i32, i32, i32) {
    %c0_i32 = arith.constant 0 : i32
    %c0_i32_0 = arith.constant 0 : i32
    %c0_i32_1 = arith.constant 0 : i32
    %c0_i32_2 = arith.constant 0 : i32
    return %arg0, %arg1, %c0_i32, %c0_i32_0, %c0_i32_1 : i32, i32, i32, i32, i32
  }
  func.func @transform_7(%arg0: i32, %arg1: i32, %arg2: i32) -> (i32, i32, i32, i32, i32) {
    %c1_i32 = arith.constant 1 : i32
    %c0_i32 = arith.constant 0 : i32
    %c0_i32_0 = arith.constant 0 : i32
    %c0_i32_1 = arith.constant 0 : i32
    return %arg0, %arg2, %c1_i32, %c0_i32, %c0_i32_0 : i32, i32, i32, i32, i32
  }
  func.func @transform_8(%arg0: i32, %arg1: i32, %arg2: i32) -> (i32, i32, i32, i32, i32) {
    %c2_i32 = arith.constant 2 : i32
    %c0_i32 = arith.constant 0 : i32
    %c0_i32_0 = arith.constant 0 : i32
    %c0_i32_1 = arith.constant 0 : i32
    return %arg0, %arg2, %c2_i32, %c0_i32, %c0_i32_0 : i32, i32, i32, i32, i32
  }
  func.func @transform_9(%arg0: i32, %arg1: i32, %arg2: i32) -> (i32, i32, i32, i32) {
    %c0_i32 = arith.constant 0 : i32
    %c0_i32_0 = arith.constant 0 : i32
    %c0_i32_1 = arith.constant 0 : i32
    return %arg0, %arg1, %c0_i32, %c0_i32_0 : i32, i32, i32, i32
  }
}

module attributes {stable_mosaic.version = 11 : i64} {
  func.func @_matmul_residual_kernel(%arg0: i32, %arg1: i32, %arg2: memref<16x32xf32, #tpu.memory_space<vmem>>, %arg3: memref<32x32xf32, #tpu.memory_space<vmem>>, %arg4: memref<16x32xf32, #tpu.memory_space<vmem>>, %arg5: memref<16x32xf32, #tpu.memory_space<vmem>>) attributes {dimension_semantics = [#tpu.dimension_semantics<parallel>, #tpu.dimension_semantics<parallel>], iteration_bounds = array<i64: 1, 1>, scalar_prefetch = 0 : i64, scratch_operands = 0 : i64, tpu.core_type = #tpu.core_type<tc>, window_params = [{transform_indices = @transform_0, window_bounds = array<i64: 16, 32>}, {transform_indices = @transform_1, window_bounds = array<i64: 32, 32>}, {transform_indices = @transform_2, window_bounds = array<i64: 16, 32>}, {transform_indices = @transform_3, window_bounds = array<i64: 16, 32>}]} {
    %c0 = arith.constant 0 : index
    %c0_0 = arith.constant 0 : index
    %0 = vector.load %arg4[%c0, %c0_0] : memref<16x32xf32, #tpu.memory_space<vmem>>, vector<16x32xf32>
    %c0_1 = arith.constant 0 : index
    %c0_2 = arith.constant 0 : index
    %1 = vector.load %arg2[%c0_1, %c0_2] : memref<16x32xf32, #tpu.memory_space<vmem>>, vector<16x32xf32>
    %c0_3 = arith.constant 0 : index
    %c0_4 = arith.constant 0 : index
    %2 = vector.load %arg3[%c0_3, %c0_4] : memref<32x32xf32, #tpu.memory_space<vmem>>, vector<32x32xf32>
    %cst = arith.constant dense<0.000000e+00> : vector<16x32xf32>
    %3 = tpu.matmul %1, %2, %cst {dimension_numbers = #tpu.dot_dimension_numbers<[1], [0], [0], [1], [0, 0, 1, 1], [], []>} : vector<16x32xf32>, vector<32x32xf32>, vector<16x32xf32> -> vector<16x32xf32>
    %4 = arith.addf %0, %3 : vector<16x32xf32>
    %c0_5 = arith.constant 0 : index
    %c0_6 = arith.constant 0 : index
    %5 = vector.load %arg5[%c0_5, %c0_6] : memref<16x32xf32, #tpu.memory_space<vmem>>, vector<16x32xf32>
    tpu.vector_store %arg5[%c0_5, %c0_6], %4 {strides = array<i32>} : memref<16x32xf32, #tpu.memory_space<vmem>>, vector<16x32xf32>,
    return
  }
  func.func @transform_0(%arg0: i32, %arg1: i32) -> (i32, i32) {
    %c0_i32 = arith.constant 0 : i32
    %c0_i32_0 = arith.constant 0 : i32
    return %arg0, %c0_i32 : i32, i32
  }
  func.func @transform_1(%arg0: i32, %arg1: i32) -> (i32, i32) {
    %c0_i32 = arith.constant 0 : i32
    %c0_i32_0 = arith.constant 0 : i32
    return %c0_i32, %arg1 : i32, i32
  }
  func.func @transform_2(%arg0: i32, %arg1: i32) -> (i32, i32) {
    %c0_i32 = arith.constant 0 : i32
    return %arg0, %arg1 : i32, i32
  }
  func.func @transform_3(%arg0: i32, %arg1: i32) -> (i32, i32) {
    %c0_i32 = arith.constant 0 : i32
    return %arg0, %arg1 : i32, i32
  }
}

module attributes {stable_mosaic.version = 11 : i64} {
  func.func @_fused_mlp_kernel(%arg0: i32, %arg1: i32, %arg2: memref<16x32xf32, #tpu.memory_space<vmem>>, %arg3: memref<1x32xf32, #tpu.memory_space<vmem>>, %arg4: memref<32x64xf32, #tpu.memory_space<vmem>>, %arg5: memref<32x64xf32, #tpu.memory_space<vmem>>, %arg6: memref<64x32xf32, #tpu.memory_space<vmem>>, %arg7: memref<16x32xf32, #tpu.memory_space<vmem>>, %arg8: memref<16x32xf32, #tpu.memory_space<vmem>>) attributes {dimension_semantics = [#tpu.dimension_semantics<parallel>, #tpu.dimension_semantics<arbitrary>], iteration_bounds = array<i64: 1, 1>, scalar_prefetch = 0 : i64, scratch_operands = 1 : i64, tpu.core_type = #tpu.core_type<tc>, window_params = [{transform_indices = @transform_0, window_bounds = array<i64: 16, 32>}, {pipeline_mode = #tpu.pipeline_mode<synchronous>, transform_indices = @transform_1, window_bounds = array<i64: 1, 32>}, {transform_indices = @transform_2, window_bounds = array<i64: 32, 64>}, {transform_indices = @transform_3, window_bounds = array<i64: 32, 64>}, {transform_indices = @transform_4, window_bounds = array<i64: 64, 32>}, {transform_indices = @transform_5, window_bounds = array<i64: 16, 32>}]} {
    %c0 = arith.constant 0 : index
    %c0_0 = arith.constant 0 : index
    %0 = vector.load %arg2[%c0, %c0_0] : memref<16x32xf32, #tpu.memory_space<vmem>>, vector<16x32xf32>
    %c0_i32 = arith.constant 0 : i32
    %1 = arith.cmpi eq, %arg1, %c0_i32 : i32
    %2 = arith.extui %1 : i1 to i32
    %c0_i32_1 = arith.constant 0 : i32
    %3 = arith.cmpi ne, %2, %c0_i32_1 : i32
    scf.if %3 {
      %c0_22 = arith.constant 0 : index
      %c0_23 = arith.constant 0 : index
      %36 = vector.load %arg8[%c0_22, %c0_23] : memref<16x32xf32, #tpu.memory_space<vmem>>, vector<16x32xf32>
      tpu.vector_store %arg8[%c0_22, %c0_23], %0 {strides = array<i32>} : memref<16x32xf32, #tpu.memory_space<vmem>>, vector<16x32xf32>,
    } else {
    }
    %4 = arith.mulf %0, %0 : vector<16x32xf32>
    %cst = arith.constant dense<0.000000e+00> : vector<16xf32>
    %5 = vector.multi_reduction <add>, %4, %cst [1] : vector<16x32xf32> to vector<16xf32>
    %6 = vector.shape_cast %5 : vector<16xf32> to vector<16x1xf32>
    %cst_2 = arith.constant 3.200000e+01 : f32
    %7 = vector.broadcast %cst_2 : f32 to vector<16x1xf32>
    %8 = arith.divf %6, %7 : vector<16x1xf32>
    %cst_3 = arith.constant 9.99999974E-6 : f32
    %9 = vector.broadcast %cst_3 : f32 to vector<16x1xf32>
    %10 = arith.addf %8, %9 : vector<16x1xf32>
    %11 = math.rsqrt %10 : vector<16x1xf32>
    %12 = vector.broadcast %11 : vector<16x1xf32> to vector<16x32xf32>
    %13 = arith.mulf %0, %12 : vector<16x32xf32>
    %c0_4 = arith.constant 0 : index
    %c0_5 = arith.constant 0 : index
    %14 = vector.load %arg3[%c0_4, %c0_5] : memref<1x32xf32, #tpu.memory_space<vmem>>, vector<1x32xf32>
    %15 = vector.broadcast %14 : vector<1x32xf32> to vector<16x32xf32>
    %16 = arith.mulf %13, %15 : vector<16x32xf32>
    %c0_6 = arith.constant 0 : index
    %c0_7 = arith.constant 0 : index
    %17 = vector.load %arg4[%c0_6, %c0_7] : memref<32x64xf32, #tpu.memory_space<vmem>>, vector<32x64xf32>
    %cst_8 = arith.constant dense<0.000000e+00> : vector<16x64xf32>
    %18 = tpu.matmul %16, %17, %cst_8 {dimension_numbers = #tpu.dot_dimension_numbers<[1], [0], [0], [1], [0, 0, 1, 1], [], []>} : vector<16x32xf32>, vector<32x64xf32>, vector<16x64xf32> -> vector<16x64xf32>
    %c0_9 = arith.constant 0 : index
    %c0_10 = arith.constant 0 : index
    %19 = vector.load %arg5[%c0_9, %c0_10] : memref<32x64xf32, #tpu.memory_space<vmem>>, vector<32x64xf32>
    %cst_11 = arith.constant dense<0.000000e+00> : vector<16x64xf32>
    %20 = tpu.matmul %16, %19, %cst_11 {dimension_numbers = #tpu.dot_dimension_numbers<[1], [0], [0], [1], [0, 0, 1, 1], [], []>} : vector<16x32xf32>, vector<32x64xf32>, vector<16x64xf32> -> vector<16x64xf32>
    %21 = arith.negf %18 : vector<16x64xf32>
    %22 = math.exp %21 : vector<16x64xf32>
    %cst_12 = arith.constant 1.000000e+00 : f32
    %23 = vector.broadcast %cst_12 : f32 to vector<16x64xf32>
    %24 = arith.addf %23, %22 : vector<16x64xf32>
    %25 = arith.divf %23, %24 : vector<16x64xf32>
    %26 = arith.mulf %18, %25 : vector<16x64xf32>
    %27 = arith.mulf %26, %20 : vector<16x64xf32>
    %c0_13 = arith.constant 0 : index
    %c0_14 = arith.constant 0 : index
    %28 = vector.load %arg8[%c0_13, %c0_14] : memref<16x32xf32, #tpu.memory_space<vmem>>, vector<16x32xf32>
    %c0_15 = arith.constant 0 : index
    %c0_16 = arith.constant 0 : index
    %29 = vector.load %arg6[%c0_15, %c0_16] : memref<64x32xf32, #tpu.memory_space<vmem>>, vector<64x32xf32>
    %cst_17 = arith.constant dense<0.000000e+00> : vector<16x32xf32>
    %30 = tpu.matmul %27, %29, %cst_17 {dimension_numbers = #tpu.dot_dimension_numbers<[1], [0], [0], [1], [0, 0, 1, 1], [], []>} : vector<16x64xf32>, vector<64x32xf32>, vector<16x32xf32> -> vector<16x32xf32>
    %31 = arith.addf %28, %30 : vector<16x32xf32>
    %c0_18 = arith.constant 0 : index
    %c0_19 = arith.constant 0 : index
    %32 = vector.load %arg8[%c0_18, %c0_19] : memref<16x32xf32, #tpu.memory_space<vmem>>, vector<16x32xf32>
    tpu.vector_store %arg8[%c0_18, %c0_19], %31 {strides = array<i32>} : memref<16x32xf32, #tpu.memory_space<vmem>>, vector<16x32xf32>,
    %c0_i32_20 = arith.constant 0 : i32
    %33 = arith.cmpi eq, %arg1, %c0_i32_20 : i32
    %34 = arith.extui %33 : i1 to i32
    %c0_i32_21 = arith.constant 0 : i32
    %35 = arith.cmpi ne, %34, %c0_i32_21 : i32
    scf.if %35 {
      %c0_22 = arith.constant 0 : index
      %c0_23 = arith.constant 0 : index
      %36 = vector.load %arg8[%c0_22, %c0_23] : memref<16x32xf32, #tpu.memory_space<vmem>>, vector<16x32xf32>
      %c0_24 = arith.constant 0 : index
      %c0_25 = arith.constant 0 : index
      %37 = vector.load %arg7[%c0_24, %c0_25] : memref<16x32xf32, #tpu.memory_space<vmem>>, vector<16x32xf32>
      tpu.vector_store %arg7[%c0_24, %c0_25], %36 {strides = array<i32>} : memref<16x32xf32, #tpu.memory_space<vmem>>, vector<16x32xf32>,
    } else {
    }
    return
  }
  func.func @transform_0(%arg0: i32, %arg1: i32) -> (i32, i32) {
    %c0_i32 = arith.constant 0 : i32
    %c0_i32_0 = arith.constant 0 : i32
    return %arg0, %c0_i32 : i32, i32
  }
  func.func @transform_1(%arg0: i32, %arg1: i32) -> (i32, i32) {
    %c0_i32 = arith.constant 0 : i32
    %c0_i32_0 = arith.constant 0 : i32
    %c0_i32_1 = arith.constant 0 : i32
    return %c0_i32, %c0_i32_0 : i32, i32
  }
  func.func @transform_2(%arg0: i32, %arg1: i32) -> (i32, i32) {
    %c0_i32 = arith.constant 0 : i32
    %c0_i32_0 = arith.constant 0 : i32
    return %c0_i32, %arg1 : i32, i32
  }
  func.func @transform_3(%arg0: i32, %arg1: i32) -> (i32, i32) {
    %c0_i32 = arith.constant 0 : i32
    %c0_i32_0 = arith.constant 0 : i32
    return %c0_i32, %arg1 : i32, i32
  }
  func.func @transform_4(%arg0: i32, %arg1: i32) -> (i32, i32) {
    %c0_i32 = arith.constant 0 : i32
    %c0_i32_0 = arith.constant 0 : i32
    return %arg1, %c0_i32 : i32, i32
  }
  func.func @transform_5(%arg0: i32, %arg1: i32) -> (i32, i32) {
    %c0_i32 = arith.constant 0 : i32
    %c0_i32_0 = arith.constant 0 : i32
    return %arg0, %c0_i32 : i32, i32
  }
}

</mosaic_0001>

<llo_original>
// kernel: moss_block_forward.4
$region0: #{moss_block_forward.4}
  #allocation0 [shape = 'u32[]', space=smem, size = 0x4, offset = 0x4, fixed_abs, tag = 'smem constant byte address 0x4 - core index']
  #allocation1 [shape = 'u32[144,128]{1,0:T(1,128)}', space=vmem, size = 0x12000, scoped, tag = 'internal scratch']
  %s0 = inlined_call_operand.vmem [shape: f32[16,32], index: 0, kind: input, shape index: {}]
  %s1 = inlined_call_operand.vmem [shape: f32[1,32], index: 1, kind: input, shape index: {}]
  %s2 = inlined_call_operand.vmem [shape: f32[32,96], index: 2, kind: input, shape index: {}]
  %s3 = inlined_call_operand.vmem [shape: f32[16,96], index: 3, kind: output, shape index: {}]
  %s4 = sld [smem:[#allocation0]]
  $region22: #{moss_block_forward.4} parent=0
    _
  %s6 = ssub.s32 1, %s4
  %s7 = scalar_select 0, %s6, %s4
  // Predicated region
  $region2: #{moss_block_forward.4} parent=0 // pred_check
    _
  $region3: #{moss_block_forward.4} parent=0 // pred_check_branch
    %9 = sbr.rel (0) target = $region5
  $region4: #{moss_block_forward.4} parent=0 // pred_region
    _
  $region5: #{moss_block_forward.4} parent=0 // pred_fallthru
    _
  // Predicated region
  $region6: #{moss_block_forward.4} parent=0 // pred_check
    _
  $region7: #{moss_block_forward.4} parent=0 // pred_check_branch
    %11 = sbr.rel (0) target = $region9
  $region8: #{moss_block_forward.4} parent=0 // pred_region
    _
  $region9: #{moss_block_forward.4} parent=0 // pred_fallthru
    _
  // Predicated region
  $region10: #{moss_block_forward.4} parent=0 // pred_check
    _
  $region11: #{moss_block_forward.4} parent=0 // pred_check_branch
    %13 = sbr.rel (0) target = $region13
  $region12: #{moss_block_forward.4} parent=0 // pred_region
    _
  $region13: #{moss_block_forward.4} parent=0 // pred_fallthru
    _
  %v14 = vld [vmem:[%s0] sm:$0xff]
  %v15 = vld [vmem:[%s0 + $0x8] sm:$0xff]
  %v16 = vmul.f32 %v14, %v14
  %v17 = vmul.f32 %v15, %v15
  %vm18 = vcmask 261120
  %v19 = vsel %vm18, %v16, 0.0
  %20 = vadd.xlane.f32.xlu0 %v19
  %v21 = vpop.xlane.xlu0 %20
  %v22 = vsel %vm18, %v17, 0.0
  %23 = vadd.xlane.f32.xlu0 %v22
  %v24 = vpop.xlane.xlu0 %23
  %v25 = vrcp.pop 32.0
  %v26 = vmul.f32 %v21, %v25
  %v27 = vmul.f32 %v24, %v25
  %v28 = vadd.f32 %v26, 1e-05
  %v29 = vadd.f32 %v27, 1e-05
  %v30 = vrsqrt.pop %v28
  %v31 = vrsqrt.pop %v29
  %v32 = vmul.f32 %v14, %v30
  %v33 = vmul.f32 %v15, %v31
  %v34 = vld [vmem:[%s1] sm:$0x1]
  %v36 = vlaneseq
  %v37 = vshrl.u32 %v36, 7
  %v38 = vsub.s32 0, %v37
  %v39 = vrot.slane %v34, %v38
  %v41 = vmul.f32 %v32, %v39
  %v42 = vmul.f32 %v33, %v39
  %v43 = vld [vmem:[%s2] sm:$0xff]
  %v44 = vld [vmem:[%s2 + $0x8] sm:$0xff]
  %v45 = vld [vmem:[%s2 + $0x10] sm:$0xff]
  %v46 = vld [vmem:[%s2 + $0x18] sm:$0xff]
  %v48 = vsel %vm18, %v41, 0
  %v51 = vsel %vm18, %v42, 0
  %53 = vmatprep.subr.mxu0 0.0
  %54 = vmatpush1.msra.mxu0 0.0
  %55 = vmatprep.subr.mxu0 0.0
  %56 = vmatpush1.msra.mxu0 0.0
  %57 = vmatprep.subr.mxu0 0.0
  %58 = vmatpush1.msra.mxu0 0.0
  %59 = vmatprep.subr.mxu0 0.0
  %60 = vmatpush1.msra.mxu0 0.0
  %61 = vmatprep.subr.mxu0 0.0
  %62 = vmatpush1.msra.mxu0 0.0
  %63 = vmatprep.subr.mxu0 0.0
  %64 = vmatpush1.msra.mxu0 0.0
  %65 = vmatprep.subr.mxu0 0.0
  %66 = vmatpush1.msra.mxu0 0.0
  %67 = vmatprep.subr.mxu0 0.0
  %68 = vmatpush1.msra.mxu0 0.0
  %69 = vmatprep.subr.mxu0 0.0
  %70 = vmatpush1.msra.mxu0 0.0
  %71 = vmatprep.subr.mxu0 0.0
  %72 = vmatpush1.msra.mxu0 0.0
  %73 = vmatprep.subr.mxu0 0.0
  %74 = vmatpush1.msra.mxu0 0.0
  %75 = vmatprep.subr.mxu0 0.0
  %76 = vmatpush1.msra.mxu0 0.0
  %77 = vmatprep.subr.mxu0 0.0
  %78 = vmatpush1.msra.mxu0 %v46
  %79 = vmatprep.subr.mxu0 0.0
  %80 = vmatpush1.msra.mxu0 %v45
  %81 = vmatprep.subr.mxu0 0.0
  %82 = vmatpush1.msra.mxu0 %v44
  %83 = vmatprep.subr.mxu0 0.0
  %84 = vmatpush1.msra.mxu0 %v43
  %85 = vmatprep.subr.mxu0 0.0
  %86 = vmatpush2.msra.mxu0 0.0
  %87 = vmatprep.subr.mxu0 0.0
  %88 = vmatpush2.msra.mxu0 0.0
  %89 = vmatprep.subr.mxu0 0.0
  %90 = vmatpush2.msra.mxu0 0.0
  %91 = vmatprep.subr.mxu0 0.0
  %92 = vmatpush2.msra.mxu0 0.0
  %93 = vmatprep.subr.mxu0 0.0
  %94 = vmatpush2.msra.mxu0 0.0
  %95 = vmatprep.subr.mxu0 0.0
  %96 = vmatpush2.msra.mxu0 0.0
  %97 = vmatprep.subr.mxu0 0.0
  %98 = vmatpush2.msra.mxu0 0.0
  %99 = vmatprep.subr.mxu0 0.0
  %100 = vmatpush2.msra.mxu0 0.0
  %101 = vmatprep.subr.mxu0 0.0
  %102 = vmatpush2.msra.mxu0 0.0
  %103 = vmatprep.subr.mxu0 0.0
  %104 = vmatpush2.msra.mxu0 0.0
  %105 = vmatprep.subr.mxu0 0.0
  %106 = vmatpush2.msra.mxu0 0.0
  %107 = vmatprep.subr.mxu0 0.0
  %108 = vmatpush2.msra.mxu0 0.0
  %109 = vmatprep.subr.mxu0 0.0
  %110 = vmatpush2.msra.mxu0 0.0
  %111 = vmatprep.subr.mxu0 0.0
  %112 = vmatpush2.msra.mxu0 0.0
  %113 = vmatprep.subr.mxu0 0.0
  %114 = vmatpush2.msra.mxu0 0.0
  %115 = vmatprep.subr.mxu0 0.0
  %116 = vmatpush2.msra.mxu0 0.0
  %117 = vmatprep.mubr.f32.mxu0 0.0
  %118 = vmatmul.mubr.f32.gmra.mxu0 %v48
  %v119 = vpop.f32.mrf.mxu0
  %v120 = vadd.f32 0.0, %v119
  %v121 = vpop.f32.mrf.mxu0
  %122 = vmatprep.mubr.f32.mxu0 0.0
  %123 = vmatmul.mubr.f32.gmra.mxu0 %v51
  %v124 = vpop.f32.mrf.mxu0
  %v125 = vadd.f32 0.0, %v124
  %v126 = vpop.f32.mrf.mxu0
  %127 = vdwg.mxu0
  %vm128 = vcmask 785408
  %129 = vst.msk [vmem:[%s3] sm:$0xff] %vm128, %v120
  %130 = vst.msk [vmem:[%s3 + $0x8] sm:$0xff] %vm128, %v125
  // Predicated region
  $region14: #{moss_block_forward.4} parent=0 // pred_check
    _
  $region15: #{moss_block_forward.4} parent=0 // pred_check_branch
    %132 = sbr.rel (0) target = $region17
  $region16: #{moss_block_forward.4} parent=0 // pred_region
    _
  $region17: #{moss_block_forward.4} parent=0 // pred_fallthru
    _
  // Predicated region
  $region18: #{moss_block_forward.4} parent=0 // pred_check
    _
  $region19: #{moss_block_forward.4} parent=0 // pred_check_branch
    %134 = sbr.rel (0) target = $region21
  $region20: #{moss_block_forward.4} parent=0 // pred_region
    _
  $region21: #{moss_block_forward.4} parent=0 // pred_fallthru
    _

// kernel: moss_block_forward.6
$region0: #{moss_block_forward.6}
  #allocation0 [shape = 'u32[]', space=smem, size = 0x4, offset = 0x4, fixed_abs, tag = 'smem constant byte address 0x4 - core index']
  #allocation1 [shape = 'u32[144,128]{1,0:T(1,128)}', space=vmem, size = 0x12000, scoped, tag = 'internal scratch']
  %s0 = inlined_call_operand.vmem [shape: f32[16,32], index: 0, kind: input, shape index: {}]
  %s1 = inlined_call_operand.vmem [shape: f32[32,32], index: 1, kind: input, shape index: {}]
  %s2 = inlined_call_operand.vmem [shape: f32[16,32], index: 2, kind: input, shape index: {}, may-alias: {2,3}]
  %s3 = inlined_call_operand.vmem [shape: f32[16,32], index: 3, kind: output, shape index: {}, may-alias: {2,3}]
  %s4 = sld [smem:[#allocation0]]
  $region22: #{moss_block_forward.6} parent=0
    _
  %s6 = ssub.s32 1, %s4
  %s7 = scalar_select 0, %s6, %s4
  // Predicated region
  $region2: #{moss_block_forward.6} parent=0 // pred_check
    _
  $region3: #{moss_block_forward.6} parent=0 // pred_check_branch
    %9 = sbr.rel (0) target = $region5
  $region4: #{moss_block_forward.6} parent=0 // pred_region
    _
  $region5: #{moss_block_forward.6} parent=0 // pred_fallthru
    _
  // Predicated region
  $region6: #{moss_block_forward.6} parent=0 // pred_check
    _
  $region7: #{moss_block_forward.6} parent=0 // pred_check_branch
    %11 = sbr.rel (0) target = $region9
  $region8: #{moss_block_forward.6} parent=0 // pred_region
    _
  $region9: #{moss_block_forward.6} parent=0 // pred_fallthru
    _
  // Predicated region
  $region10: #{moss_block_forward.6} parent=0 // pred_check
    _
  $region11: #{moss_block_forward.6} parent=0 // pred_check_branch
    %13 = sbr.rel (0) target = $region13
  $region12: #{moss_block_forward.6} parent=0 // pred_region
    _
  $region13: #{moss_block_forward.6} parent=0 // pred_fallthru
    _
  %v14 = vld [vmem:[%s2] sm:$0xff]
  %v15 = vld [vmem:[%s2 + $0x8] sm:$0xff]
  %v16 = vld [vmem:[%s0] sm:$0xff]
  %v17 = vld [vmem:[%s0 + $0x8] sm:$0xff]
  %v18 = vld [vmem:[%s1] sm:$0xff]
  %v19 = vld [vmem:[%s1 + $0x8] sm:$0xff]
  %v20 = vld [vmem:[%s1 + $0x10] sm:$0xff]
  %v21 = vld [vmem:[%s1 + $0x18] sm:$0xff]
  %vm22 = vcmask 261120
  %v24 = vsel %vm22, %v16, 0
  %v27 = vsel %vm22, %v17, 0
  %29 = vmatprep.subr.mxu0 0.0
  %30 = vmatpush1.msra.mxu0 0.0
  %31 = vmatprep.subr.mxu0 0.0
  %32 = vmatpush1.msra.mxu0 0.0
  %33 = vmatprep.subr.mxu0 0.0
  %34 = vmatpush1.msra.mxu0 0.0
  %35 = vmatprep.subr.mxu0 0.0
  %36 = vmatpush1.msra.mxu0 0.0
  %37 = vmatprep.subr.mxu0 0.0
  %38 = vmatpush1.msra.mxu0 0.0
  %39 = vmatprep.subr.mxu0 0.0
  %40 = vmatpush1.msra.mxu0 0.0
  %41 = vmatprep.subr.mxu0 0.0
  %42 = vmatpush1.msra.mxu0 0.0
  %43 = vmatprep.subr.mxu0 0.0
  %44 = vmatpush1.msra.mxu0 0.0
  %45 = vmatprep.subr.mxu0 0.0
  %46 = vmatpush1.msra.mxu0 0.0
  %47 = vmatprep.subr.mxu0 0.0
  %48 = vmatpush1.msra.mxu0 0.0
  %49 = vmatprep.subr.mxu0 0.0
  %50 = vmatpush1.msra.mxu0 0.0
  %51 = vmatprep.subr.mxu0 0.0
  %52 = vmatpush1.msra.mxu0 0.0
  %53 = vmatprep.subr.mxu0 0.0
  %54 = vmatpush1.msra.mxu0 %v21
  %55 = vmatprep.subr.mxu0 0.0
  %56 = vmatpush1.msra.mxu0 %v20
  %57 = vmatprep.subr.mxu0 0.0
  %58 = vmatpush1.msra.mxu0 %v19
  %59 = vmatprep.subr.mxu0 0.0
  %60 = vmatpush1.msra.mxu0 %v18
  %61 = vmatprep.subr.mxu0 0.0
  %62 = vmatpush2.msra.mxu0 0.0
  %63 = vmatprep.subr.mxu0 0.0
  %64 = vmatpush2.msra.mxu0 0.0
  %65 = vmatprep.subr.mxu0 0.0
  %66 = vmatpush2.msra.mxu0 0.0
  %67 = vmatprep.subr.mxu0 0.0
  %68 = vmatpush2.msra.mxu0 0.0
  %69 = vmatprep.subr.mxu0 0.0
  %70 = vmatpush2.msra.mxu0 0.0
  %71 = vmatprep.subr.mxu0 0.0
  %72 = vmatpush2.msra.mxu0 0.0
  %73 = vmatprep.subr.mxu0 0.0
  %74 = vmatpush2.msra.mxu0 0.0
  %75 = vmatprep.subr.mxu0 0.0
  %76 = vmatpush2.msra.mxu0 0.0
  %77 = vmatprep.subr.mxu0 0.0
  %78 = vmatpush2.msra.mxu0 0.0
  %79 = vmatprep.subr.mxu0 0.0
  %80 = vmatpush2.msra.mxu0 0.0
  %81 = vmatprep.subr.mxu0 0.0
  %82 = vmatpush2.msra.mxu0 0.0
  %83 = vmatprep.subr.mxu0 0.0
  %84 = vmatpush2.msra.mxu0 0.0
  %85 = vmatprep.subr.mxu0 0.0
  %86 = vmatpush2.msra.mxu0 0.0
  %87 = vmatprep.subr.mxu0 0.0
  %88 = vmatpush2.msra.mxu0 0.0
  %89 = vmatprep.subr.mxu0 0.0
  %90 = vmatpush2.msra.mxu0 0.0
  %91 = vmatprep.subr.mxu0 0.0
  %92 = vmatpush2.msra.mxu0 0.0
  %93 = vmatprep.mubr.f32.mxu0 0.0
  %94 = vmatmul.mubr.f32.gmra.mxu0 %v24
  %v95 = vpop.f32.mrf.mxu0
  %v96 = vadd.f32 0.0, %v95
  %v97 = vpop.f32.mrf.mxu0
  %98 = vmatprep.mubr.f32.mxu0 0.0
  %99 = vmatmul.mubr.f32.gmra.mxu0 %v27
  %v100 = vpop.f32.mrf.mxu0
  %v101 = vadd.f32 0.0, %v100
  %v102 = vpop.f32.mrf.mxu0
  %103 = vdwg.mxu0
  %v104 = vadd.f32 %v14, %v96
  %v105 = vadd.f32 %v15, %v101
  %106 = vst.msk [vmem:[%s3] sm:$0xff] %vm22, %v104
  %107 = vst.msk [vmem:[%s3 + $0x8] sm:$0xff] %vm22, %v105
  // Predicated region
  $region14: #{moss_block_forward.6} parent=0 // pred_check
    _
  $region15: #{moss_block_forward.6} parent=0 // pred_check_branch
    %109 = sbr.rel (0) target = $region17
  $region16: #{moss_block_forward.6} parent=0 // pred_region
    _
  $region17: #{moss_block_forward.6} parent=0 // pred_fallthru
    _
  // Predicated region
  $region18: #{moss_block_forward.6} parent=0 // pred_check
    _
  $region19: #{moss_block_forward.6} parent=0 // pred_check_branch
    %111 = sbr.rel (0) target = $region21
  $region20: #{moss_block_forward.6} parent=0 // pred_region
    _
  $region21: #{moss_block_forward.6} parent=0 // pred_fallthru
    _

// kernel: moss_block_forward.7
$region0: #{moss_block_forward.7}
  #allocation0 [shape = 'u32[]', space=smem, size = 0x4, offset = 0x4, fixed_abs, tag = 'smem constant byte address 0x4 - core index']
  #allocation1 [shape = 'u32[144,128]{1,0:T(1,128)}', space=vmem, size = 0x12000, scoped, tag = 'internal scratch']
  #allocation2 [shape = 'f32[16,32]{1,0:T(8,128)}', space=vmem, size = 0x2000, scoped, tag = 'scratch operand']
  %s0 = inlined_call_operand.vmem [shape: f32[16,32], index: 0, kind: input, shape index: {}, may-alias: {0,5}]
  %s1 = inlined_call_operand.vmem [shape: f32[1,32], index: 1, kind: input, shape index: {}]
  %s2 = inlined_call_operand.vmem [shape: f32[32,64], index: 2, kind: input, shape index: {}]
  %s3 = inlined_call_operand.vmem [shape: f32[32,64], index: 3, kind: input, shape index: {}]
  %s4 = inlined_call_operand.vmem [shape: f32[64,32], index: 4, kind: input, shape index: {}]
  %s5 = inlined_call_operand.vmem [shape: f32[16,32], index: 5, kind: output, shape index: {}, may-alias: {0,5}]
  %s6 = sld [smem:[#allocation0]]
  $region38: #{moss_block_forward.7} parent=0
    _
  %s8 = ssub.s32 1, %s6
  %s9 = scalar_select 0, %s8, %s6
  // Predicated region
  $region2: #{moss_block_forward.7} parent=0 // pred_check
    _
  $region3: #{moss_block_forward.7} parent=0 // pred_check_branch
    %11 = sbr.rel (0) target = $region5
  $region4: #{moss_block_forward.7} parent=0 // pred_region
    _
  $region5: #{moss_block_forward.7} parent=0 // pred_fallthru
    _
  // Predicated region
  $region6: #{moss_block_forward.7} parent=0 // pred_check
    _
  $region7: #{moss_block_forward.7} parent=0 // pred_check_branch
    %13 = sbr.rel (0) target = $region9
  $region8: #{moss_block_forward.7} parent=0 // pred_region
    _
  $region9: #{moss_block_forward.7} parent=0 // pred_fallthru
    _
  // Predicated region
  $region10: #{moss_block_forward.7} parent=0 // pred_check
    _
  $region11: #{moss_block_forward.7} parent=0 // pred_check_branch
    %15 = sbr.rel (0) target = $region13
  $region12: #{moss_block_forward.7} parent=0 // pred_region
    _
  $region13: #{moss_block_forward.7} parent=0 // pred_fallthru
    _
  // Predicated region
  $region14: #{moss_block_forward.7} parent=0 // pred_check
    _
  $region15: #{moss_block_forward.7} parent=0 // pred_check_branch
    %17 = sbr.rel (0) target = $region17
  $region16: #{moss_block_forward.7} parent=0 // pred_region
    _
  $region17: #{moss_block_forward.7} parent=0 // pred_fallthru
    _
  // Predicated region
  $region18: #{moss_block_forward.7} parent=0 // pred_check
    _
  $region19: #{moss_block_forward.7} parent=0 // pred_check_branch
    %19 = sbr.rel (0) target = $region21
  $region20: #{moss_block_forward.7} parent=0 // pred_region
    _
  $region21: #{moss_block_forward.7} parent=0 // pred_fallthru
    _
  %v20 = vld [vmem:[%s0] sm:$0xff]
  %v21 = vld [vmem:[%s0 + $0x8] sm:$0xff]
  %p22 = scmp.eq.s32.totalorder 0, 0
  // Predicated region
  $region22: #{moss_block_forward.7} parent=0 // pred_check
    %p23 = pneg %p22
  $region23: #{moss_block_forward.7} parent=0 // pred_check_branch
    %25 = sbr.rel (%p23) target = $region25
  $region24: #{moss_block_forward.7} parent=0 // pred_region
    %vm26 = vcmask 261120
    %27 = vst.msk [vmem:[#allocation2] sm:$0xff] %vm26, %v20
    %28 = vst.msk [vmem:[#allocation2 + $0x8] sm:$0xff] %vm26, %v21
  $region25: #{moss_block_forward.7} parent=0 // pred_fallthru
    _
  %v29 = vmul.f32 %v20, %v20
  %v30 = vmul.f32 %v21, %v21
  %vm31 = vcmask 261120
  %v32 = vsel %vm31, %v29, 0.0
  %33 = vadd.xlane.f32.xlu0 %v32
  %v34 = vpop.xlane.xlu0 %33
  %v35 = vsel %vm31, %v30, 0.0
  %36 = vadd.xlane.f32.xlu0 %v35
  %v37 = vpop.xlane.xlu0 %36
  %v38 = vrcp.pop 32.0
  %v39 = vmul.f32 %v34, %v38
  %v40 = vmul.f32 %v37, %v38
  %v41 = vadd.f32 %v39, 1e-05
  %v42 = vadd.f32 %v40, 1e-05
  %v43 = vrsqrt.pop %v41
  %v44 = vrsqrt.pop %v42
  %v45 = vmul.f32 %v20, %v43
  %v46 = vmul.f32 %v21, %v44
  %v47 = vld [vmem:[%s1] sm:$0x1]
  %v49 = vlaneseq
  %v50 = vshrl.u32 %v49, 7
  %v51 = vsub.s32 0, %v50
  %v52 = vrot.slane %v47, %v51
  %v54 = vmul.f32 %v45, %v52
  %v55 = vmul.f32 %v46, %v52
  %v56 = vld [vmem:[%s2] sm:$0xff]
  %v57 = vld [vmem:[%s2 + $0x8] sm:$0xff]
  %v58 = vld [vmem:[%s2 + $0x10] sm:$0xff]
  %v59 = vld [vmem:[%s2 + $0x18] sm:$0xff]
  %v61 = vsel %vm31, %v54, 0
  %v64 = vsel %vm31, %v55, 0
  %66 = vmatprep.subr.mxu0 0.0
  %67 = vmatpush1.msra.mxu0 0.0
  %68 = vmatprep.subr.mxu0 0.0
  %69 = vmatpush1.msra.mxu0 0.0
  %70 = vmatprep.subr.mxu0 0.0
  %71 = vmatpush1.msra.mxu0 0.0
  %72 = vmatprep.subr.mxu0 0.0
  %73 = vmatpush1.msra.mxu0 0.0
  %74 = vmatprep.subr.mxu0 0.0
  %75 = vmatpush1.msra.mxu0 0.0
  %76 = vmatprep.subr.mxu0 0.0
  %77 = vmatpush1.msra.mxu0 0.0
  %78 = vmatprep.subr.mxu0 0.0
  %79 = vmatpush1.msra.mxu0 0.0
  %80 = vmatprep.subr.mxu0 0.0
  %81 = vmatpush1.msra.mxu0 0.0
  %82 = vmatprep.subr.mxu0 0.0
  %83 = vmatpush1.msra.mxu0 0.0
  %84 = vmatprep.subr.mxu0 0.0
  %85 = vmatpush1.msra.mxu0 0.0
  %86 = vmatprep.subr.mxu0 0.0
  %87 = vmatpush1.msra.mxu0 0.0
  %88 = vmatprep.subr.mxu0 0.0
  %89 = vmatpush1.msra.mxu0 0.0
  %90 = vmatprep.subr.mxu0 0.0
  %91 = vmatpush1.msra.mxu0 %v59
  %92 = vmatprep.subr.mxu0 0.0
  %93 = vmatpush1.msra.mxu0 %v58
  %94 = vmatprep.subr.mxu0 0.0
  %95 = vmatpush1.msra.mxu0 %v57
  %96 = vmatprep.subr.mxu0 0.0
  %97 = vmatpush1.msra.mxu0 %v56
  %98 = vmatprep.subr.mxu0 0.0
  %99 = vmatpush2.msra.mxu0 0.0
  %100 = vmatprep.subr.mxu0 0.0
  %101 = vmatpush2.msra.mxu0 0.0
  %102 = vmatprep.subr.mxu0 0.0
  %103 = vmatpush2.msra.mxu0 0.0
  %104 = vmatprep.subr.mxu0 0.0
  %105 = vmatpush2.msra.mxu0 0.0
  %106 = vmatprep.subr.mxu0 0.0
  %107 = vmatpush2.msra.mxu0 0.0
  %108 = vmatprep.subr.mxu0 0.0
  %109 = vmatpush2.msra.mxu0 0.0
  %110 = vmatprep.subr.mxu0 0.0
  %111 = vmatpush2.msra.mxu0 0.0
  %112 = vmatprep.subr.mxu0 0.0
  %113 = vmatpush2.msra.mxu0 0.0
  %114 = vmatprep.subr.mxu0 0.0
  %115 = vmatpush2.msra.mxu0 0.0
  %116 = vmatprep.subr.mxu0 0.0
  %117 = vmatpush2.msra.mxu0 0.0
  %118 = vmatprep.subr.mxu0 0.0
  %119 = vmatpush2.msra.mxu0 0.0
  %120 = vmatprep.subr.mxu0 0.0
  %121 = vmatpush2.msra.mxu0 0.0
  %122 = vmatprep.subr.mxu0 0.0
  %123 = vmatpush2.msra.mxu0 0.0
  %124 = vmatprep.subr.mxu0 0.0
  %125 = vmatpush2.msra.mxu0 0.0
  %126 = vmatprep.subr.mxu0 0.0
  %127 = vmatpush2.msra.mxu0 0.0
  %128 = vmatprep.subr.mxu0 0.0
  %129 = vmatpush2.msra.mxu0 0.0
  %130 = vmatprep.mubr.f32.mxu0 0.0
  %131 = vmatmul.mubr.f32.gmra.mxu0 %v61
  %v132 = vpop.f32.mrf.mxu0
  %v133 = vadd.f32 0.0, %v132
  %v134 = vpop.f32.mrf.mxu0
  %135 = vmatprep.mubr.f32.mxu0 0.0
  %136 = vmatmul.mubr.f32.gmra.mxu0 %v64
  %v137 = vpop.f32.mrf.mxu0
  %v138 = vadd.f32 0.0, %v137
  %v139 = vpop.f32.mrf.mxu0
  %140 = vdwg.mxu0
  %v141 = vld [vmem:[%s3] sm:$0xff]
  %v142 = vld [vmem:[%s3 + $0x8] sm:$0xff]
  %v143 = vld [vmem:[%s3 + $0x10] sm:$0xff]
  %v144 = vld [vmem:[%s3 + $0x18] sm:$0xff]
  %145 = vmatprep.subr.mxu0 0.0
  %146 = vmatpush1.msra.mxu0 0.0
  %147 = vmatprep.subr.mxu0 0.0
  %148 = vmatpush1.msra.mxu0 0.0
  %149 = vmatprep.subr.mxu0 0.0
  %150 = vmatpush1.msra.mxu0 0.0
  %151 = vmatprep.subr.mxu0 0.0
  %152 = vmatpush1.msra.mxu0 0.0
  %153 = vmatprep.subr.mxu0 0.0
  %154 = vmatpush1.msra.mxu0 0.0
  %155 = vmatprep.subr.mxu0 0.0
  %156 = vmatpush1.msra.mxu0 0.0
  %157 = vmatprep.subr.mxu0 0.0
  %158 = vmatpush1.msra.mxu0 0.0
  %159 = vmatprep.subr.mxu0 0.0
  %160 = vmatpush1.msra.mxu0 0.0
  %161 = vmatprep.subr.mxu0 0.0
  %162 = vmatpush1.msra.mxu0 0.0
  %163 = vmatprep.subr.mxu0 0.0
  %164 = vmatpush1.msra.mxu0 0.0
  %165 = vmatprep.subr.mxu0 0.0
  %166 = vmatpush1.msra.mxu0 0.0
  %167 = vmatprep.subr.mxu0 0.0
  %168 = vmatpush1.msra.mxu0 0.0
  %169 = vmatprep.subr.mxu0 0.0
  %170 = vmatpush1.msra.mxu0 %v144
  %171 = vmatprep.subr.mxu0 0.0
  %172 = vmatpush1.msra.mxu0 %v143
  %173 = vmatprep.subr.mxu0 0.0
  %174 = vmatpush1.msra.mxu0 %v142
  %175 = vmatprep.subr.mxu0 0.0
  %176 = vmatpush1.msra.mxu0 %v141
  %177 = vmatprep.subr.mxu0 0.0
  %178 = vmatpush2.msra.mxu0 0.0
  %179 = vmatprep.subr.mxu0 0.0
  %180 = vmatpush2.msra.mxu0 0.0
  %181 = vmatprep.subr.mxu0 0.0
  %182 = vmatpush2.msra.mxu0 0.0
  %183 = vmatprep.subr.mxu0 0.0
  %184 = vmatpush2.msra.mxu0 0.0
  %185 = vmatprep.subr.mxu0 0.0
  %186 = vmatpush2.msra.mxu0 0.0
  %187 = vmatprep.subr.mxu0 0.0
  %188 = vmatpush2.msra.mxu0 0.0
  %189 = vmatprep.subr.mxu0 0.0
  %190 = vmatpush2.msra.mxu0 0.0
  %191 = vmatprep.subr.mxu0 0.0
  %192 = vmatpush2.msra.mxu0 0.0
  %193 = vmatprep.subr.mxu0 0.0
  %194 = vmatpush2.msra.mxu0 0.0
  %195 = vmatprep.subr.mxu0 0.0
  %196 = vmatpush2.msra.mxu0 0.0
  %197 = vmatprep.subr.mxu0 0.0
  %198 = vmatpush2.msra.mxu0 0.0
  %199 = vmatprep.subr.mxu0 0.0
  %200 = vmatpush2.msra.mxu0 0.0
  %201 = vmatprep.subr.mxu0 0.0
  %202 = vmatpush2.msra.mxu0 0.0
  %203 = vmatprep.subr.mxu0 0.0
  %204 = vmatpush2.msra.mxu0 0.0
  %205 = vmatprep.subr.mxu0 0.0
  %206 = vmatpush2.msra.mxu0 0.0
  %207 = vmatprep.subr.mxu0 0.0
  %208 = vmatpush2.msra.mxu0 0.0
  %209 = vmatprep.mubr.f32.mxu0 0.0
  %210 = vmatmul.mubr.f32.gmra.mxu0 %v61
  %v211 = vpop.f32.mrf.mxu0
  %v212 = vadd.f32 0.0, %v211
  %v213 = vpop.f32.mrf.mxu0
  %214 = vmatprep.mubr.f32.mxu0 0.0
  %215 = vmatmul.mubr.f32.gmra.mxu0 %v64
  %v216 = vpop.f32.mrf.mxu0
  %v217 = vadd.f32 0.0, %v216
  %v218 = vpop.f32.mrf.mxu0
  %219 = vdwg.mxu0
  %v220 = vxor.u32 %v133, 2147483648
  %v221 = vxor.u32 %v138, 2147483648
  %v222 = vmul.f32 %v220, 1.442695
  %v223 = vpow.pop %v222
  %v224 = vmul.f32 %v221, 1.442695
  %v225 = vpow.pop %v224
  %v226 = vadd.f32 %v223, 1.0
  %v227 = vadd.f32 %v225, 1.0
  %v228 = vrcp.pop %v226
  %v229 = vmul.f32 1.0, %v228
  %v230 = vrcp.pop %v227
  %v231 = vmul.f32 1.0, %v230
  %v232 = vmul.f32 %v133, %v229
  %v233 = vmul.f32 %v138, %v231
  %v234 = vmul.f32 %v232, %v212
  %v235 = vmul.f32 %v233, %v217
  %v236 = vld [vmem:[#allocation2] sm:$0xff]
  %v237 = vld [vmem:[#allocation2 + $0x8] sm:$0xff]
  %v238 = vld [vmem:[%s4] sm:$0xff]
  %v239 = vld [vmem:[%s4 + $0x8] sm:$0xff]
  %v240 = vld [vmem:[%s4 + $0x10] sm:$0xff]
  %v241 = vld [vmem:[%s4 + $0x18] sm:$0xff]
  %v242 = vld [vmem:[%s4 + $0x20] sm:$0xff]
  %v243 = vld [vmem:[%s4 + $0x28] sm:$0xff]
  %v244 = vld [vmem:[%s4 + $0x30] sm:$0xff]
  %v245 = vld [vmem:[%s4 + $0x38] sm:$0xff]
  %vm246 = vcmask 523264
  %v248 = vsel %vm246, %v234, 0
  %v251 = vsel %vm246, %v235, 0
  %253 = vmatprep.subr.mxu0 0.0
  %254 = vmatpush1.msra.mxu0 0.0
  %255 = vmatprep.subr.mxu0 0.0
  %256 = vmatpush1.msra.mxu0 0.0
  %257 = vmatprep.subr.mxu0 0.0
  %258 = vmatpush1.msra.mxu0 0.0
  %259 = vmatprep.subr.mxu0 0.0
  %260 = vmatpush1.msra.mxu0 0.0
  %261 = vmatprep.subr.mxu0 0.0
  %262 = vmatpush1.msra.mxu0 0.0
  %263 = vmatprep.subr.mxu0 0.0
  %264 = vmatpush1.msra.mxu0 0.0
  %265 = vmatprep.subr.mxu0 0.0
  %266 = vmatpush1.msra.mxu0 0.0
  %267 = vmatprep.subr.mxu0 0.0
  %268 = vmatpush1.msra.mxu0 0.0
  %269 = vmatprep.subr.mxu0 0.0
  %270 = vmatpush1.msra.mxu0 %v245
  %271 = vmatprep.subr.mxu0 0.0
  %272 = vmatpush1.msra.mxu0 %v244
  %273 = vmatprep.subr.mxu0 0.0
  %274 = vmatpush1.msra.mxu0 %v243
  %275 = vmatprep.subr.mxu0 0.0
  %276 = vmatpush1.msra.mxu0 %v242
  %277 = vmatprep.subr.mxu0 0.0
  %278 = vmatpush1.msra.mxu0 %v241
  %279 = vmatprep.subr.mxu0 0.0
  %280 = vmatpush1.msra.mxu0 %v240
  %281 = vmatprep.subr.mxu0 0.0
  %282 = vmatpush1.msra.mxu0 %v239
  %283 = vmatprep.subr.mxu0 0.0
  %284 = vmatpush1.msra.mxu0 %v238
  %285 = vmatprep.subr.mxu0 0.0
  %286 = vmatpush2.msra.mxu0 0.0
  %287 = vmatprep.subr.mxu0 0.0
  %288 = vmatpush2.msra.mxu0 0.0
  %289 = vmatprep.subr.mxu0 0.0
  %290 = vmatpush2.msra.mxu0 0.0
  %291 = vmatprep.subr.mxu0 0.0
  %292 = vmatpush2.msra.mxu0 0.0
  %293 = vmatprep.subr.mxu0 0.0
  %294 = vmatpush2.msra.mxu0 0.0
  %295 = vmatprep.subr.mxu0 0.0
  %296 = vmatpush2.msra.mxu0 0.0
  %297 = vmatprep.subr.mxu0 0.0
  %298 = vmatpush2.msra.mxu0 0.0
  %299 = vmatprep.subr.mxu0 0.0
  %300 = vmatpush2.msra.mxu0 0.0
  %301 = vmatprep.subr.mxu0 0.0
  %302 = vmatpush2.msra.mxu0 0.0
  %303 = vmatprep.subr.mxu0 0.0
  %304 = vmatpush2.msra.mxu0 0.0
  %305 = vmatprep.subr.mxu0 0.0
  %306 = vmatpush2.msra.mxu0 0.0
  %307 = vmatprep.subr.mxu0 0.0
  %308 = vmatpush2.msra.mxu0 0.0
  %309 = vmatprep.subr.mxu0 0.0
  %310 = vmatpush2.msra.mxu0 0.0
  %311 = vmatprep.subr.mxu0 0.0
  %312 = vmatpush2.msra.mxu0 0.0
  %313 = vmatprep.subr.mxu0 0.0
  %314 = vmatpush2.msra.mxu0 0.0
  %315 = vmatprep.subr.mxu0 0.0
  %316 = vmatpush2.msra.mxu0 0.0
  %317 = vmatprep.mubr.f32.mxu0 0.0
  %318 = vmatmul.mubr.f32.gmra.mxu0 %v248
  %v319 = vpop.f32.mrf.mxu0
  %v320 = vadd.f32 0.0, %v319
  %v321 = vpop.f32.mrf.mxu0
  %322 = vmatprep.mubr.f32.mxu0 0.0
  %323 = vmatmul.mubr.f32.gmra.mxu0 %v251
  %v324 = vpop.f32.mrf.mxu0
  %v325 = vadd.f32 0.0, %v324
  %v326 = vpop.f32.mrf.mxu0
  %327 = vdwg.mxu0
  %v328 = vadd.f32 %v236, %v320
  %v329 = vadd.f32 %v237, %v325
  %330 = vst.msk [vmem:[#allocation2] sm:$0xff] %vm31, %v328
  %331 = vst.msk [vmem:[#allocation2 + $0x8] sm:$0xff] %vm31, %v329
  // Predicated region
  $region26: #{moss_block_forward.7} parent=0 // pred_check
    %p332 = pneg %p22
  $region27: #{moss_block_forward.7} parent=0 // pred_check_branch
    %334 = sbr.rel (%p332) target = $region29
  $region28: #{moss_block_forward.7} parent=0 // pred_region
    %v335 = vld [vmem:[#allocation2] sm:$0xff]
    %v336 = vld [vmem:[#allocation2 + $0x8] sm:$0xff]
    %337 = vst.msk [vmem:[%s5] sm:$0xff] %vm31, %v335
    %338 = vst.msk [vmem:[%s5 + $0x8] sm:$0xff] %vm31, %v336
  $region29: #{moss_block_forward.7} parent=0 // pred_fallthru
    _
  // Predicated region
  $region30: #{moss_block_forward.7} parent=0 // pred_check
    _
  $region31: #{moss_block_forward.7} parent=0 // pred_check_branch
    %340 = sbr.rel (0) target = $region33
  $region32: #{moss_block_forward.7} parent=0 // pred_region
    _
  $region33: #{moss_block_forward.7} parent=0 // pred_fallthru
    _
  // Predicated region
  $region34: #{moss_block_forward.7} parent=0 // pred_check
    _
  $region35: #{moss_block_forward.7} parent=0 // pred_check_branch
    %342 = sbr.rel (0) target = $region37
  $region36: #{moss_block_forward.7} parent=0 // pred_region
    _
  $region37: #{moss_block_forward.7} parent=0 // pred_fallthru
    _

// kernel: moss_block_forward.5
$region0: #{moss_block_forward.5}
  #allocation0 [shape = 'u32[]', space=smem, size = 0x4, offset = 0x4, fixed_abs, tag = 'smem constant byte address 0x4 - core index']
  #allocation1 [shape = 'u32[144,128]{1,0:T(1,128)}', space=vmem, size = 0x12000, scoped, tag = 'internal scratch']
  #allocation2 [shape = 'f32[4,8,1]{2,1,0:T(8,128)}', space=vmem, size = 0x4000, scoped, tag = 'scratch operand']
  #allocation3 [shape = 'f32[4,8,1]{2,1,0:T(8,128)}', space=vmem, size = 0x4000, scoped, tag = 'scratch operand']
  #allocation4 [shape = 'f32[4,8,8]{2,1,0:T(8,128)}', space=vmem, size = 0x4000, scoped, tag = 'scratch operand']
  %s0 = inlined_call_operand.vmem [shape: f32[8,8], index: 0, kind: input, shape index: {}]
  %s1 = inlined_call_operand.vmem [shape: f32[8,8], index: 1, kind: input, shape index: {}, may-alias: {1,3}]
  %s2 = inlined_call_operand.vmem [shape: f32[8,8], index: 2, kind: input, shape index: {}, may-alias: {2,4}]
  %s3 = inlined_call_operand.vmem [shape: f32[8,8], index: 3, kind: input, shape index: {}, may-alias: {1,3}]
  %s4 = inlined_call_operand.vmem [shape: f32[8,8], index: 4, kind: input, shape index: {}, may-alias: {2,4}]
  %s5 = inlined_call_operand.vmem [shape: f32[2,1,8], index: 5, kind: input, shape index: {}]
  %s6 = inlined_call_operand.vmem [shape: f32[2,8,3,4,8], index: 6, kind: input, shape index: {}, may-alias: {6,7,8}]
  %s7 = inlined_call_operand.vmem [shape: f32[2,8,3,4,8], index: 7, kind: input, shape index: {}, may-alias: {6,7,8}]
  %s8 = inlined_call_operand.vmem [shape: f32[2,8,3,4,8], index: 8, kind: input, shape index: {}, may-alias: {6,7,8}]
  %s9 = inlined_call_operand.vmem [shape: f32[2,8,4,8], index: 9, kind: output, shape index: {}]
  %s10 = sld [smem:[#allocation0]]
  $region204: #{moss_block_forward.5} parent=0
    _
  %s12 = ssub.s32 1, %s10
  %s13 = scalar_select 0, %s12, %s10
  $region1: #{moss_block_forward.5} parent=0
    #allocation5 [shape = 'u8[32768]{0}', space=vmem, size = 0x8000, scoped, tag = 'input window, operand 6']
    #allocation6 [shape = 'u8[32768]{0}', space=vmem, size = 0x8000, scoped, tag = 'input window, operand 7']
    #allocation7 [shape = 'u8[32768]{0}', space=vmem, size = 0x8000, scoped, tag = 'input window, operand 8']
    loop: start=0, step=1, limit=4
    $region2: #{moss_block_forward.5} parent=1 // loop_pre_header
      _
    $region3: #{moss_block_forward.5} parent=1 // loop_header
      %s15 = sphi 0, %s19
      %p16 = scmp.ge.s32.totalorder %s15, 4
      %s22 = sphi 0, %s41
      %s23 = sphi 0, %s37
      %s24 = sphi 0, %s33
      %s25 = sphi 0, %s22
      %s26 = sphi 0, %s23
      %s27 = sphi 0, %s24
      %s28 = sphi 0, %s25
      %s29 = sphi 0, %s26
      %s30 = sphi 0, %s27
      %s42 = sphi 0, %s42
      %s44 = sphi 0, %s42
      %s45 = sphi 0, %s44
      %s59 = sphi 0, %s45
      %s65 = sphi 0, %s67
      %s68 = sphi 0, %s65
      %s69 = sphi 0, %s68
      %s85 = sphi 0, %s69
      %s91 = sphi 0, %s93
      %s94 = sphi 0, %s91
      %s95 = sphi 0, %s94
      %s111 = sphi 0, %s95
      %s117 = sphi 0, %s119
      %s120 = sphi 0, %s117
      %s121 = sphi 0, %s120
      %s137 = sphi 0, %s121
      %s143 = sphi 0, %s145
      %s146 = sphi 0, %s143
      %s147 = sphi 0, %s146
      %s163 = sphi 0, %s147
      %s171 = sphi 0, %s173
      %s174 = sphi 0, %s171
      %s175 = sphi 0, %s174
      %s191 = sphi 0, %s175
      %s199 = sphi 0, %s201
      %s202 = sphi 0, %s199
      %s203 = sphi 0, %s202
      %s219 = sphi 0, %s203
      %s227 = sphi 0, %s229
      %s230 = sphi 0, %s227
      %s231 = sphi 0, %s230
      %s247 = sphi 0, %s231
      %s255 = sphi 0, %s257
      %s258 = sphi 0, %s255
      %s259 = sphi 0, %s258
      %s275 = sphi 0, %s259
      %s283 = sphi 0, %s285
      %s286 = sphi 0, %s283
      %s287 = sphi 0, %s286
      %s303 = sphi 0, %s287
    $region4: #{moss_block_forward.5} parent=1 // loop_header_branch
      %18 = sbr.rel (%p16) target = $region8
    $region5: #{moss_block_forward.5} parent=1 // loop_body
      %s20 = ssub.s32 %s15, 1
      %s21 = ssub.s32 %s15, 2
      %s31 = sadd.s32 1, %s24
      %p32 = scmp.ge.s32.totalorder %s31, 1
      %s33 = scalar_select %p32, 0, %s31
      %s34 = sadd.s32 1, %s23
      %s35 = scalar_select %p32, %s34, %s23
      %p36 = scmp.ge.s32.totalorder %s35, 1
      %s37 = scalar_select %p36, 0, %s35
      %s38 = sadd.s32 1, %s22
      %s39 = scalar_select %p36, %s38, %s22
      %p40 = scmp.ge.s32.totalorder %s39, 2
      %s41 = scalar_select %p40, 0, %s39
      %s43 = sadd.s32 %s42, 1
      %p46 = scmp.eq.s32.totalorder %s15, 1
      %p47 = scmp.ne.s32.totalorder %s42, %s44
      %p48 = scmp.eq.s32.totalorder %s15, 0
      %p49 = por %p47, %p48
      %p50 = scmp.ne.s32.totalorder %s42, %s44
      %p51 = scmp.eq.s32.totalorder %s20, 1
      %p52 = por %p50, %p51
      %p53 = scmp.ne.s32.totalorder %s44, %s45
      %p54 = scmp.eq.s32.totalorder %s20, 0
      %p55 = por %p53, %p54
      %p56 = scmp.ne.s32.totalorder %s44, %s45
      %p57 = scmp.eq.s32.totalorder %s21, 1
      %p58 = por %p56, %p57
      %p60 = scmp.ne.s32.totalorder %s45, %s59
      %p61 = scmp.eq.s32.totalorder %s21, 0
      %p62 = por %p60, %p61
      %s63 = ssub.s32 %s23, %s37
      %p64 = scmp.eq.s32.totalorder %s63, 0
      %s66 = sadd.s32 %s65, 1
      %s67 = scalar_select %p64, %s65, %s66
      %p70 = pneg %p64
      %p71 = scmp.eq.s32.totalorder %s15, 1
      %p72 = por %p70, %p71
      %p73 = scmp.ne.s32.totalorder %s65, %s68
      %p74 = scmp.eq.s32.totalorder %s15, 0
      %p75 = por %p73, %p74
      %p76 = scmp.ne.s32.totalorder %s65, %s68
      %p77 = scmp.eq.s32.totalorder %s20, 1
      %p78 = por %p76, %p77
      %p79 = scmp.ne.s32.totalorder %s68, %s69
      %p80 = scmp.eq.s32.totalorder %s20, 0
      %p81 = por %p79, %p80
      %p82 = scmp.ne.s32.totalorder %s68, %s69
      %p83 = scmp.eq.s32.totalorder %s21, 1
      %p84 = por %p82, %p83
      %p86 = scmp.ne.s32.totalorder %s69, %s85
      %p87 = scmp.eq.s32.totalorder %s21, 0
      %p88 = por %p86, %p87
      %s89 = ssub.s32 %s23, %s37
      %p90 = scmp.eq.s32.totalorder %s89, 0
      %s92 = sadd.s32 %s91, 1
      %s93 = scalar_select %p90, %s91, %s92
      %p96 = pneg %p90
      %p97 = scmp.eq.s32.totalorder %s15, 1
      %p98 = por %p96, %p97
      %p99 = scmp.ne.s32.totalorder %s91, %s94
      %p100 = scmp.eq.s32.totalorder %s15, 0
      %p101 = por %p99, %p100
      %p102 = scmp.ne.s32.totalorder %s91, %s94
      %p103 = scmp.eq.s32.totalorder %s20, 1
      %p104 = por %p102, %p103
      %p105 = scmp.ne.s32.totalorder %s94, %s95
      %p106 = scmp.eq.s32.totalorder %s20, 0
      %p107 = por %p105, %p106
      %p108 = scmp.ne.s32.totalorder %s94, %s95
      %p109 = scmp.eq.s32.totalorder %s21, 1
      %p110 = por %p108, %p109
      %p112 = scmp.ne.s32.totalorder %s95, %s111
      %p113 = scmp.eq.s32.totalorder %s21, 0
      %p114 = por %p112, %p113
      %s115 = ssub.s32 %s24, %s33
      %p116 = scmp.eq.s32.totalorder %s115, 0
      %s118 = sadd.s32 %s117, 1
      %s119 = scalar_select %p116, %s117, %s118
      %p122 = pneg %p116
      %p123 = scmp.eq.s32.totalorder %s15, 1
      %p124 = por %p122, %p123
      %p125 = scmp.ne.s32.totalorder %s117, %s120
      %p126 = scmp.eq.s32.totalorder %s15, 0
      %p127 = por %p125, %p126
      %p128 = scmp.ne.s32.totalorder %s117, %s120
      %p129 = scmp.eq.s32.totalorder %s20, 1
      %p130 = por %p128, %p129
      %p131 = scmp.ne.s32.totalorder %s120, %s121
      %p132 = scmp.eq.s32.totalorder %s20, 0
      %p133 = por %p131, %p132
      %p134 = scmp.ne.s32.totalorder %s120, %s121
      %p135 = scmp.eq.s32.totalorder %s21, 1
      %p136 = por %p134, %p135
      %p138 = scmp.ne.s32.totalorder %s121, %s137
      %p139 = scmp.eq.s32.totalorder %s21, 0
      %p140 = por %p138, %p139
      %s141 = ssub.s32 %s24, %s33
      %p142 = scmp.eq.s32.totalorder %s141, 0
      %s144 = sadd.s32 %s143, 1
      %s145 = scalar_select %p142, %s143, %s144
      %p148 = pneg %p142
      %p149 = scmp.eq.s32.totalorder %s15, 1
      %p150 = por %p148, %p149
      %p151 = scmp.ne.s32.totalorder %s143, %s146
      %p152 = scmp.eq.s32.totalorder %s15, 0
      %p153 = por %p151, %p152
      %p154 = scmp.ne.s32.totalorder %s143, %s146
      %p155 = scmp.eq.s32.totalorder %s20, 1
      %p156 = por %p154, %p155
      %p157 = scmp.ne.s32.totalorder %s146, %s147
      %p158 = scmp.eq.s32.totalorder %s20, 0
      %p159 = por %p157, %p158
      %p160 = scmp.ne.s32.totalorder %s146, %s147
      %p161 = scmp.eq.s32.totalorder %s21, 1
      %p162 = por %p160, %p161
      %p164 = scmp.ne.s32.totalorder %s147, %s163
      %p165 = scmp.eq.s32.totalorder %s21, 0
      %p166 = por %p164, %p165
      %s167 = ssub.s32 %s22, %s41
      %s168 = ssub.s32 %s24, %s33
      %s169 = sor.u32 %s167, %s168
      %p170 = scmp.eq.s32.totalorder %s169, 0
      %s172 = sadd.s32 %s171, 1
      %s173 = scalar_select %p170, %s171, %s172
      %p176 = pneg %p170
      %p177 = scmp.eq.s32.totalorder %s15, 1
      %p178 = por %p176, %p177
      %p179 = scmp.ne.s32.totalorder %s171, %s174
      %p180 = scmp.eq.s32.totalorder %s15, 0
      %p181 = por %p179, %p180
      %p182 = scmp.ne.s32.totalorder %s171, %s174
      %p183 = scmp.eq.s32.totalorder %s20, 1
      %p184 = por %p182, %p183
      %p185 = scmp.ne.s32.totalorder %s174, %s175
      %p186 = scmp.eq.s32.totalorder %s20, 0
      %p187 = por %p185, %p186
      %p188 = scmp.ne.s32.totalorder %s174, %s175
      %p189 = scmp.eq.s32.totalorder %s21, 1
      %p190 = por %p188, %p189
      %p192 = scmp.ne.s32.totalorder %s175, %s191
      %p193 = scmp.eq.s32.totalorder %s21, 0
      %p194 = por %p192, %p193
      %s195 = ssub.s32 %s22, %s41
      %s196 = ssub.s32 %s23, %s37
      %s197 = sor.u32 %s195, %s196
      %p198 = scmp.eq.s32.totalorder %s197, 0
      %s200 = sadd.s32 %s199, 1
      %s201 = scalar_select %p198, %s199, %s200
      %p204 = pneg %p198
      %p205 = scmp.eq.s32.totalorder %s15, 1
      %p206 = por %p204, %p205
      %p207 = scmp.ne.s32.totalorder %s199, %s202
      %p208 = scmp.eq.s32.totalorder %s15, 0
      %p209 = por %p207, %p208
      %p210 = scmp.ne.s32.totalorder %s199, %s202
      %p211 = scmp.eq.s32.totalorder %s20, 1
      %p212 = por %p210, %p211
      %p213 = scmp.ne.s32.totalorder %s202, %s203
      %p214 = scmp.eq.s32.totalorder %s20, 0
      %p215 = por %p213, %p214
      %p216 = scmp.ne.s32.totalorder %s202, %s203
      %p217 = scmp.eq.s32.totalorder %s21, 1
      %p218 = por %p216, %p217
      %p220 = scmp.ne.s32.totalorder %s203, %s219
      %p221 = scmp.eq.s32.totalorder %s21, 0
      %p222 = por %p220, %p221
      %s223 = ssub.s32 %s22, %s41
      %s224 = ssub.s32 %s24, %s33
      %s225 = sor.u32 %s223, %s224
      %p226 = scmp.eq.s32.totalorder %s225, 0
      %s228 = sadd.s32 %s227, 1
      %s229 = scalar_select %p226, %s227, %s228
      %p232 = pneg %p226
      %p233 = scmp.eq.s32.totalorder %s15, 1
      %p234 = por %p232, %p233
      %p235 = scmp.ne.s32.totalorder %s227, %s230
      %p236 = scmp.eq.s32.totalorder %s15, 0
      %p237 = por %p235, %p236
      %p238 = scmp.ne.s32.totalorder %s227, %s230
      %p239 = scmp.eq.s32.totalorder %s20, 1
      %p240 = por %p238, %p239
      %p241 = scmp.ne.s32.totalorder %s230, %s231
      %p242 = scmp.eq.s32.totalorder %s20, 0
      %p243 = por %p241, %p242
      %p244 = scmp.ne.s32.totalorder %s230, %s231
      %p245 = scmp.eq.s32.totalorder %s21, 1
      %p246 = por %p244, %p245
      %p248 = scmp.ne.s32.totalorder %s231, %s247
      %p249 = scmp.eq.s32.totalorder %s21, 0
      %p250 = por %p248, %p249
      %s251 = ssub.s32 %s22, %s41
      %s252 = ssub.s32 %s24, %s33
      %s253 = sor.u32 %s251, %s252
      %p254 = scmp.eq.s32.totalorder %s253, 0
      %s256 = sadd.s32 %s255, 1
      %s257 = scalar_select %p254, %s255, %s256
      %p260 = pneg %p254
      %p261 = scmp.eq.s32.totalorder %s15, 1
      %p262 = por %p260, %p261
      %p263 = scmp.ne.s32.totalorder %s255, %s258
      %p264 = scmp.eq.s32.totalorder %s15, 0
      %p265 = por %p263, %p264
      %p266 = scmp.ne.s32.totalorder %s255, %s258
      %p267 = scmp.eq.s32.totalorder %s20, 1
      %p268 = por %p266, %p267
      %p269 = scmp.ne.s32.totalorder %s258, %s259
      %p270 = scmp.eq.s32.totalorder %s20, 0
      %p271 = por %p269, %p270
      %p272 = scmp.ne.s32.totalorder %s258, %s259
      %p273 = scmp.eq.s32.totalorder %s21, 1
      %p274 = por %p272, %p273
      %p276 = scmp.ne.s32.totalorder %s259, %s275
      %p277 = scmp.eq.s32.totalorder %s21, 0
      %p278 = por %p276, %p277
      %s279 = ssub.s32 %s22, %s41
      %s280 = ssub.s32 %s23, %s37
      %s281 = sor.u32 %s279, %s280
      %p282 = scmp.eq.s32.totalorder %s281, 0
      %s284 = sadd.s32 %s283, 1
      %s285 = scalar_select %p282, %s283, %s284
      %p288 = pneg %p282
      %p289 = scmp.eq.s32.totalorder %s15, 1
      %p290 = por %p288, %p289
      %p291 = scmp.ne.s32.totalorder %s283, %s286
      %p292 = scmp.eq.s32.totalorder %s15, 0
      %p293 = por %p291, %p292
      %p294 = scmp.ne.s32.totalorder %s283, %s286
      %p295 = scmp.eq.s32.totalorder %s20, 1
      %p296 = por %p294, %p295
      %p297 = scmp.ne.s32.totalorder %s286, %s287
      %p298 = scmp.eq.s32.totalorder %s20, 0
      %p299 = por %p297, %p298
      %p300 = scmp.ne.s32.totalorder %s286, %s287
      %p301 = scmp.eq.s32.totalorder %s21, 1
      %p302 = por %p300, %p301
      %p304 = scmp.ne.s32.totalorder %s287, %s303
      %p305 = scmp.eq.s32.totalorder %s21, 0
      %p306 = por %p304, %p305
      %p307 = scmp.le.s32.totalorder 1, %s15
      %p308 = scmp.lt.s32.totalorder %s15, 3
      %p309 = pnand %p307, %p308
      %p310 = pneg %p309
      // Predicated region
      $region9: #{moss_block_forward.5} parent=5 // pred_check
        _
      $region10: #{moss_block_forward.5} parent=5 // pred_check_branch
        %312 = sbr.rel (%p309) target = $region12
      $region11: #{moss_block_forward.5} parent=5 // pred_region
        %s313 = ssub.s32 %s15, 1
        // Predicated region
        $region13: #{moss_block_forward.5} parent=11 // pred_check
          %p314 = pneg %p55
        $region14: #{moss_block_forward.5} parent=11 // pred_check_branch
          %316 = sbr.rel (%p314) target = $region16
        $region15: #{moss_block_forward.5} parent=11 // pred_region
          _
        $region16: #{moss_block_forward.5} parent=11 // pred_fallthru
          _
        // Predicated region
        $region17: #{moss_block_forward.5} parent=11 // pred_check
          %p317 = pneg %p81
        $region18: #{moss_block_forward.5} parent=11 // pred_check_branch
          %319 = sbr.rel (%p317) target = $region20
        $region19: #{moss_block_forward.5} parent=11 // pred_region
          %p320 = scmp.lt.s32.totalorder %s26, 0
          %s321 = scalar_select %p320, %s26, 0
          %s322 = smul.addr %s321, 8
          %s323 = scalar_lea.vmem %s1, %s322
        $region20: #{moss_block_forward.5} parent=11 // pred_fallthru
          _
        // Predicated region
        $region21: #{moss_block_forward.5} parent=11 // pred_check
          %p324 = pneg %p107
        $region22: #{moss_block_forward.5} parent=11 // pred_check_branch
          %326 = sbr.rel (%p324) target = $region24
        $region23: #{moss_block_forward.5} parent=11 // pred_region
          %p327 = scmp.lt.s32.totalorder %s26, 0
          %s328 = scalar_select %p327, %s26, 0
          %s329 = smul.addr %s328, 8
          %s330 = scalar_lea.vmem %s2, %s329
        $region24: #{moss_block_forward.5} parent=11 // pred_fallthru
          _
        // Predicated region
        $region25: #{moss_block_forward.5} parent=11 // pred_check
          %p331 = pneg %p133
        $region26: #{moss_block_forward.5} parent=11 // pred_check_branch
          %333 = sbr.rel (%p331) target = $region28
        $region27: #{moss_block_forward.5} parent=11 // pred_region
          %p334 = scmp.lt.s32.totalorder %s27, 0
          %s335 = scalar_select %p334, %s27, 0
          %s336 = smul.addr %s335, 8
          %s337 = scalar_lea.vmem %s3, %s336
        $region28: #{moss_block_forward.5} parent=11 // pred_fallthru
          _
        // Predicated region
        $region29: #{moss_block_forward.5} parent=11 // pred_check
          %p338 = pneg %p159
        $region30: #{moss_block_forward.5} parent=11 // pred_check_branch
          %340 = sbr.rel (%p338) target = $region32
        $region31: #{moss_block_forward.5} parent=11 // pred_region
          %p341 = scmp.lt.s32.totalorder %s27, 0
          %s342 = scalar_select %p341, %s27, 0
          %s343 = smul.addr %s342, 8
          %s344 = scalar_lea.vmem %s4, %s343
        $region32: #{moss_block_forward.5} parent=11 // pred_fallthru
          _
      $region12: #{moss_block_forward.5} parent=5 // pred_fallthru
        _
      %p345 = scmp.lt.s32.totalorder %s15, 2
      // Predicated region
      $region33: #{moss_block_forward.5} parent=5 // pred_check
        %p346 = pneg %p345
      $region34: #{moss_block_forward.5} parent=5 // pred_check_branch
        %348 = sbr.rel (%p346) target = $region36
      $region35: #{moss_block_forward.5} parent=5 // pred_region
        // Predicated region
        $region37: #{moss_block_forward.5} parent=35 // pred_check
          %p349 = pneg %p181
        $region38: #{moss_block_forward.5} parent=35 // pred_check_branch
          %351 = sbr.rel (%p349) target = $region40
        $region39: #{moss_block_forward.5} parent=35 // pred_region
          %p352 = scmp.lt.s32.totalorder %s22, 1
          %s353 = scalar_select %p352, %s22, 1
          %p354 = scmp.lt.s32.totalorder %s24, 0
          %s355 = scalar_select %p354, %s24, 0
          %s356 = sadd.s32 %s355, %s353
          %s357 = scalar_lea.vmem %s5, %s356
        $region40: #{moss_block_forward.5} parent=35 // pred_fallthru
          _
        // Predicated region
        $region41: #{moss_block_forward.5} parent=35 // pred_check
          %p358 = pneg %p209
        $region42: #{moss_block_forward.5} parent=35 // pred_check_branch
          %360 = sbr.rel (%p358) target = $region44
        $region43: #{moss_block_forward.5} parent=35 // pred_region
          %s361 = sand.u32 %s199, 1
          %s362 = sand.u32 %s199, 1
          %s363 = smul.addr %s362, 32
          %s364 = scalar_lea.vmem [#allocation5], %s363
          %s365 = smul.u32 8, %s23
          %s366 = smul.addr %s365, 3
          %s367 = smul.addr %s22, 24
          %s368 = sadd.s32 %s366, %s367
          %s369 = smul.addr %s368, 4
          %s370 = scalar_lea.vmem %s6, %s369
          // Predicated region
          $region45: #{moss_block_forward.5} parent=43 // pred_check
            _
          $region46: #{moss_block_forward.5} parent=43 // pred_check_branch
            %372 = sbr.rel (0) target = $region48
          $region47: #{moss_block_forward.5} parent=43 // pred_region
            // Predicated region
            $region49: #{moss_block_forward.5} parent=47 // pred_check
              _
            $region50: #{moss_block_forward.5} parent=47 // pred_check_branch
              %374 = sbr.rel target = $region52
            $region51: #{moss_block_forward.5} parent=47 // pred_region
              // Predicated region
              $region64: #{moss_block_forward.5} parent=51 // pred_check
                _
              $region65: #{moss_block_forward.5} parent=51 // pred_check_branch
                %404 = sbr.rel (0) target = $region67
              $region66: #{moss_block_forward.5} parent=51 // pred_region
                loop: start=0, step=1, limit=1
                $region68: #{moss_block_forward.5} parent=66 // loop_pre_header
                  _
                $region69: #{moss_block_forward.5} parent=66 // loop_header
                  %s406 = sphi 0, %s410
                  %p407 = scmp.ge.s32.totalorder %s406, 1
                  %s411 = sphi %s370, %s370
                  %s412 = sphi %s364, %s364
                $region70: #{moss_block_forward.5} parent=66 // loop_header_branch
                  %409 = sbr.rel (%p407) target = $region74
                $region71: #{moss_block_forward.5} parent=66 // loop_body
                  _
                $region72: #{moss_block_forward.5} parent=66 // loop_footer
                  %s410 = sadd.s32 1, %s406
                $region73: #{moss_block_forward.5} parent=66 // loop_footer_branch
                  %405 = sbr.rel target = $region69
                $region74: #{moss_block_forward.5} parent=66 // loop_exit
                  _
                %s414 = ssub.s32 16, 1
                loop: start=0, step=1, limit=1
                $region75: #{moss_block_forward.5} parent=66 // loop_pre_header
                  _
                $region76: #{moss_block_forward.5} parent=66 // loop_header
                  %s416 = sphi 0, %s420
                  %p417 = scmp.ge.s32.totalorder %s416, 1
                  %s421 = sphi %s370, %s370
                  %s422 = sphi %s364, %s364
                $region77: #{moss_block_forward.5} parent=66 // loop_header_branch
                  %419 = sbr.rel (%p417) target = $region81
                $region78: #{moss_block_forward.5} parent=66 // loop_body
                  %v423 = vld [vmem:[%s421] sm:%s414]
                  %424 = vst [vmem:[%s422] sm:%s414] %v423
                  %v425 = vld [vmem:[%s421 + $0xc] sm:%s414]
                  %426 = vst [vmem:[%s422 + $0x4] sm:%s414] %v425
                  %v427 = vld [vmem:[%s421 + $0x18] sm:%s414]
                  %428 = vst [vmem:[%s422 + $0x8] sm:%s414] %v427
                  %v429 = vld [vmem:[%s421 + $0x24] sm:%s414]
                  %430 = vst [vmem:[%s422 + $0xc] sm:%s414] %v429
                  %v431 = vld [vmem:[%s421 + $0x30] sm:%s414]
                  %432 = vst [vmem:[%s422 + $0x10] sm:%s414] %v431
                  %v433 = vld [vmem:[%s421 + $0x3c] sm:%s414]
                  %434 = vst [vmem:[%s422 + $0x14] sm:%s414] %v433
                  %v435 = vld [vmem:[%s421 + $0x48] sm:%s414]
                  %436 = vst [vmem:[%s422 + $0x18] sm:%s414] %v435
                  %v437 = vld [vmem:[%s421 + $0x54] sm:%s414]
                  %438 = vst [vmem:[%s422 + $0x1c] sm:%s414] %v437
                $region79: #{moss_block_forward.5} parent=66 // loop_footer
                  %s420 = sadd.s32 1, %s416
                $region80: #{moss_block_forward.5} parent=66 // loop_footer_branch
                  %415 = sbr.rel target = $region76
                $region81: #{moss_block_forward.5} parent=66 // loop_exit
                  _
              $region67: #{moss_block_forward.5} parent=51 // pred_fallthru
                _
            $region52: #{moss_block_forward.5} parent=47 // pred_fallthru
              _
            // Predicated region
            $region53: #{moss_block_forward.5} parent=47 // pred_check
              _
            $region54: #{moss_block_forward.5} parent=47 // pred_check_branch
              %376 = sbr.rel (0) target = $region56
            $region55: #{moss_block_forward.5} parent=47 // pred_region
              %s378 = ssub.s32 16, 1
              loop: start=0, step=1, limit=1
              $region57: #{moss_block_forward.5} parent=55 // loop_pre_header
                _
              $region58: #{moss_block_forward.5} parent=55 // loop_header
                %s380 = sphi 0, %s384
                %p381 = scmp.ge.s32.totalorder %s380, 1
                %s385 = sphi %s370, %s370
                %s386 = sphi %s364, %s364
              $region59: #{moss_block_forward.5} parent=55 // loop_header_branch
                %383 = sbr.rel (%p381) target = $region63
              $region60: #{moss_block_forward.5} parent=55 // loop_body
                %v387 = vld [vmem:[%s385] sm:%s378]
                %388 = vst [vmem:[%s386] sm:%s378] %v387
                %v389 = vld [vmem:[%s385 + $0xc] sm:%s378]
                %390 = vst [vmem:[%s386 + $0x4] sm:%s378] %v389
                %v391 = vld [vmem:[%s385 + $0x18] sm:%s378]
                %392 = vst [vmem:[%s386 + $0x8] sm:%s378] %v391
                %v393 = vld [vmem:[%s385 + $0x24] sm:%s378]
                %394 = vst [vmem:[%s386 + $0xc] sm:%s378] %v393
                %v395 = vld [vmem:[%s385 + $0x30] sm:%s378]
                %396 = vst [vmem:[%s386 + $0x10] sm:%s378] %v395
                %v397 = vld [vmem:[%s385 + $0x3c] sm:%s378]
                %398 = vst [vmem:[%s386 + $0x14] sm:%s378] %v397
                %v399 = vld [vmem:[%s385 + $0x48] sm:%s378]
                %400 = vst [vmem:[%s386 + $0x18] sm:%s378] %v399
                %v401 = vld [vmem:[%s385 + $0x54] sm:%s378]
                %402 = vst [vmem:[%s386 + $0x1c] sm:%s378] %v401
              $region61: #{moss_block_forward.5} parent=55 // loop_footer
                %s384 = sadd.s32 1, %s380
              $region62: #{moss_block_forward.5} parent=55 // loop_footer_branch
                %379 = sbr.rel target = $region58
              $region63: #{moss_block_forward.5} parent=55 // loop_exit
                _
            $region56: #{moss_block_forward.5} parent=47 // pred_fallthru
              _
          $region48: #{moss_block_forward.5} parent=43 // pred_fallthru
            _
          %439 = vnop
        $region44: #{moss_block_forward.5} parent=35 // pred_fallthru
          _
        // Predicated region
        $region82: #{moss_block_forward.5} parent=35 // pred_check
          %p440 = pneg %p237
        $region83: #{moss_block_forward.5} parent=35 // pred_check_branch
          %442 = sbr.rel (%p440) target = $region85
        $region84: #{moss_block_forward.5} parent=35 // pred_region
          %s443 = sand.u32 %s227, 1
          %s444 = sand.u32 %s227, 1
          %s445 = smul.addr %s444, 32
          %s446 = scalar_lea.vmem [#allocation6], %s445
          %s447 = smul.u32 8, %s24
          %s448 = smul.addr %s447, 3
          %s449 = sadd.s32 1, %s448
          %s450 = smul.addr %s22, 24
          %s451 = sadd.s32 %s449, %s450
          %s452 = smul.addr %s451, 4
          %s453 = scalar_lea.vmem %s7, %s452
          // Predicated region
          $region86: #{moss_block_forward.5} parent=84 // pred_check
            _
          $region87: #{moss_block_forward.5} parent=84 // pred_check_branch
            %455 = sbr.rel (0) target = $region89
          $region88: #{moss_block_forward.5} parent=84 // pred_region
            // Predicated region
            $region90: #{moss_block_forward.5} parent=88 // pred_check
              _
            $region91: #{moss_block_forward.5} parent=88 // pred_check_branch
              %457 = sbr.rel target = $region93
            $region92: #{moss_block_forward.5} parent=88 // pred_region
              // Predicated region
              $region105: #{moss_block_forward.5} parent=92 // pred_check
                _
              $region106: #{moss_block_forward.5} parent=92 // pred_check_branch
                %487 = sbr.rel (0) target = $region108
              $region107: #{moss_block_forward.5} parent=92 // pred_region
                loop: start=0, step=1, limit=1
                $region109: #{moss_block_forward.5} parent=107 // loop_pre_header
                  _
                $region110: #{moss_block_forward.5} parent=107 // loop_header
                  %s489 = sphi 0, %s493
                  %p490 = scmp.ge.s32.totalorder %s489, 1
                  %s494 = sphi %s453, %s453
                  %s495 = sphi %s446, %s446
                $region111: #{moss_block_forward.5} parent=107 // loop_header_branch
                  %492 = sbr.rel (%p490) target = $region115
                $region112: #{moss_block_forward.5} parent=107 // loop_body
                  _
                $region113: #{moss_block_forward.5} parent=107 // loop_footer
                  %s493 = sadd.s32 1, %s489
                $region114: #{moss_block_forward.5} parent=107 // loop_footer_branch
                  %488 = sbr.rel target = $region110
                $region115: #{moss_block_forward.5} parent=107 // loop_exit
                  _
                %s497 = ssub.s32 16, 1
                loop: start=0, step=1, limit=1
                $region116: #{moss_block_forward.5} parent=107 // loop_pre_header
                  _
                $region117: #{moss_block_forward.5} parent=107 // loop_header
                  %s499 = sphi 0, %s503
                  %p500 = scmp.ge.s32.totalorder %s499, 1
                  %s504 = sphi %s453, %s453
                  %s505 = sphi %s446, %s446
                $region118: #{moss_block_forward.5} parent=107 // loop_header_branch
                  %502 = sbr.rel (%p500) target = $region122
                $region119: #{moss_block_forward.5} parent=107 // loop_body
                  %v506 = vld [vmem:[%s504] sm:%s497]
                  %507 = vst [vmem:[%s505] sm:%s497] %v506
                  %v508 = vld [vmem:[%s504 + $0xc] sm:%s497]
                  %509 = vst [vmem:[%s505 + $0x4] sm:%s497] %v508
                  %v510 = vld [vmem:[%s504 + $0x18] sm:%s497]
                  %511 = vst [vmem:[%s505 + $0x8] sm:%s497] %v510
                  %v512 = vld [vmem:[%s504 + $0x24] sm:%s497]
                  %513 = vst [vmem:[%s505 + $0xc] sm:%s497] %v512
                  %v514 = vld [vmem:[%s504 + $0x30] sm:%s497]
                  %515 = vst [vmem:[%s505 + $0x10] sm:%s497] %v514
                  %v516 = vld [vmem:[%s504 + $0x3c] sm:%s497]
                  %517 = vst [vmem:[%s505 + $0x14] sm:%s497] %v516
                  %v518 = vld [vmem:[%s504 + $0x48] sm:%s497]
                  %519 = vst [vmem:[%s505 + $0x18] sm:%s497] %v518
                  %v520 = vld [vmem:[%s504 + $0x54] sm:%s497]
                  %521 = vst [vmem:[%s505 + $0x1c] sm:%s497] %v520
                $region120: #{moss_block_forward.5} parent=107 // loop_footer
                  %s503 = sadd.s32 1, %s499
                $region121: #{moss_block_forward.5} parent=107 // loop_footer_branch
                  %498 = sbr.rel target = $region117
                $region122: #{moss_block_forward.5} parent=107 // loop_exit
                  _
              $region108: #{moss_block_forward.5} parent=92 // pred_fallthru
                _
            $region93: #{moss_block_forward.5} parent=88 // pred_fallthru
              _
            // Predicated region
            $region94: #{moss_block_forward.5} parent=88 // pred_check
              _
            $region95: #{moss_block_forward.5} parent=88 // pred_check_branch
              %459 = sbr.rel (0) target = $region97
            $region96: #{moss_block_forward.5} parent=88 // pred_region
              %s461 = ssub.s32 16, 1
              loop: start=0, step=1, limit=1
              $region98: #{moss_block_forward.5} parent=96 // loop_pre_header
                _
              $region99: #{moss_block_forward.5} parent=96 // loop_header
                %s463 = sphi 0, %s467
                %p464 = scmp.ge.s32.totalorder %s463, 1
                %s468 = sphi %s453, %s453
                %s469 = sphi %s446, %s446
              $region100: #{moss_block_forward.5} parent=96 // loop_header_branch
                %466 = sbr.rel (%p464) target = $region104
              $region101: #{moss_block_forward.5} parent=96 // loop_body
                %v470 = vld [vmem:[%s468] sm:%s461]
                %471 = vst [vmem:[%s469] sm:%s461] %v470
                %v472 = vld [vmem:[%s468 + $0xc] sm:%s461]
                %473 = vst [vmem:[%s469 + $0x4] sm:%s461] %v472
                %v474 = vld [vmem:[%s468 + $0x18] sm:%s461]
                %475 = vst [vmem:[%s469 + $0x8] sm:%s461] %v474
                %v476 = vld [vmem:[%s468 + $0x24] sm:%s461]
                %477 = vst [vmem:[%s469 + $0xc] sm:%s461] %v476
                %v478 = vld [vmem:[%s468 + $0x30] sm:%s461]
                %479 = vst [vmem:[%s469 + $0x10] sm:%s461] %v478
                %v480 = vld [vmem:[%s468 + $0x3c] sm:%s461]
                %481 = vst [vmem:[%s469 + $0x14] sm:%s461] %v480
                %v482 = vld [vmem:[%s468 + $0x48] sm:%s461]
                %483 = vst [vmem:[%s469 + $0x18] sm:%s461] %v482
                %v484 = vld [vmem:[%s468 + $0x54] sm:%s461]
                %485 = vst [vmem:[%s469 + $0x1c] sm:%s461] %v484
              $region102: #{moss_block_forward.5} parent=96 // loop_footer
                %s467 = sadd.s32 1, %s463
              $region103: #{moss_block_forward.5} parent=96 // loop_footer_branch
                %462 = sbr.rel target = $region99
              $region104: #{moss_block_forward.5} parent=96 // loop_exit
                _
            $region97: #{moss_block_forward.5} parent=88 // pred_fallthru
              _
          $region89: #{moss_block_forward.5} parent=84 // pred_fallthru
            _
          %522 = vnop
        $region85: #{moss_block_forward.5} parent=35 // pred_fallthru
          _
        // Predicated region
        $region123: #{moss_block_forward.5} parent=35 // pred_check
          %p523 = pneg %p265
        $region124: #{moss_block_forward.5} parent=35 // pred_check_branch
          %525 = sbr.rel (%p523) target = $region126
        $region125: #{moss_block_forward.5} parent=35 // pred_region
          %s526 = sand.u32 %s255, 1
          %s527 = sand.u32 %s255, 1
          %s528 = smul.addr %s527, 32
          %s529 = scalar_lea.vmem [#allocation7], %s528
          %s530 = smul.u32 8, %s24
          %s531 = smul.addr %s530, 3
          %s532 = sadd.s32 2, %s531
          %s533 = smul.addr %s22, 24
          %s534 = sadd.s32 %s532, %s533
          %s535 = smul.addr %s534, 4
          %s536 = scalar_lea.vmem %s8, %s535
          // Predicated region
          $region127: #{moss_block_forward.5} parent=125 // pred_check
            _
          $region128: #{moss_block_forward.5} parent=125 // pred_check_branch
            %538 = sbr.rel (0) target = $region130
          $region129: #{moss_block_forward.5} parent=125 // pred_region
            // Predicated region
            $region131: #{moss_block_forward.5} parent=129 // pred_check
              _
            $region132: #{moss_block_forward.5} parent=129 // pred_check_branch
              %540 = sbr.rel target = $region134
            $region133: #{moss_block_forward.5} parent=129 // pred_region
              // Predicated region
              $region146: #{moss_block_forward.5} parent=133 // pred_check
                _
              $region147: #{moss_block_forward.5} parent=133 // pred_check_branch
                %570 = sbr.rel (0) target = $region149
              $region148: #{moss_block_forward.5} parent=133 // pred_region
                loop: start=0, step=1, limit=1
                $region150: #{moss_block_forward.5} parent=148 // loop_pre_header
                  _
                $region151: #{moss_block_forward.5} parent=148 // loop_header
                  %s572 = sphi 0, %s576
                  %p573 = scmp.ge.s32.totalorder %s572, 1
                  %s577 = sphi %s536, %s536
                  %s578 = sphi %s529, %s529
                $region152: #{moss_block_forward.5} parent=148 // loop_header_branch
                  %575 = sbr.rel (%p573) target = $region156
                $region153: #{moss_block_forward.5} parent=148 // loop_body
                  _
                $region154: #{moss_block_forward.5} parent=148 // loop_footer
                  %s576 = sadd.s32 1, %s572
                $region155: #{moss_block_forward.5} parent=148 // loop_footer_branch
                  %571 = sbr.rel target = $region151
                $region156: #{moss_block_forward.5} parent=148 // loop_exit
                  _
                %s580 = ssub.s32 16, 1
                loop: start=0, step=1, limit=1
                $region157: #{moss_block_forward.5} parent=148 // loop_pre_header
                  _
                $region158: #{moss_block_forward.5} parent=148 // loop_header
                  %s582 = sphi 0, %s586
                  %p583 = scmp.ge.s32.totalorder %s582, 1
                  %s587 = sphi %s536, %s536
                  %s588 = sphi %s529, %s529
                $region159: #{moss_block_forward.5} parent=148 // loop_header_branch
                  %585 = sbr.rel (%p583) target = $region163
                $region160: #{moss_block_forward.5} parent=148 // loop_body
                  %v589 = vld [vmem:[%s587] sm:%s580]
                  %590 = vst [vmem:[%s588] sm:%s580] %v589
                  %v591 = vld [vmem:[%s587 + $0xc] sm:%s580]
                  %592 = vst [vmem:[%s588 + $0x4] sm:%s580] %v591
                  %v593 = vld [vmem:[%s587 + $0x18] sm:%s580]
                  %594 = vst [vmem:[%s588 + $0x8] sm:%s580] %v593
                  %v595 = vld [vmem:[%s587 + $0x24] sm:%s580]
                  %596 = vst [vmem:[%s588 + $0xc] sm:%s580] %v595
                  %v597 = vld [vmem:[%s587 + $0x30] sm:%s580]
                  %598 = vst [vmem:[%s588 + $0x10] sm:%s580] %v597
                  %v599 = vld [vmem:[%s587 + $0x3c] sm:%s580]
                  %600 = vst [vmem:[%s588 + $0x14] sm:%s580] %v599
                  %v601 = vld [vmem:[%s587 + $0x48] sm:%s580]
                  %602 = vst [vmem:[%s588 + $0x18] sm:%s580] %v601
                  %v603 = vld [vmem:[%s587 + $0x54] sm:%s580]
                  %604 = vst [vmem:[%s588 + $0x1c] sm:%s580] %v603
                $region161: #{moss_block_forward.5} parent=148 // loop_footer
                  %s586 = sadd.s32 1, %s582
                $region162: #{moss_block_forward.5} parent=148 // loop_footer_branch
                  %581 = sbr.rel target = $region158
                $region163: #{moss_block_forward.5} parent=148 // loop_exit
                  _
              $region149: #{moss_block_forward.5} parent=133 // pred_fallthru
                _
            $region134: #{moss_block_forward.5} parent=129 // pred_fallthru
              _
            // Predicated region
            $region135: #{moss_block_forward.5} parent=129 // pred_check
              _
            $region136: #{moss_block_forward.5} parent=129 // pred_check_branch
              %542 = sbr.rel (0) target = $region138
            $region137: #{moss_block_forward.5} parent=129 // pred_region
              %s544 = ssub.s32 16, 1
              loop: start=0, step=1, limit=1
              $region139: #{moss_block_forward.5} parent=137 // loop_pre_header
                _
              $region140: #{moss_block_forward.5} parent=137 // loop_header
                %s546 = sphi 0, %s550
                %p547 = scmp.ge.s32.totalorder %s546, 1
                %s551 = sphi %s536, %s536
                %s552 = sphi %s529, %s529
              $region141: #{moss_block_forward.5} parent=137 // loop_header_branch
                %549 = sbr.rel (%p547) target = $region145
              $region142: #{moss_block_forward.5} parent=137 // loop_body
                %v553 = vld [vmem:[%s551] sm:%s544]
                %554 = vst [vmem:[%s552] sm:%s544] %v553
                %v555 = vld [vmem:[%s551 + $0xc] sm:%s544]
                %556 = vst [vmem:[%s552 + $0x4] sm:%s544] %v555
                %v557 = vld [vmem:[%s551 + $0x18] sm:%s544]
                %558 = vst [vmem:[%s552 + $0x8] sm:%s544] %v557
                %v559 = vld [vmem:[%s551 + $0x24] sm:%s544]
                %560 = vst [vmem:[%s552 + $0xc] sm:%s544] %v559
                %v561 = vld [vmem:[%s551 + $0x30] sm:%s544]
                %562 = vst [vmem:[%s552 + $0x10] sm:%s544] %v561
                %v563 = vld [vmem:[%s551 + $0x3c] sm:%s544]
                %564 = vst [vmem:[%s552 + $0x14] sm:%s544] %v563
                %v565 = vld [vmem:[%s551 + $0x48] sm:%s544]
                %566 = vst [vmem:[%s552 + $0x18] sm:%s544] %v565
                %v567 = vld [vmem:[%s551 + $0x54] sm:%s544]
                %568 = vst [vmem:[%s552 + $0x1c] sm:%s544] %v567
              $region143: #{moss_block_forward.5} parent=137 // loop_footer
                %s550 = sadd.s32 1, %s546
              $region144: #{moss_block_forward.5} parent=137 // loop_footer_branch
                %545 = sbr.rel target = $region140
              $region145: #{moss_block_forward.5} parent=137 // loop_exit
                _
            $region138: #{moss_block_forward.5} parent=129 // pred_fallthru
              _
          $region130: #{moss_block_forward.5} parent=125 // pred_fallthru
            _
          %605 = vnop
        $region126: #{moss_block_forward.5} parent=35 // pred_fallthru
          _
      $region36: #{moss_block_forward.5} parent=5 // pred_fallthru
        _
      %p606 = scmp.le.s32.totalorder 1, %s15
      %p607 = scmp.lt.s32.totalorder %s15, 3
      %p608 = pnand %p606, %p607
      %p609 = pneg %p608
      // Predicated region
      $region164: #{moss_block_forward.5} parent=5 // pred_check
        _
      $region165: #{moss_block_forward.5} parent=5 // pred_check_branch
        %611 = sbr.rel (%p608) target = $region167
      $region166: #{moss_block_forward.5} parent=5 // pred_region
        %s612 = ssub.s32 %s15, 1
        %s613 = sand.u32 %s202, 1
        %s614 = sand.u32 %s202, 1
        %s615 = smul.addr %s614, 32
        %s616 = scalar_lea.vmem [#allocation5], %s615
        // Predicated region
        $region168: #{moss_block_forward.5} parent=166 // pred_check
          %p617 = pneg %p215
        $region169: #{moss_block_forward.5} parent=166 // pred_check_branch
          %619 = sbr.rel (%p617) target = $region171
        $region170: #{moss_block_forward.5} parent=166 // pred_region
          _
        $region171: #{moss_block_forward.5} parent=166 // pred_fallthru
          _
        %s620 = sand.u32 %s230, 1
        %s621 = sand.u32 %s230, 1
        %s622 = smul.addr %s621, 32
        %s623 = scalar_lea.vmem [#allocation6], %s622
        // Predicated region
        $region172: #{moss_block_forward.5} parent=166 // pred_check
          %p624 = pneg %p243
        $region173: #{moss_block_forward.5} parent=166 // pred_check_branch
          %626 = sbr.rel (%p624) target = $region175
        $region174: #{moss_block_forward.5} parent=166 // pred_region
          _
        $region175: #{moss_block_forward.5} parent=166 // pred_fallthru
          _
        %s627 = sand.u32 %s258, 1
        %s628 = sand.u32 %s258, 1
        %s629 = smul.addr %s628, 32
        %s630 = scalar_lea.vmem [#allocation7], %s629
        // Predicated region
        $region176: #{moss_block_forward.5} parent=166 // pred_check
          %p631 = pneg %p271
        $region177: #{moss_block_forward.5} parent=166 // pred_check_branch
          %633 = sbr.rel (%p631) target = $region179
        $region178: #{moss_block_forward.5} parent=166 // pred_region
          _
        $region179: #{moss_block_forward.5} parent=166 // pred_fallthru
          _
        %p634 = pneg %p55
        %p635 = pneg %p52
        %p636 = scmp.lt.s32.totalorder %s26, 0
        %s637 = scalar_select %p636, %s26, 0
        %s638 = smul.addr %s637, 8
        %s639 = scalar_lea.vmem %s1, %s638
        %p640 = pneg %p81
        %p641 = pneg %p78
        %p642 = scmp.lt.s32.totalorder %s26, 0
        %s643 = scalar_select %p642, %s26, 0
        %s644 = smul.addr %s643, 8
        %s645 = scalar_lea.vmem %s2, %s644
        %p646 = pneg %p107
        %p647 = pneg %p104
        %p648 = scmp.lt.s32.totalorder %s27, 0
        %s649 = scalar_select %p648, %s27, 0
        %s650 = smul.addr %s649, 8
        %s651 = scalar_lea.vmem %s3, %s650
        %p652 = pneg %p133
        %p653 = pneg %p130
        %p654 = scmp.lt.s32.totalorder %s27, 0
        %s655 = scalar_select %p654, %s27, 0
        %s656 = smul.addr %s655, 8
        %s657 = scalar_lea.vmem %s4, %s656
        %p658 = pneg %p159
        %p659 = pneg %p156
        %p660 = scmp.lt.s32.totalorder %s25, 1
        %s661 = scalar_select %p660, %s25, 1
        %p662 = scmp.lt.s32.totalorder %s27, 0
        %s663 = scalar_select %p662, %s27, 0
        %s664 = sadd.s32 %s663, %s661
        %s665 = scalar_lea.vmem %s5, %s664
        %p666 = pneg %p187
        %p667 = pneg %p184
        %s668 = sand.u32 %s202, 1
        %s669 = sand.u32 %s202, 1
        %s670 = smul.addr %s669, 32
        %s671 = scalar_lea.vmem [#allocation5], %s670
        %p672 = pneg %p215
        %p673 = pneg %p212
        %s674 = sand.u32 %s230, 1
        %s675 = sand.u32 %s230, 1
        %s676 = smul.addr %s675, 32
        %s677 = scalar_lea.vmem [#allocation6], %s676
        %p678 = pneg %p243
        %p679 = pneg %p240
        %s680 = sand.u32 %s258, 1
        %s681 = sand.u32 %s258, 1
        %s682 = smul.addr %s681, 32
        %s683 = scalar_lea.vmem [#allocation7], %s682
        %p684 = pneg %p271
        %p685 = pneg %p268
        %p686 = pneg %p299
        %p687 = pneg %p296
        %s688 = smul.u32 8, %s26
        %p689 = scmp.lt.s32.totalorder %s25, 1
        %s690 = scalar_select %p689, %s25, 1
        %p691 = scmp.lt.s32.totalorder %s688, 7
        %s692 = scalar_select %p691, %s688, 7
        %s693 = smul.addr %s690, 8
        %s694 = sadd.s32 %s692, %s693
        %s695 = smul.addr %s694, 4
        %s696 = scalar_lea.vmem %s9, %s695
        %p697 = scmp.lt.s32.totalorder %s26, 0
        %s698 = scalar_select %p697, %s26, 0
        %s699 = smul.addr %s698, 8
        %s700 = scalar_lea.vmem %s1, %s699
        %p701 = scmp.lt.s32.totalorder %s26, 0
        %s702 = scalar_select %p701, %s26, 0
        %s703 = smul.addr %s702, 8
        %s704 = scalar_lea.vmem %s2, %s703
        %p705 = scmp.lt.s32.totalorder %s27, 0
        %s706 = scalar_select %p705, %s27, 0
        %s707 = smul.addr %s706, 8
        %s708 = scalar_lea.vmem %s3, %s707
        %p709 = scmp.lt.s32.totalorder %s27, 0
        %s710 = scalar_select %p709, %s27, 0
        %s711 = smul.addr %s710, 8
        %s712 = scalar_lea.vmem %s4, %s711
        %p713 = scmp.lt.s32.totalorder %s25, 1
        %s714 = scalar_select %p713, %s25, 1
        %p715 = scmp.lt.s32.totalorder %s27, 0
        %s716 = scalar_select %p715, %s27, 0
        %s717 = sadd.s32 %s716, %s714
        %s718 = scalar_lea.vmem %s5, %s717
        %s719 = smul.u32 8, %s26
        %s720 = smul.u32 8, %s27
        %s721 = smul.u32 8, %s27
        %s722 = smul.u32 8, %s26
        %p723 = scmp.lt.s32.totalorder %s25, 1
        %s724 = scalar_select %p723, %s25, 1
        %p725 = scmp.lt.s32.totalorder %s722, 7
        %s726 = scalar_select %p725, %s722, 7
        %s727 = smul.addr %s724, 8
        %s728 = sadd.s32 %s726, %s727
        %s729 = smul.addr %s728, 4
        %s730 = scalar_lea.vmem %s9, %s729
        %s731 = smul.u32 8, %s26
        %p732 = scmp.eq.s32.totalorder %s27, 0
        // Predicated region
        $region180: #{moss_block_forward.5} parent=166 // pred_check
          %p733 = pneg %p732
        $region181: #{moss_block_forward.5} parent=166 // pred_check_branch
          %735 = sbr.rel (%p733) target = $region183
        $region182: #{moss_block_forward.5} parent=166 // pred_region
          %vm736 = vcmask 7168
          %737 = vst.msk [vmem:[#allocation2] sm:$0xff] %vm736, -inf
          %738 = vst.msk [vmem:[#allocation2 + $0x8] sm:$0xff] %vm736, -inf
          %739 = vst.msk [vmem:[#allocation2 + $0x10] sm:$0xff] %vm736, -inf
          %740 = vst.msk [vmem:[#allocation2 + $0x18] sm:$0xff] %vm736, -inf
          %741 = vst.msk [vmem:[#allocation3] sm:$0xff] %vm736, 0.0
          %742 = vst.msk [vmem:[#allocation3 + $0x8] sm:$0xff] %vm736, 0.0
          %743 = vst.msk [vmem:[#allocation3 + $0x10] sm:$0xff] %vm736, 0.0
          %744 = vst.msk [vmem:[#allocation3 + $0x18] sm:$0xff] %vm736, 0.0
          %vm745 = vcmask 64512
          %746 = vst.msk [vmem:[#allocation4] sm:$0xff] %vm745, 0.0
          %747 = vst.msk [vmem:[#allocation4 + $0x8] sm:$0xff] %vm745, 0.0
          %748 = vst.msk [vmem:[#allocation4 + $0x10] sm:$0xff] %vm745, 0.0
          %749 = vst.msk [vmem:[#allocation4 + $0x18] sm:$0xff] %vm745, 0.0
        $region183: #{moss_block_forward.5} parent=166 // pred_fallthru
          _
        %s750 = smul.u32 %s27, 8
        %s751 = smul.u32 %s26, 8
        %s752 = sadd.s32 %s751, 7
        %p753 = scmp.le.s32.totalorder %s750, %s752
        // Predicated region
        $region184: #{moss_block_forward.5} parent=166 // pred_check
          %p754 = pneg %p753
        $region185: #{moss_block_forward.5} parent=166 // pred_check_branch
          %756 = sbr.rel (%p754) target = $region187
        $region186: #{moss_block_forward.5} parent=166 // pred_region
          %v757 = vld [vmem:[%s0] sm:$0xff]
          %v758 = vld [vmem:[%s616] sm:$0xf]
          %v759 = vld [vmem:[%s616 + $0x4] sm:$0xf]
          %v760 = vld [vmem:[%s616 + $0x8] sm:$0xf]
          %v761 = vld [vmem:[%s616 + $0xc] sm:$0xf]
          %v762 = vld [vmem:[%s616 + $0x10] sm:$0xf]
          %v763 = vld [vmem:[%s616 + $0x14] sm:$0xf]
          %v764 = vld [vmem:[%s616 + $0x18] sm:$0xf]
          %v765 = vld [vmem:[%s616 + $0x1c] sm:$0xf]
          %v766 = vld [vmem:[%s700] sm:$0xff]
          %v767 = vld [vmem:[%s704] sm:$0xff]
          %v776 = vcombine.low %v758, %v759
          %v777 = vcombine.low %v760, %v761
          %v778 = vcombine.low %v762, %v763
          %v779 = vcombine.low %v764, %v765
          %vm780 = vcmask 64512
          %v781 = vsel %vm780, %v776, 0
          %v783 = vsel %vm780, %v777, 0
          %v785 = vsel %vm780, %v778, 0
          %v787 = vsel %vm780, %v779, 0
          %789 = vmatprep.subr.mxu0 0.0
          %790 = vmatpush1.msra.mxu0 0.0
          %791 = vmatprep.subr.mxu0 0.0
          %792 = vmatpush1.msra.mxu0 0.0
          %793 = vmatprep.subr.mxu0 0.0
          %794 = vmatpush1.msra.mxu0 0.0
          %795 = vmatprep.subr.mxu0 0.0
          %796 = vmatpush1.msra.mxu0 0.0
          %797 = vmatprep.subr.mxu0 0.0
          %798 = vmatpush1.msra.mxu0 0.0
          %799 = vmatprep.subr.mxu0 0.0
          %800 = vmatpush1.msra.mxu0 0.0
          %801 = vmatprep.subr.mxu0 0.0
          %802 = vmatpush1.msra.mxu0 0.0
          %803 = vmatprep.subr.mxu0 0.0
          %804 = vmatpush1.msra.mxu0 0.0
          %805 = vmatprep.subr.mxu0 0.0
          %806 = vmatpush1.msra.mxu0 0.0
          %807 = vmatprep.subr.mxu0 0.0
          %808 = vmatpush1.msra.mxu0 0.0
          %809 = vmatprep.subr.mxu0 0.0
          %810 = vmatpush1.msra.mxu0 0.0
          %811 = vmatprep.subr.mxu0 0.0
          %812 = vmatpush1.msra.mxu0 0.0
          %813 = vmatprep.subr.mxu0 0.0
          %814 = vmatpush1.msra.mxu0 0.0
          %815 = vmatprep.subr.mxu0 0.0
          %816 = vmatpush1.msra.mxu0 0.0
          %817 = vmatprep.subr.mxu0 0.0
          %818 = vmatpush1.msra.mxu0 0.0
          %819 = vmatprep.subr.mxu0 0.0
          %820 = vmatpush1.msra.mxu0 %v757
          %821 = vmatprep.subr.mxu0 0.0
          %822 = vmatpush2.msra.mxu0 0.0
          %823 = vmatprep.subr.mxu0 0.0
          %824 = vmatpush2.msra.mxu0 0.0
          %825 = vmatprep.subr.mxu0 0.0
          %826 = vmatpush2.msra.mxu0 0.0
          %827 = vmatprep.subr.mxu0 0.0
          %828 = vmatpush2.msra.mxu0 0.0
          %829 = vmatprep.subr.mxu0 0.0
          %830 = vmatpush2.msra.mxu0 0.0
          %831 = vmatprep.subr.mxu0 0.0
          %832 = vmatpush2.msra.mxu0 0.0
          %833 = vmatprep.subr.mxu0 0.0
          %834 = vmatpush2.msra.mxu0 0.0
          %835 = vmatprep.subr.mxu0 0.0
          %836 = vmatpush2.msra.mxu0 0.0
          %837 = vmatprep.subr.mxu0 0.0
          %838 = vmatpush2.msra.mxu0 0.0
          %839 = vmatprep.subr.mxu0 0.0
          %840 = vmatpush2.msra.mxu0 0.0
          %841 = vmatprep.subr.mxu0 0.0
          %842 = vmatpush2.msra.mxu0 0.0
          %843 = vmatprep.subr.mxu0 0.0
          %844 = vmatpush2.msra.mxu0 0.0
          %845 = vmatprep.subr.mxu0 0.0
          %846 = vmatpush2.msra.mxu0 0.0
          %847 = vmatprep.subr.mxu0 0.0
          %848 = vmatpush2.msra.mxu0 0.0
          %849 = vmatprep.subr.mxu0 0.0
          %850 = vmatpush2.msra.mxu0 0.0
          %851 = vmatprep.subr.mxu0 0.0
          %852 = vmatpush2.msra.mxu0 0.0
          %853 = vmatprep.mubr.f32.mxu0 0.0
          %854 = vmatmul.mubr.f32.gmra.mxu0 %v781
          %v855 = vpop.f32.mrf.mxu0
          %v856 = vadd.f32 0.0, %v855
          %v857 = vpop.f32.mrf.mxu0
          %858 = vmatprep.mubr.f32.mxu0 0.0
          %859 = vmatmul.mubr.f32.gmra.mxu0 %v783
          %v860 = vpop.f32.mrf.mxu0
          %v861 = vadd.f32 0.0, %v860
          %v862 = vpop.f32.mrf.mxu0
          %863 = vmatprep.mubr.f32.mxu0 0.0
          %864 = vmatmul.mubr.f32.gmra.mxu0 %v785
          %v865 = vpop.f32.mrf.mxu0
          %v866 = vadd.f32 0.0, %v865
          %v867 = vpop.f32.mrf.mxu0
          %868 = vmatprep.mubr.f32.mxu0 0.0
          %869 = vmatmul.mubr.f32.gmra.mxu0 %v787
          %v870 = vpop.f32.mrf.mxu0
          %v871 = vadd.f32 0.0, %v870
          %v872 = vpop.f32.mrf.mxu0
          %873 = vdwg.mxu0
          %v878 = vcombine.high %v856, %v856
          %v879 = vcombine.high %v861, %v861
          %v880 = vcombine.high %v866, %v866
          %v881 = vcombine.high %v871, %v871
          %v887 = vcombine.high %v766, %v766
          %v889 = vunpack.c.l.s4 1966171168
          %v890 = vunpack.c.0.s8 %v889
          %v891 = vlaneseq
          %v892 = vshrl.u32 %v891, 7
          %v893 = vsub.s32 %v890, %v892
          %v894 = vrot.slane %v766, %v893
          %v896 = vunpack.c.l.s4 1966171168
          %v897 = vunpack.c.0.s8 %v896
          %v898 = vlaneseq
          %v899 = vshrl.u32 %v898, 7
          %v900 = vsub.s32 %v897, %v899
          %v901 = vrot.slane %v887, %v900
          %v902 = vcombine.high %v894, %v894
          %v903 = vcombine.high %v901, %v901
          %v905 = vunpack.c.l.s4 1966171168
          %v906 = vunpack.c.0.s8 %v905
          %v907 = vlaneseq
          %v908 = vshrl.u32 %v907, 7
          %v909 = vsub.s32 %v906, %v908
          %v910 = vrot.slane %v894, %v909
          %v912 = vunpack.c.l.s4 1966171168
          %v913 = vunpack.c.0.s8 %v912
          %v914 = vlaneseq
          %v915 = vshrl.u32 %v914, 7
          %v916 = vsub.s32 %v913, %v915
          %v917 = vrot.slane %v901, %v916
          %v919 = vunpack.c.l.s4 1966171168
          %v920 = vunpack.c.0.s8 %v919
          %v921 = vlaneseq
          %v922 = vshrl.u32 %v921, 7
          %v923 = vsub.s32 %v920, %v922
          %v924 = vrot.slane %v902, %v923
          %v926 = vunpack.c.l.s4 1966171168
          %v927 = vunpack.c.0.s8 %v926
          %v928 = vlaneseq
          %v929 = vshrl.u32 %v928, 7
          %v930 = vsub.s32 %v927, %v929
          %v931 = vrot.slane %v903, %v930
          %v932 = vcombine.high %v910, %v910
          %v933 = vcombine.high %v917, %v917
          %v934 = vcombine.high %v924, %v924
          %v935 = vcombine.high %v931, %v931
          %v936 = vlaneseq
          %v937 = vshrl.u32 %v936, 7
          %v938 = vsub.s32 0, %v937
          %v939 = vrot.slane %v910, %v938
          %v940 = vlaneseq
          %v941 = vshrl.u32 %v940, 7
          %v942 = vsub.s32 0, %v941
          %v943 = vrot.slane %v924, %v942
          %v944 = vlaneseq
          %v945 = vshrl.u32 %v944, 7
          %v946 = vsub.s32 0, %v945
          %v947 = vrot.slane %v932, %v946
          %v948 = vlaneseq
          %v949 = vshrl.u32 %v948, 7
          %v950 = vsub.s32 0, %v949
          %v951 = vrot.slane %v934, %v950
          %v952 = vlaneseq
          %v953 = vshrl.u32 %v952, 7
          %v954 = vsub.s32 0, %v953
          %v955 = vrot.slane %v917, %v954
          %v956 = vlaneseq
          %v957 = vshrl.u32 %v956, 7
          %v958 = vsub.s32 0, %v957
          %v959 = vrot.slane %v931, %v958
          %v960 = vlaneseq
          %v961 = vshrl.u32 %v960, 7
          %v962 = vsub.s32 0, %v961
          %v963 = vrot.slane %v933, %v962
          %v964 = vlaneseq
          %v965 = vshrl.u32 %v964, 7
          %v966 = vsub.s32 0, %v965
          %v967 = vrot.slane %v935, %v966
          %v976 = vmul.f32 %v758, %v939
          %v977 = vmul.f32 %v759, %v943
          %v978 = vmul.f32 %v760, %v947
          %v979 = vmul.f32 %v761, %v951
          %v980 = vmul.f32 %v762, %v955
          %v981 = vmul.f32 %v763, %v959
          %v982 = vmul.f32 %v764, %v963
          %v983 = vmul.f32 %v765, %v967
          %v985 = vcombine.high %v767, %v767
          %v987 = vunpack.c.l.s4 1966171168
          %v988 = vunpack.c.0.s8 %v987
          %v989 = vlaneseq
          %v990 = vshrl.u32 %v989, 7
          %v991 = vsub.s32 %v988, %v990
          %v992 = vrot.slane %v767, %v991
          %v994 = vunpack.c.l.s4 1966171168
          %v995 = vunpack.c.0.s8 %v994
          %v996 = vlaneseq
          %v997 = vshrl.u32 %v996, 7
          %v998 = vsub.s32 %v995, %v997
          %v999 = vrot.slane %v985, %v998
          %v1000 = vcombine.high %v992, %v992
          %v1001 = vcombine.high %v999, %v999
          %v1003 = vunpack.c.l.s4 1966171168
          %v1004 = vunpack.c.0.s8 %v1003
          %v1005 = vlaneseq
          %v1006 = vshrl.u32 %v1005, 7
          %v1007 = vsub.s32 %v1004, %v1006
          %v1008 = vrot.slane %v992, %v1007
          %v1010 = vunpack.c.l.s4 1966171168
          %v1011 = vunpack.c.0.s8 %v1010
          %v1012 = vlaneseq
          %v1013 = vshrl.u32 %v1012, 7
          %v1014 = vsub.s32 %v1011, %v1013
          %v1015 = vrot.slane %v999, %v1014
          %v1017 = vunpack.c.l.s4 1966171168
          %v1018 = vunpack.c.0.s8 %v1017
          %v1019 = vlaneseq
          %v1020 = vshrl.u32 %v1019, 7
          %v1021 = vsub.s32 %v1018, %v1020
          %v1022 = vrot.slane %v1000, %v1021
          %v1024 = vunpack.c.l.s4 1966171168
          %v1025 = vunpack.c.0.s8 %v1024
          %v1026 = vlaneseq
          %v1027 = vshrl.u32 %v1026, 7
          %v1028 = vsub.s32 %v1025, %v1027
          %v1029 = vrot.slane %v1001, %v1028
          %v1030 = vcombine.high %v1008, %v1008
          %v1031 = vcombine.high %v1015, %v1015
          %v1032 = vcombine.high %v1022, %v1022
          %v1033 = vcombine.high %v1029, %v1029
          %v1034 = vlaneseq
          %v1035 = vshrl.u32 %v1034, 7
          %v1036 = vsub.s32 0, %v1035
          %v1037 = vrot.slane %v1008, %v1036
          %v1038 = vlaneseq
          %v1039 = vshrl.u32 %v1038, 7
          %v1040 = vsub.s32 0, %v1039
          %v1041 = vrot.slane %v1022, %v1040
          %v1042 = vlaneseq
          %v1043 = vshrl.u32 %v1042, 7
          %v1044 = vsub.s32 0, %v1043
          %v1045 = vrot.slane %v1030, %v1044
          %v1046 = vlaneseq
          %v1047 = vshrl.u32 %v1046, 7
          %v1048 = vsub.s32 0, %v1047
          %v1049 = vrot.slane %v1032, %v1048
          %v1050 = vlaneseq
          %v1051 = vshrl.u32 %v1050, 7
          %v1052 = vsub.s32 0, %v1051
          %v1053 = vrot.slane %v1015, %v1052
          %v1054 = vlaneseq
          %v1055 = vshrl.u32 %v1054, 7
          %v1056 = vsub.s32 0, %v1055
          %v1057 = vrot.slane %v1029, %v1056
          %v1058 = vlaneseq
          %v1059 = vshrl.u32 %v1058, 7
          %v1060 = vsub.s32 0, %v1059
          %v1061 = vrot.slane %v1031, %v1060
          %v1062 = vlaneseq
          %v1063 = vshrl.u32 %v1062, 7
          %v1064 = vsub.s32 0, %v1063
          %v1065 = vrot.slane %v1033, %v1064
          %v1074 = vmul.f32 %v856, %v1037
          %v1075 = vmul.f32 %v878, %v1041
          %v1076 = vmul.f32 %v861, %v1045
          %v1077 = vmul.f32 %v879, %v1049
          %v1078 = vmul.f32 %v866, %v1053
          %v1079 = vmul.f32 %v880, %v1057
          %v1080 = vmul.f32 %v871, %v1061
          %v1081 = vmul.f32 %v881, %v1065
          %v1082 = vadd.f32 %v976, %v1074
          %v1083 = vadd.f32 %v977, %v1075
          %v1084 = vadd.f32 %v978, %v1076
          %v1085 = vadd.f32 %v979, %v1077
          %v1086 = vadd.f32 %v980, %v1078
          %v1087 = vadd.f32 %v981, %v1079
          %v1088 = vadd.f32 %v982, %v1080
          %v1089 = vadd.f32 %v983, %v1081
          %v1090 = vld [vmem:[%s623] sm:$0xf]
          %v1091 = vld [vmem:[%s623 + $0x4] sm:$0xf]
          %v1092 = vld [vmem:[%s623 + $0x8] sm:$0xf]
          %v1093 = vld [vmem:[%s623 + $0xc] sm:$0xf]
          %v1094 = vld [vmem:[%s623 + $0x10] sm:$0xf]
          %v1095 = vld [vmem:[%s623 + $0x14] sm:$0xf]
          %v1096 = vld [vmem:[%s623 + $0x18] sm:$0xf]
          %v1097 = vld [vmem:[%s623 + $0x1c] sm:$0xf]
          %v1098 = vld [vmem:[%s708] sm:$0xff]
          %v1099 = vld [vmem:[%s712] sm:$0xff]
          %v1108 = vcombine.low %v1090, %v1091
          %v1109 = vcombine.low %v1092, %v1093
          %v1110 = vcombine.low %v1094, %v1095
          %v1111 = vcombine.low %v1096, %v1097
          %v1112 = vsel %vm780, %v1108, 0
          %v1114 = vsel %vm780, %v1109, 0
          %v1116 = vsel %vm780, %v1110, 0
          %v1118 = vsel %vm780, %v1111, 0
          %1120 = vmatprep.subr.mxu0 0.0
          %1121 = vmatpush1.msra.mxu0 0.0
          %1122 = vmatprep.subr.mxu0 0.0
          %1123 = vmatpush1.msra.mxu0 0.0
          %1124 = vmatprep.subr.mxu0 0.0
          %1125 = vmatpush1.msra.mxu0 0.0
          %1126 = vmatprep.subr.mxu0 0.0
          %1127 = vmatpush1.msra.mxu0 0.0
          %1128 = vmatprep.subr.mxu0 0.0
          %1129 = vmatpush1.msra.mxu0 0.0
          %1130 = vmatprep.subr.mxu0 0.0
          %1131 = vmatpush1.msra.mxu0 0.0
          %1132 = vmatprep.subr.mxu0 0.0
          %1133 = vmatpush1.msra.mxu0 0.0
          %1134 = vmatprep.subr.mxu0 0.0
          %1135 = vmatpush1.msra.mxu0 0.0
          %1136 = vmatprep.subr.mxu0 0.0
          %1137 = vmatpush1.msra.mxu0 0.0
          %1138 = vmatprep.subr.mxu0 0.0
          %1139 = vmatpush1.msra.mxu0 0.0
          %1140 = vmatprep.subr.mxu0 0.0
          %1141 = vmatpush1.msra.mxu0 0.0
          %1142 = vmatprep.subr.mxu0 0.0
          %1143 = vmatpush1.msra.mxu0 0.0
          %1144 = vmatprep.subr.mxu0 0.0
          %1145 = vmatpush1.msra.mxu0 0.0
          %1146 = vmatprep.subr.mxu0 0.0
          %1147 = vmatpush1.msra.mxu0 0.0
          %1148 = vmatprep.subr.mxu0 0.0
          %1149 = vmatpush1.msra.mxu0 0.0
          %1150 = vmatprep.subr.mxu0 0.0
          %1151 = vmatpush1.msra.mxu0 %v757
          %1152 = vmatprep.subr.mxu0 0.0
          %1153 = vmatpush2.msra.mxu0 0.0
          %1154 = vmatprep.subr.mxu0 0.0
          %1155 = vmatpush2.msra.mxu0 0.0
          %1156 = vmatprep.subr.mxu0 0.0
          %1157 = vmatpush2.msra.mxu0 0.0
          %1158 = vmatprep.subr.mxu0 0.0
          %1159 = vmatpush2.msra.mxu0 0.0
          %1160 = vmatprep.subr.mxu0 0.0
          %1161 = vmatpush2.msra.mxu0 0.0
          %1162 = vmatprep.subr.mxu0 0.0
          %1163 = vmatpush2.msra.mxu0 0.0
          %1164 = vmatprep.subr.mxu0 0.0
          %1165 = vmatpush2.msra.mxu0 0.0
          %1166 = vmatprep.subr.mxu0 0.0
          %1167 = vmatpush2.msra.mxu0 0.0
          %1168 = vmatprep.subr.mxu0 0.0
          %1169 = vmatpush2.msra.mxu0 0.0
          %1170 = vmatprep.subr.mxu0 0.0
          %1171 = vmatpush2.msra.mxu0 0.0
          %1172 = vmatprep.subr.mxu0 0.0
          %1173 = vmatpush2.msra.mxu0 0.0
          %1174 = vmatprep.subr.mxu0 0.0
          %1175 = vmatpush2.msra.mxu0 0.0
          %1176 = vmatprep.subr.mxu0 0.0
          %1177 = vmatpush2.msra.mxu0 0.0
          %1178 = vmatprep.subr.mxu0 0.0
          %1179 = vmatpush2.msra.mxu0 0.0
          %1180 = vmatprep.subr.mxu0 0.0
          %1181 = vmatpush2.msra.mxu0 0.0
          %1182 = vmatprep.subr.mxu0 0.0
          %1183 = vmatpush2.msra.mxu0 0.0
          %1184 = vmatprep.mubr.f32.mxu0 0.0
          %1185 = vmatmul.mubr.f32.gmra.mxu0 %v1112
          %v1186 = vpop.f32.mrf.mxu0
          %v1187 = vadd.f32 0.0, %v1186
          %v1188 = vpop.f32.mrf.mxu0
          %1189 = vmatprep.mubr.f32.mxu0 0.0
          %1190 = vmatmul.mubr.f32.gmra.mxu0 %v1114
          %v1191 = vpop.f32.mrf.mxu0
          %v1192 = vadd.f32 0.0, %v1191
          %v1193 = vpop.f32.mrf.mxu0
          %1194 = vmatprep.mubr.f32.mxu0 0.0
          %1195 = vmatmul.mubr.f32.gmra.mxu0 %v1116
          %v1196 = vpop.f32.mrf.mxu0
          %v1197 = vadd.f32 0.0, %v1196
          %v1198 = vpop.f32.mrf.mxu0
          %1199 = vmatprep.mubr.f32.mxu0 0.0
          %1200 = vmatmul.mubr.f32.gmra.mxu0 %v1118
          %v1201 = vpop.f32.mrf.mxu0
          %v1202 = vadd.f32 0.0, %v1201
          %v1203 = vpop.f32.mrf.mxu0
          %1204 = vdwg.mxu0
          %v1209 = vcombine.high %v1187, %v1187
          %v1210 = vcombine.high %v1192, %v1192
          %v1211 = vcombine.high %v1197, %v1197
          %v1212 = vcombine.high %v1202, %v1202
          %v1218 = vcombine.high %v1098, %v1098
          %v1220 = vunpack.c.l.s4 1966171168
          %v1221 = vunpack.c.0.s8 %v1220
          %v1222 = vlaneseq
          %v1223 = vshrl.u32 %v1222, 7
          %v1224 = vsub.s32 %v1221, %v1223
          %v1225 = vrot.slane %v1098, %v1224
          %v1227 = vunpack.c.l.s4 1966171168
          %v1228 = vunpack.c.0.s8 %v1227
          %v1229 = vlaneseq
          %v1230 = vshrl.u32 %v1229, 7
          %v1231 = vsub.s32 %v1228, %v1230
          %v1232 = vrot.slane %v1218, %v1231
          %v1233 = vcombine.high %v1225, %v1225
          %v1234 = vcombine.high %v1232, %v1232
          %v1236 = vunpack.c.l.s4 1966171168
          %v1237 = vunpack.c.0.s8 %v1236
          %v1238 = vlaneseq
          %v1239 = vshrl.u32 %v1238, 7
          %v1240 = vsub.s32 %v1237, %v1239
          %v1241 = vrot.slane %v1225, %v1240
          %v1243 = vunpack.c.l.s4 1966171168
          %v1244 = vunpack.c.0.s8 %v1243
          %v1245 = vlaneseq
          %v1246 = vshrl.u32 %v1245, 7
          %v1247 = vsub.s32 %v1244, %v1246
          %v1248 = vrot.slane %v1232, %v1247
          %v1250 = vunpack.c.l.s4 1966171168
          %v1251 = vunpack.c.0.s8 %v1250
          %v1252 = vlaneseq
          %v1253 = vshrl.u32 %v1252, 7
          %v1254 = vsub.s32 %v1251, %v1253
          %v1255 = vrot.slane %v1233, %v1254
          %v1257 = vunpack.c.l.s4 1966171168
          %v1258 = vunpack.c.0.s8 %v1257
          %v1259 = vlaneseq
          %v1260 = vshrl.u32 %v1259, 7
          %v1261 = vsub.s32 %v1258, %v1260
          %v1262 = vrot.slane %v1234, %v1261
          %v1263 = vcombine.high %v1241, %v1241
          %v1264 = vcombine.high %v1248, %v1248
          %v1265 = vcombine.high %v1255, %v1255
          %v1266 = vcombine.high %v1262, %v1262
          %v1267 = vlaneseq
          %v1268 = vshrl.u32 %v1267, 7
          %v1269 = vsub.s32 0, %v1268
          %v1270 = vrot.slane %v1241, %v1269
          %v1271 = vlaneseq
          %v1272 = vshrl.u32 %v1271, 7
          %v1273 = vsub.s32 0, %v1272
          %v1274 = vrot.slane %v1255, %v1273
          %v1275 = vlaneseq
          %v1276 = vshrl.u32 %v1275, 7
          %v1277 = vsub.s32 0, %v1276
          %v1278 = vrot.slane %v1263, %v1277
          %v1279 = vlaneseq
          %v1280 = vshrl.u32 %v1279, 7
          %v1281 = vsub.s32 0, %v1280
          %v1282 = vrot.slane %v1265, %v1281
          %v1283 = vlaneseq
          %v1284 = vshrl.u32 %v1283, 7
          %v1285 = vsub.s32 0, %v1284
          %v1286 = vrot.slane %v1248, %v1285
          %v1287 = vlaneseq
          %v1288 = vshrl.u32 %v1287, 7
          %v1289 = vsub.s32 0, %v1288
          %v1290 = vrot.slane %v1262, %v1289
          %v1291 = vlaneseq
          %v1292 = vshrl.u32 %v1291, 7
          %v1293 = vsub.s32 0, %v1292
          %v1294 = vrot.slane %v1264, %v1293
          %v1295 = vlaneseq
          %v1296 = vshrl.u32 %v1295, 7
          %v1297 = vsub.s32 0, %v1296
          %v1298 = vrot.slane %v1266, %v1297
          %v1307 = vmul.f32 %v1090, %v1270
          %v1308 = vmul.f32 %v1091, %v1274
          %v1309 = vmul.f32 %v1092, %v1278
          %v1310 = vmul.f32 %v1093, %v1282
          %v1311 = vmul.f32 %v1094, %v1286
          %v1312 = vmul.f32 %v1095, %v1290
          %v1313 = vmul.f32 %v1096, %v1294
          %v1314 = vmul.f32 %v1097, %v1298
          %v1316 = vcombine.high %v1099, %v1099
          %v1318 = vunpack.c.l.s4 1966171168
          %v1319 = vunpack.c.0.s8 %v1318
          %v1320 = vlaneseq
          %v1321 = vshrl.u32 %v1320, 7
          %v1322 = vsub.s32 %v1319, %v1321
          %v1323 = vrot.slane %v1099, %v1322
          %v1325 = vunpack.c.l.s4 1966171168
          %v1326 = vunpack.c.0.s8 %v1325
          %v1327 = vlaneseq
          %v1328 = vshrl.u32 %v1327, 7
          %v1329 = vsub.s32 %v1326, %v1328
          %v1330 = vrot.slane %v1316, %v1329
          %v1331 = vcombine.high %v1323, %v1323
          %v1332 = vcombine.high %v1330, %v1330
          %v1334 = vunpack.c.l.s4 1966171168
          %v1335 = vunpack.c.0.s8 %v1334
          %v1336 = vlaneseq
          %v1337 = vshrl.u32 %v1336, 7
          %v1338 = vsub.s32 %v1335, %v1337
          %v1339 = vrot.slane %v1323, %v1338
          %v1341 = vunpack.c.l.s4 1966171168
          %v1342 = vunpack.c.0.s8 %v1341
          %v1343 = vlaneseq
          %v1344 = vshrl.u32 %v1343, 7
          %v1345 = vsub.s32 %v1342, %v1344
          %v1346 = vrot.slane %v1330, %v1345
          %v1348 = vunpack.c.l.s4 1966171168
          %v1349 = vunpack.c.0.s8 %v1348
          %v1350 = vlaneseq
          %v1351 = vshrl.u32 %v1350, 7
          %v1352 = vsub.s32 %v1349, %v1351
          %v1353 = vrot.slane %v1331, %v1352
          %v1355 = vunpack.c.l.s4 1966171168
          %v1356 = vunpack.c.0.s8 %v1355
          %v1357 = vlaneseq
          %v1358 = vshrl.u32 %v1357, 7
          %v1359 = vsub.s32 %v1356, %v1358
          %v1360 = vrot.slane %v1332, %v1359
          %v1361 = vcombine.high %v1339, %v1339
          %v1362 = vcombine.high %v1346, %v1346
          %v1363 = vcombine.high %v1353, %v1353
          %v1364 = vcombine.high %v1360, %v1360
          %v1365 = vlaneseq
          %v1366 = vshrl.u32 %v1365, 7
          %v1367 = vsub.s32 0, %v1366
          %v1368 = vrot.slane %v1339, %v1367
          %v1369 = vlaneseq
          %v1370 = vshrl.u32 %v1369, 7
          %v1371 = vsub.s32 0, %v1370
          %v1372 = vrot.slane %v1353, %v1371
          %v1373 = vlaneseq
          %v1374 = vshrl.u32 %v1373, 7
          %v1375 = vsub.s32 0, %v1374
          %v1376 = vrot.slane %v1361, %v1375
          %v1377 = vlaneseq
          %v1378 = vshrl.u32 %v1377, 7
          %v1379 = vsub.s32 0, %v1378
          %v1380 = vrot.slane %v1363, %v1379
          %v1381 = vlaneseq
          %v1382 = vshrl.u32 %v1381, 7
          %v1383 = vsub.s32 0, %v1382
          %v1384 = vrot.slane %v1346, %v1383
          %v1385 = vlaneseq
          %v1386 = vshrl.u32 %v1385, 7
          %v1387 = vsub.s32 0, %v1386
          %v1388 = vrot.slane %v1360, %v1387
          %v1389 = vlaneseq
          %v1390 = vshrl.u32 %v1389, 7
          %v1391 = vsub.s32 0, %v1390
          %v1392 = vrot.slane %v1362, %v1391
          %v1393 = vlaneseq
          %v1394 = vshrl.u32 %v1393, 7
          %v1395 = vsub.s32 0, %v1394
          %v1396 = vrot.slane %v1364, %v1395
          %v1405 = vmul.f32 %v1187, %v1368
          %v1406 = vmul.f32 %v1209, %v1372
          %v1407 = vmul.f32 %v1192, %v1376
          %v1408 = vmul.f32 %v1210, %v1380
          %v1409 = vmul.f32 %v1197, %v1384
          %v1410 = vmul.f32 %v1211, %v1388
          %v1411 = vmul.f32 %v1202, %v1392
          %v1412 = vmul.f32 %v1212, %v1396
          %v1413 = vadd.f32 %v1307, %v1405
          %v1414 = vadd.f32 %v1308, %v1406
          %v1415 = vadd.f32 %v1309, %v1407
          %v1416 = vadd.f32 %v1310, %v1408
          %v1417 = vadd.f32 %v1311, %v1409
          %v1418 = vadd.f32 %v1312, %v1410
          %v1419 = vadd.f32 %v1313, %v1411
          %v1420 = vadd.f32 %v1314, %v1412
          %v1421 = vld [vmem:[%s630] sm:$0xf]
          %v1422 = vld [vmem:[%s630 + $0x4] sm:$0xf]
          %v1423 = vld [vmem:[%s630 + $0x8] sm:$0xf]
          %v1424 = vld [vmem:[%s630 + $0xc] sm:$0xf]
          %v1425 = vld [vmem:[%s630 + $0x10] sm:$0xf]
          %v1426 = vld [vmem:[%s630 + $0x14] sm:$0xf]
          %v1427 = vld [vmem:[%s630 + $0x18] sm:$0xf]
          %v1428 = vld [vmem:[%s630 + $0x1c] sm:$0xf]
          %v1429 = vcombine.low %v1082, %v1084
          %v1431 = vunpack.c.l.s4 1983009808
          %v1432 = vunpack.c.0.s8 %v1431
          %v1433 = vlaneseq
          %v1434 = vshrl.u32 %v1433, 7
          %v1435 = vsub.s32 %v1432, %v1434
          %v1436 = vrot.slane %v1429, %v1435
          %v1437 = vcombine.low %v1083, %v1085
          %v1439 = vunpack.c.l.s4 1983009808
          %v1440 = vunpack.c.0.s8 %v1439
          %v1441 = vlaneseq
          %v1442 = vshrl.u32 %v1441, 7
          %v1443 = vsub.s32 %v1440, %v1442
          %v1444 = vrot.slane %v1437, %v1443
          %v1445 = vcombine.low %v1086, %v1088
          %v1447 = vunpack.c.l.s4 1983009808
          %v1448 = vunpack.c.0.s8 %v1447
          %v1449 = vlaneseq
          %v1450 = vshrl.u32 %v1449, 7
          %v1451 = vsub.s32 %v1448, %v1450
          %v1452 = vrot.slane %v1445, %v1451
          %v1453 = vcombine.low %v1087, %v1089
          %v1455 = vunpack.c.l.s4 1983009808
          %v1456 = vunpack.c.0.s8 %v1455
          %v1457 = vlaneseq
          %v1458 = vshrl.u32 %v1457, 7
          %v1459 = vsub.s32 %v1456, %v1458
          %v1460 = vrot.slane %v1453, %v1459
          %v1461 = vcombine.low %v1436, %v1444
          %v1462 = vcombine.high %v1436, %v1444
          %v1464 = vunpack.c.l.s4 1934713408
          %v1465 = vunpack.c.0.s8 %v1464
          %v1466 = vlaneseq
          %v1467 = vshrl.u32 %v1466, 7
          %v1468 = vsub.s32 %v1465, %v1467
          %v1469 = vrot.slane %v1461, %v1468
          %v1471 = vunpack.c.l.s4 1934713408
          %v1472 = vunpack.c.0.s8 %v1471
          %v1473 = vlaneseq
          %v1474 = vshrl.u32 %v1473, 7
          %v1475 = vsub.s32 %v1472, %v1474
          %v1476 = vrot.slane %v1462, %v1475
          %v1477 = vcombine.low %v1452, %v1460
          %v1478 = vcombine.high %v1452, %v1460
          %v1480 = vunpack.c.l.s4 1934713408
          %v1481 = vunpack.c.0.s8 %v1480
          %v1482 = vlaneseq
          %v1483 = vshrl.u32 %v1482, 7
          %v1484 = vsub.s32 %v1481, %v1483
          %v1485 = vrot.slane %v1477, %v1484
          %v1487 = vunpack.c.l.s4 1934713408
          %v1488 = vunpack.c.0.s8 %v1487
          %v1489 = vlaneseq
          %v1490 = vshrl.u32 %v1489, 7
          %v1491 = vsub.s32 %v1488, %v1490
          %v1492 = vrot.slane %v1478, %v1491
          %v1493 = vcombine.low %v1469, %v1485
          %v1494 = vcombine.high %v1469, %v1485
          %v1495 = vcombine.low %v1476, %v1492
          %v1496 = vcombine.high %v1476, %v1492
          %1497 = vxpose.xlu0.b32.start [1/16] %v1413, 128
          %1498 = vxpose.xlu0.b32.cont [2/16] 0.0, 128
          %1499 = vxpose.xlu0.b32.cont [3/16] 0.0, 128
          %1500 = vxpose.xlu0.b32.cont [4/16] 0.0, 128
          %1501 = vxpose.xlu0.b32.cont [5/16] 0.0, 128
          %1502 = vxpose.xlu0.b32.cont [6/16] 0.0, 128
          %1503 = vxpose.xlu0.b32.cont [7/16] 0.0, 128
          %1504 = vxpose.xlu0.b32.cont [8/16] 0.0, 128
          %1505 = vxpose.xlu0.b32.cont [9/16] 0.0, 128
          %1506 = vxpose.xlu0.b32.cont [10/16] 0.0, 128
          %1507 = vxpose.xlu0.b32.cont [11/16] 0.0, 128
          %1508 = vxpose.xlu0.b32.cont [12/16] 0.0, 128
          %1509 = vxpose.xlu0.b32.cont [13/16] 0.0, 128
          %1510 = vxpose.xlu0.b32.cont [14/16] 0.0, 128
          %1511 = vxpose.xlu0.b32.cont [15/16] 0.0, 128
          %1512 = vxpose.xlu0.b32.end [16/16] 0.0, 128
          %v1513 = vpop.trf.xlu0
          %v1514 = vpop.trf.xlu0
          %v1515 = vpop.trf.xlu0
          %v1516 = vpop.trf.xlu0
          %v1517 = vpop.trf.xlu0
          %v1518 = vpop.trf.xlu0
          %v1519 = vpop.trf.xlu0
          %v1520 = vpop.trf.xlu0
          %v1521 = vpop.trf.xlu0
          %v1522 = vpop.trf.xlu0
          %v1523 = vpop.trf.xlu0
          %v1524 = vpop.trf.xlu0
          %v1525 = vpop.trf.xlu0
          %v1526 = vpop.trf.xlu0
          %v1527 = vpop.trf.xlu0
          %v1528 = vpop.trf.xlu0
          %1529 = vxpose.xlu0.b32.start [1/16] %v1414, 128
          %1530 = vxpose.xlu0.b32.cont [2/16] 0.0, 128
          %1531 = vxpose.xlu0.b32.cont [3/16] 0.0, 128
          %1532 = vxpose.xlu0.b32.cont [4/16] 0.0, 128
          %1533 = vxpose.xlu0.b32.cont [5/16] 0.0, 128
          %1534 = vxpose.xlu0.b32.cont [6/16] 0.0, 128
          %1535 = vxpose.xlu0.b32.cont [7/16] 0.0, 128
          %1536 = vxpose.xlu0.b32.cont [8/16] 0.0, 128
          %1537 = vxpose.xlu0.b32.cont [9/16] 0.0, 128
          %1538 = vxpose.xlu0.b32.cont [10/16] 0.0, 128
          %1539 = vxpose.xlu0.b32.cont [11/16] 0.0, 128
          %1540 = vxpose.xlu0.b32.cont [12/16] 0.0, 128
          %1541 = vxpose.xlu0.b32.cont [13/16] 0.0, 128
          %1542 = vxpose.xlu0.b32.cont [14/16] 0.0, 128
          %1543 = vxpose.xlu0.b32.cont [15/16] 0.0, 128
          %1544 = vxpose.xlu0.b32.end [16/16] 0.0, 128
          %v1545 = vpop.trf.xlu0
          %v1546 = vpop.trf.xlu0
          %v1547 = vpop.trf.xlu0
          %v1548 = vpop.trf.xlu0
          %v1549 = vpop.trf.xlu0
          %v1550 = vpop.trf.xlu0
          %v1551 = vpop.trf.xlu0
          %v1552 = vpop.trf.xlu0
          %v1553 = vpop.trf.xlu0
          %v1554 = vpop.trf.xlu0
          %v1555 = vpop.trf.xlu0
          %v1556 = vpop.trf.xlu0
          %v1557 = vpop.trf.xlu0
          %v1558 = vpop.trf.xlu0
          %v1559 = vpop.trf.xlu0
          %v1560 = vpop.trf.xlu0
          %1561 = vxpose.xlu0.b32.start [1/16] %v1415, 128
          %1562 = vxpose.xlu0.b32.cont [2/16] 0.0, 128
          %1563 = vxpose.xlu0.b32.cont [3/16] 0.0, 128
          %1564 = vxpose.xlu0.b32.cont [4/16] 0.0, 128
          %1565 = vxpose.xlu0.b32.cont [5/16] 0.0, 128
          %1566 = vxpose.xlu0.b32.cont [6/16] 0.0, 128
          %1567 = vxpose.xlu0.b32.cont [7/16] 0.0, 128
          %1568 = vxpose.xlu0.b32.cont [8/16] 0.0, 128
          %1569 = vxpose.xlu0.b32.cont [9/16] 0.0, 128
          %1570 = vxpose.xlu0.b32.cont [10/16] 0.0, 128
          %1571 = vxpose.xlu0.b32.cont [11/16] 0.0, 128
          %1572 = vxpose.xlu0.b32.cont [12/16] 0.0, 128
          %1573 = vxpose.xlu0.b32.cont [13/16] 0.0, 128
          %1574 = vxpose.xlu0.b32.cont [14/16] 0.0, 128
          %1575 = vxpose.xlu0.b32.cont [15/16] 0.0, 128
          %1576 = vxpose.xlu0.b32.end [16/16] 0.0, 128
          %v1577 = vpop.trf.xlu0
          %v1578 = vpop.trf.xlu0
          %v1579 = vpop.trf.xlu0
          %v1580 = vpop.trf.xlu0
          %v1581 = vpop.trf.xlu0
          %v1582 = vpop.trf.xlu0
          %v1583 = vpop.trf.xlu0
          %v1584 = vpop.trf.xlu0
          %v1585 = vpop.trf.xlu0
          %v1586 = vpop.trf.xlu0
          %v1587 = vpop.trf.xlu0
          %v1588 = vpop.trf.xlu0
          %v1589 = vpop.trf.xlu0
          %v1590 = vpop.trf.xlu0
          %v1591 = vpop.trf.xlu0
          %v1592 = vpop.trf.xlu0
          %1593 = vxpose.xlu0.b32.start [1/16] %v1416, 128
          %1594 = vxpose.xlu0.b32.cont [2/16] 0.0, 128
          %1595 = vxpose.xlu0.b32.cont [3/16] 0.0, 128
          %1596 = vxpose.xlu0.b32.cont [4/16] 0.0, 128
          %1597 = vxpose.xlu0.b32.cont [5/16] 0.0, 128
          %1598 = vxpose.xlu0.b32.cont [6/16] 0.0, 128
          %1599 = vxpose.xlu0.b32.cont [7/16] 0.0, 128
          %1600 = vxpose.xlu0.b32.cont [8/16] 0.0, 128
          %1601 = vxpose.xlu0.b32.cont [9/16] 0.0, 128
          %1602 = vxpose.xlu0.b32.cont [10/16] 0.0, 128
          %1603 = vxpose.xlu0.b32.cont [11/16] 0.0, 128
          %1604 = vxpose.xlu0.b32.cont [12/16] 0.0, 128
          %1605 = vxpose.xlu0.b32.cont [13/16] 0.0, 128
          %1606 = vxpose.xlu0.b32.cont [14/16] 0.0, 128
          %1607 = vxpose.xlu0.b32.cont [15/16] 0.0, 128
          %1608 = vxpose.xlu0.b32.end [16/16] 0.0, 128
          %v1609 = vpop.trf.xlu0
          %v1610 = vpop.trf.xlu0
          %v1611 = vpop.trf.xlu0
          %v1612 = vpop.trf.xlu0
          %v1613 = vpop.trf.xlu0
          %v1614 = vpop.trf.xlu0
          %v1615 = vpop.trf.xlu0
          %v1616 = vpop.trf.xlu0
          %v1617 = vpop.trf.xlu0
          %v1618 = vpop.trf.xlu0
          %v1619 = vpop.trf.xlu0
          %v1620 = vpop.trf.xlu0
          %v1621 = vpop.trf.xlu0
          %v1622 = vpop.trf.xlu0
          %v1623 = vpop.trf.xlu0
          %v1624 = vpop.trf.xlu0
          %1625 = vxpose.xlu0.b32.start [1/16] %v1417, 128
          %1626 = vxpose.xlu0.b32.cont [2/16] 0.0, 128
          %1627 = vxpose.xlu0.b32.cont [3/16] 0.0, 128
          %1628 = vxpose.xlu0.b32.cont [4/16] 0.0, 128
          %1629 = vxpose.xlu0.b32.cont [5/16] 0.0, 128
          %1630 = vxpose.xlu0.b32.cont [6/16] 0.0, 128
          %1631 = vxpose.xlu0.b32.cont [7/16] 0.0, 128
          %1632 = vxpose.xlu0.b32.cont [8/16] 0.0, 128
          %1633 = vxpose.xlu0.b32.cont [9/16] 0.0, 128
          %1634 = vxpose.xlu0.b32.cont [10/16] 0.0, 128
          %1635 = vxpose.xlu0.b32.cont [11/16] 0.0, 128
          %1636 = vxpose.xlu0.b32.cont [12/16] 0.0, 128
          %1637 = vxpose.xlu0.b32.cont [13/16] 0.0, 128
          %1638 = vxpose.xlu0.b32.cont [14/16] 0.0, 128
          %1639 = vxpose.xlu0.b32.cont [15/16] 0.0, 128
          %1640 = vxpose.xlu0.b32.end [16/16] 0.0, 128
          %v1641 = vpop.trf.xlu0
          %v1642 = vpop.trf.xlu0
          %v1643 = vpop.trf.xlu0
          %v1644 = vpop.trf.xlu0
          %v1645 = vpop.trf.xlu0
          %v1646 = vpop.trf.xlu0
          %v1647 = vpop.trf.xlu0
          %v1648 = vpop.trf.xlu0
          %v1649 = vpop.trf.xlu0
          %v1650 = vpop.trf.xlu0
          %v1651 = vpop.trf.xlu0
          %v1652 = vpop.trf.xlu0
          %v1653 = vpop.trf.xlu0
          %v1654 = vpop.trf.xlu0
          %v1655 = vpop.trf.xlu0
          %v1656 = vpop.trf.xlu0
          %1657 = vxpose.xlu0.b32.start [1/16] %v1418, 128
          %1658 = vxpose.xlu0.b32.cont [2/16] 0.0, 128
          %1659 = vxpose.xlu0.b32.cont [3/16] 0.0, 128
          %1660 = vxpose.xlu0.b32.cont [4/16] 0.0, 128
          %1661 = vxpose.xlu0.b32.cont [5/16] 0.0, 128
          %1662 = vxpose.xlu0.b32.cont [6/16] 0.0, 128
          %1663 = vxpose.xlu0.b32.cont [7/16] 0.0, 128
          %1664 = vxpose.xlu0.b32.cont [8/16] 0.0, 128
          %1665 = vxpose.xlu0.b32.cont [9/16] 0.0, 128
          %1666 = vxpose.xlu0.b32.cont [10/16] 0.0, 128
          %1667 = vxpose.xlu0.b32.cont [11/16] 0.0, 128
          %1668 = vxpose.xlu0.b32.cont [12/16] 0.0, 128
          %1669 = vxpose.xlu0.b32.cont [13/16] 0.0, 128
          %1670 = vxpose.xlu0.b32.cont [14/16] 0.0, 128
          %1671 = vxpose.xlu0.b32.cont [15/16] 0.0, 128
          %1672 = vxpose.xlu0.b32.end [16/16] 0.0, 128
          %v1673 = vpop.trf.xlu0
          %v1674 = vpop.trf.xlu0
          %v1675 = vpop.trf.xlu0
          %v1676 = vpop.trf.xlu0
          %v1677 = vpop.trf.xlu0
          %v1678 = vpop.trf.xlu0
          %v1679 = vpop.trf.xlu0
          %v1680 = vpop.trf.xlu0
          %v1681 = vpop.trf.xlu0
          %v1682 = vpop.trf.xlu0
          %v1683 = vpop.trf.xlu0
          %v1684 = vpop.trf.xlu0
          %v1685 = vpop.trf.xlu0
          %v1686 = vpop.trf.xlu0
          %v1687 = vpop.trf.xlu0
          %v1688 = vpop.trf.xlu0
          %1689 = vxpose.xlu0.b32.start [1/16] %v1419, 128
          %1690 = vxpose.xlu0.b32.cont [2/16] 0.0, 128
          %1691 = vxpose.xlu0.b32.cont [3/16] 0.0, 128
          %1692 = vxpose.xlu0.b32.cont [4/16] 0.0, 128
          %1693 = vxpose.xlu0.b32.cont [5/16] 0.0, 128
          %1694 = vxpose.xlu0.b32.cont [6/16] 0.0, 128
          %1695 = vxpose.xlu0.b32.cont [7/16] 0.0, 128
          %1696 = vxpose.xlu0.b32.cont [8/16] 0.0, 128
          %1697 = vxpose.xlu0.b32.cont [9/16] 0.0, 128
          %1698 = vxpose.xlu0.b32.cont [10/16] 0.0, 128
          %1699 = vxpose.xlu0.b32.cont [11/16] 0.0, 128
          %1700 = vxpose.xlu0.b32.cont [12/16] 0.0, 128
          %1701 = vxpose.xlu0.b32.cont [13/16] 0.0, 128
          %1702 = vxpose.xlu0.b32.cont [14/16] 0.0, 128
          %1703 = vxpose.xlu0.b32.cont [15/16] 0.0, 128
          %1704 = vxpose.xlu0.b32.end [16/16] 0.0, 128
          %v1705 = vpop.trf.xlu0
          %v1706 = vpop.trf.xlu0
          %v1707 = vpop.trf.xlu0
          %v1708 = vpop.trf.xlu0
          %v1709 = vpop.trf.xlu0
          %v1710 = vpop.trf.xlu0
          %v1711 = vpop.trf.xlu0
          %v1712 = vpop.trf.xlu0
          %v1713 = vpop.trf.xlu0
          %v1714 = vpop.trf.xlu0
          %v1715 = vpop.trf.xlu0
          %v1716 = vpop.trf.xlu0
          %v1717 = vpop.trf.xlu0
          %v1718 = vpop.trf.xlu0
          %v1719 = vpop.trf.xlu0
          %v1720 = vpop.trf.xlu0
          %1721 = vxpose.xlu0.b32.start [1/16] %v1420, 128
          %1722 = vxpose.xlu0.b32.cont [2/16] 0.0, 128
          %1723 = vxpose.xlu0.b32.cont [3/16] 0.0, 128
          %1724 = vxpose.xlu0.b32.cont [4/16] 0.0, 128
          %1725 = vxpose.xlu0.b32.cont [5/16] 0.0, 128
          %1726 = vxpose.xlu0.b32.cont [6/16] 0.0, 128
          %1727 = vxpose.xlu0.b32.cont [7/16] 0.0, 128
          %1728 = vxpose.xlu0.b32.cont [8/16] 0.0, 128
          %1729 = vxpose.xlu0.b32.cont [9/16] 0.0, 128
          %1730 = vxpose.xlu0.b32.cont [10/16] 0.0, 128
          %1731 = vxpose.xlu0.b32.cont [11/16] 0.0, 128
          %1732 = vxpose.xlu0.b32.cont [12/16] 0.0, 128
          %1733 = vxpose.xlu0.b32.cont [13/16] 0.0, 128
          %1734 = vxpose.xlu0.b32.cont [14/16] 0.0, 128
          %1735 = vxpose.xlu0.b32.cont [15/16] 0.0, 128
          %1736 = vxpose.xlu0.b32.end [16/16] 0.0, 128
          %v1737 = vpop.trf.xlu0
          %v1738 = vpop.trf.xlu0
          %v1739 = vpop.trf.xlu0
          %v1740 = vpop.trf.xlu0
          %v1741 = vpop.trf.xlu0
          %v1742 = vpop.trf.xlu0
          %v1743 = vpop.trf.xlu0
          %v1744 = vpop.trf.xlu0
          %v1745 = vpop.trf.xlu0
          %v1746 = vpop.trf.xlu0
          %v1747 = vpop.trf.xlu0
          %v1748 = vpop.trf.xlu0
          %v1749 = vpop.trf.xlu0
          %v1750 = vpop.trf.xlu0
          %v1751 = vpop.trf.xlu0
          %v1752 = vpop.trf.xlu0
          %v1753 = vcombine.low %v1513, %v1577
          %v1754 = vcombine.high %v1513, %v1577
          %v1756 = vunpack.c.l.s4 1983009808
          %v1757 = vunpack.c.0.s8 %v1756
          %v1758 = vlaneseq
          %v1759 = vshrl.u32 %v1758, 7
          %v1760 = vsub.s32 %v1757, %v1759
          %v1761 = vrot.slane %v1753, %v1760
          %v1763 = vunpack.c.l.s4 1983009808
          %v1764 = vunpack.c.0.s8 %v1763
          %v1765 = vlaneseq
          %v1766 = vshrl.u32 %v1765, 7
          %v1767 = vsub.s32 %v1764, %v1766
          %v1768 = vrot.slane %v1754, %v1767
          %v1769 = vcombine.low %v1545, %v1609
          %v1770 = vcombine.high %v1545, %v1609
          %v1772 = vunpack.c.l.s4 1983009808
          %v1773 = vunpack.c.0.s8 %v1772
          %v1774 = vlaneseq
          %v1775 = vshrl.u32 %v1774, 7
          %v1776 = vsub.s32 %v1773, %v1775
          %v1777 = vrot.slane %v1769, %v1776
          %v1779 = vunpack.c.l.s4 1983009808
          %v1780 = vunpack.c.0.s8 %v1779
          %v1781 = vlaneseq
          %v1782 = vshrl.u32 %v1781, 7
          %v1783 = vsub.s32 %v1780, %v1782
          %v1784 = vrot.slane %v1770, %v1783
          %v1785 = vcombine.low %v1641, %v1705
          %v1786 = vcombine.high %v1641, %v1705
          %v1788 = vunpack.c.l.s4 1983009808
          %v1789 = vunpack.c.0.s8 %v1788
          %v1790 = vlaneseq
          %v1791 = vshrl.u32 %v1790, 7
          %v1792 = vsub.s32 %v1789, %v1791
          %v1793 = vrot.slane %v1785, %v1792
          %v1795 = vunpack.c.l.s4 1983009808
          %v1796 = vunpack.c.0.s8 %v1795
          %v1797 = vlaneseq
          %v1798 = vshrl.u32 %v1797, 7
          %v1799 = vsub.s32 %v1796, %v1798
          %v1800 = vrot.slane %v1786, %v1799
          %v1801 = vcombine.low %v1673, %v1737
          %v1802 = vcombine.high %v1673, %v1737
          %v1804 = vunpack.c.l.s4 1983009808
          %v1805 = vunpack.c.0.s8 %v1804
          %v1806 = vlaneseq
          %v1807 = vshrl.u32 %v1806, 7
          %v1808 = vsub.s32 %v1805, %v1807
          %v1809 = vrot.slane %v1801, %v1808
          %v1811 = vunpack.c.l.s4 1983009808
          %v1812 = vunpack.c.0.s8 %v1811
          %v1813 = vlaneseq
          %v1814 = vshrl.u32 %v1813, 7
          %v1815 = vsub.s32 %v1812, %v1814
          %v1816 = vrot.slane %v1802, %v1815
          %v1817 = vcombine.low %v1761, %v1777
          %v1818 = vcombine.high %v1761, %v1777
          %v1820 = vunpack.c.l.s4 1934713408
          %v1821 = vunpack.c.0.s8 %v1820
          %v1822 = vlaneseq
          %v1823 = vshrl.u32 %v1822, 7
          %v1824 = vsub.s32 %v1821, %v1823
          %v1825 = vrot.slane %v1817, %v1824
          %v1827 = vunpack.c.l.s4 1934713408
          %v1828 = vunpack.c.0.s8 %v1827
          %v1829 = vlaneseq
          %v1830 = vshrl.u32 %v1829, 7
          %v1831 = vsub.s32 %v1828, %v1830
          %v1832 = vrot.slane %v1818, %v1831
          %v1833 = vcombine.low %v1768, %v1784
          %v1834 = vcombine.high %v1768, %v1784
          %v1836 = vunpack.c.l.s4 1934713408
          %v1837 = vunpack.c.0.s8 %v1836
          %v1838 = vlaneseq
          %v1839 = vshrl.u32 %v1838, 7
          %v1840 = vsub.s32 %v1837, %v1839
          %v1841 = vrot.slane %v1833, %v1840
          %v1843 = vunpack.c.l.s4 1934713408
          %v1844 = vunpack.c.0.s8 %v1843
          %v1845 = vlaneseq
          %v1846 = vshrl.u32 %v1845, 7
          %v1847 = vsub.s32 %v1844, %v1846
          %v1848 = vrot.slane %v1834, %v1847
          %v1849 = vcombine.low %v1793, %v1809
          %v1850 = vcombine.high %v1793, %v1809
          %v1852 = vunpack.c.l.s4 1934713408
          %v1853 = vunpack.c.0.s8 %v1852
          %v1854 = vlaneseq
          %v1855 = vshrl.u32 %v1854, 7
          %v1856 = vsub.s32 %v1853, %v1855
          %v1857 = vrot.slane %v1849, %v1856
          %v1859 = vunpack.c.l.s4 1934713408
          %v1860 = vunpack.c.0.s8 %v1859
          %v1861 = vlaneseq
          %v1862 = vshrl.u32 %v1861, 7
          %v1863 = vsub.s32 %v1860, %v1862
          %v1864 = vrot.slane %v1850, %v1863
          %v1865 = vcombine.low %v1800, %v1816
          %v1866 = vcombine.high %v1800, %v1816
          %v1868 = vunpack.c.l.s4 1934713408
          %v1869 = vunpack.c.0.s8 %v1868
          %v1870 = vlaneseq
          %v1871 = vshrl.u32 %v1870, 7
          %v1872 = vsub.s32 %v1869, %v1871
          %v1873 = vrot.slane %v1865, %v1872
          %v1875 = vunpack.c.l.s4 1934713408
          %v1876 = vunpack.c.0.s8 %v1875
          %v1877 = vlaneseq
          %v1878 = vshrl.u32 %v1877, 7
          %v1879 = vsub.s32 %v1876, %v1878
          %v1880 = vrot.slane %v1866, %v1879
          %v1881 = vcombine.low %v1825, %v1857
          %v1882 = vcombine.high %v1825, %v1857
          %v1883 = vcombine.low %v1832, %v1864
          %v1884 = vcombine.high %v1832, %v1864
          %v1885 = vcombine.low %v1841, %v1873
          %v1886 = vcombine.high %v1841, %v1873
          %v1887 = vcombine.low %v1848, %v1880
          %v1888 = vcombine.high %v1848, %v1880
          %1889 = vxpose.xlu0.b32.start [1/16] %v1881, 128
          %1890 = vxpose.xlu0.b32.cont [2/16] 0.0, 128
          %1891 = vxpose.xlu0.b32.cont [3/16] 0.0, 128
          %1892 = vxpose.xlu0.b32.cont [4/16] 0.0, 128
          %1893 = vxpose.xlu0.b32.cont [5/16] 0.0, 128
          %1894 = vxpose.xlu0.b32.cont [6/16] 0.0, 128
          %1895 = vxpose.xlu0.b32.cont [7/16] 0.0, 128
          %1896 = vxpose.xlu0.b32.cont [8/16] 0.0, 128
          %1897 = vxpose.xlu0.b32.cont [9/16] 0.0, 128
          %1898 = vxpose.xlu0.b32.cont [10/16] 0.0, 128
          %1899 = vxpose.xlu0.b32.cont [11/16] 0.0, 128
          %1900 = vxpose.xlu0.b32.cont [12/16] 0.0, 128
          %1901 = vxpose.xlu0.b32.cont [13/16] 0.0, 128
          %1902 = vxpose.xlu0.b32.cont [14/16] 0.0, 128
          %1903 = vxpose.xlu0.b32.cont [15/16] 0.0, 128
          %1904 = vxpose.xlu0.b32.end [16/16] 0.0, 128
          %v1905 = vpop.trf.xlu0
          %v1906 = vpop.trf.xlu0
          %v1907 = vpop.trf.xlu0
          %v1908 = vpop.trf.xlu0
          %v1909 = vpop.trf.xlu0
          %v1910 = vpop.trf.xlu0
          %v1911 = vpop.trf.xlu0
          %v1912 = vpop.trf.xlu0
          %v1913 = vpop.trf.xlu0
          %v1914 = vpop.trf.xlu0
          %v1915 = vpop.trf.xlu0
          %v1916 = vpop.trf.xlu0
          %v1917 = vpop.trf.xlu0
          %v1918 = vpop.trf.xlu0
          %v1919 = vpop.trf.xlu0
          %v1920 = vpop.trf.xlu0
          %1921 = vxpose.xlu0.b32.start [1/16] %v1882, 128
          %1922 = vxpose.xlu0.b32.cont [2/16] 0.0, 128
          %1923 = vxpose.xlu0.b32.cont [3/16] 0.0, 128
          %1924 = vxpose.xlu0.b32.cont [4/16] 0.0, 128
          %1925 = vxpose.xlu0.b32.cont [5/16] 0.0, 128
          %1926 = vxpose.xlu0.b32.cont [6/16] 0.0, 128
          %1927 = vxpose.xlu0.b32.cont [7/16] 0.0, 128
          %1928 = vxpose.xlu0.b32.cont [8/16] 0.0, 128
          %1929 = vxpose.xlu0.b32.cont [9/16] 0.0, 128
          %1930 = vxpose.xlu0.b32.cont [10/16] 0.0, 128
          %1931 = vxpose.xlu0.b32.cont [11/16] 0.0, 128
          %1932 = vxpose.xlu0.b32.cont [12/16] 0.0, 128
          %1933 = vxpose.xlu0.b32.cont [13/16] 0.0, 128
          %1934 = vxpose.xlu0.b32.cont [14/16] 0.0, 128
          %1935 = vxpose.xlu0.b32.cont [15/16] 0.0, 128
          %1936 = vxpose.xlu0.b32.end [16/16] 0.0, 128
          %v1937 = vpop.trf.xlu0
          %v1938 = vpop.trf.xlu0
          %v1939 = vpop.trf.xlu0
          %v1940 = vpop.trf.xlu0
          %v1941 = vpop.trf.xlu0
          %v1942 = vpop.trf.xlu0
          %v1943 = vpop.trf.xlu0
          %v1944 = vpop.trf.xlu0
          %v1945 = vpop.trf.xlu0
          %v1946 = vpop.trf.xlu0
          %v1947 = vpop.trf.xlu0
          %v1948 = vpop.trf.xlu0
          %v1949 = vpop.trf.xlu0
          %v1950 = vpop.trf.xlu0
          %v1951 = vpop.trf.xlu0
          %v1952 = vpop.trf.xlu0
          %1953 = vxpose.xlu0.b32.start [1/16] %v1883, 128
          %1954 = vxpose.xlu0.b32.cont [2/16] 0.0, 128
          %1955 = vxpose.xlu0.b32.cont [3/16] 0.0, 128
          %1956 = vxpose.xlu0.b32.cont [4/16] 0.0, 128
          %1957 = vxpose.xlu0.b32.cont [5/16] 0.0, 128
          %1958 = vxpose.xlu0.b32.cont [6/16] 0.0, 128
          %1959 = vxpose.xlu0.b32.cont [7/16] 0.0, 128
          %1960 = vxpose.xlu0.b32.cont [8/16] 0.0, 128
          %1961 = vxpose.xlu0.b32.cont [9/16] 0.0, 128
          %1962 = vxpose.xlu0.b32.cont [10/16] 0.0, 128
          %1963 = vxpose.xlu0.b32.cont [11/16] 0.0, 128
          %1964 = vxpose.xlu0.b32.cont [12/16] 0.0, 128
          %1965 = vxpose.xlu0.b32.cont [13/16] 0.0, 128
          %1966 = vxpose.xlu0.b32.cont [14/16] 0.0, 128
          %1967 = vxpose.xlu0.b32.cont [15/16] 0.0, 128
          %1968 = vxpose.xlu0.b32.end [16/16] 0.0, 128
          %v1969 = vpop.trf.xlu0
          %v1970 = vpop.trf.xlu0
          %v1971 = vpop.trf.xlu0
          %v1972 = vpop.trf.xlu0
          %v1973 = vpop.trf.xlu0
          %v1974 = vpop.trf.xlu0
          %v1975 = vpop.trf.xlu0
          %v1976 = vpop.trf.xlu0
          %v1977 = vpop.trf.xlu0
          %v1978 = vpop.trf.xlu0
          %v1979 = vpop.trf.xlu0
          %v1980 = vpop.trf.xlu0
          %v1981 = vpop.trf.xlu0
          %v1982 = vpop.trf.xlu0
          %v1983 = vpop.trf.xlu0
          %v1984 = vpop.trf.xlu0
          %1985 = vxpose.xlu0.b32.start [1/16] %v1884, 128
          %1986 = vxpose.xlu0.b32.cont [2/16] 0.0, 128
          %1987 = vxpose.xlu0.b32.cont [3/16] 0.0, 128
          %1988 = vxpose.xlu0.b32.cont [4/16] 0.0, 128
          %1989 = vxpose.xlu0.b32.cont [5/16] 0.0, 128
          %1990 = vxpose.xlu0.b32.cont [6/16] 0.0, 128
          %1991 = vxpose.xlu0.b32.cont [7/16] 0.0, 128
          %1992 = vxpose.xlu0.b32.cont [8/16] 0.0, 128
          %1993 = vxpose.xlu0.b32.cont [9/16] 0.0, 128
          %1994 = vxpose.xlu0.b32.cont [10/16] 0.0, 128
          %1995 = vxpose.xlu0.b32.cont [11/16] 0.0, 128
          %1996 = vxpose.xlu0.b32.cont [12/16] 0.0, 128
          %1997 = vxpose.xlu0.b32.cont [13/16] 0.0, 128
          %1998 = vxpose.xlu0.b32.cont [14/16] 0.0, 128
          %1999 = vxpose.xlu0.b32.cont [15/16] 0.0, 128
          %2000 = vxpose.xlu0.b32.end [16/16] 0.0, 128
          %v2001 = vpop.trf.xlu0
          %v2002 = vpop.trf.xlu0
          %v2003 = vpop.trf.xlu0
          %v2004 = vpop.trf.xlu0
          %v2005 = vpop.trf.xlu0
          %v2006 = vpop.trf.xlu0
          %v2007 = vpop.trf.xlu0
          %v2008 = vpop.trf.xlu0
          %v2009 = vpop.trf.xlu0
          %v2010 = vpop.trf.xlu0
          %v2011 = vpop.trf.xlu0
          %v2012 = vpop.trf.xlu0
          %v2013 = vpop.trf.xlu0
          %v2014 = vpop.trf.xlu0
          %v2015 = vpop.trf.xlu0
          %v2016 = vpop.trf.xlu0
          %2017 = vxpose.xlu0.b32.start [1/16] %v1885, 128
          %2018 = vxpose.xlu0.b32.cont [2/16] 0.0, 128
          %2019 = vxpose.xlu0.b32.cont [3/16] 0.0, 128
          %2020 = vxpose.xlu0.b32.cont [4/16] 0.0, 128
          %2021 = vxpose.xlu0.b32.cont [5/16] 0.0, 128
          %2022 = vxpose.xlu0.b32.cont [6/16] 0.0, 128
          %2023 = vxpose.xlu0.b32.cont [7/16] 0.0, 128
          %2024 = vxpose.xlu0.b32.cont [8/16] 0.0, 128
          %2025 = vxpose.xlu0.b32.cont [9/16] 0.0, 128
          %2026 = vxpose.xlu0.b32.cont [10/16] 0.0, 128
          %2027 = vxpose.xlu0.b32.cont [11/16] 0.0, 128
          %2028 = vxpose.xlu0.b32.cont [12/16] 0.0, 128
          %2029 = vxpose.xlu0.b32.cont [13/16] 0.0, 128
          %2030 = vxpose.xlu0.b32.cont [14/16] 0.0, 128
          %2031 = vxpose.xlu0.b32.cont [15/16] 0.0, 128
          %2032 = vxpose.xlu0.b32.end [16/16] 0.0, 128
          %v2033 = vpop.trf.xlu0
          %v2034 = vpop.trf.xlu0
          %v2035 = vpop.trf.xlu0
          %v2036 = vpop.trf.xlu0
          %v2037 = vpop.trf.xlu0
          %v2038 = vpop.trf.xlu0
          %v2039 = vpop.trf.xlu0
          %v2040 = vpop.trf.xlu0
          %v2041 = vpop.trf.xlu0
          %v2042 = vpop.trf.xlu0
          %v2043 = vpop.trf.xlu0
          %v2044 = vpop.trf.xlu0
          %v2045 = vpop.trf.xlu0
          %v2046 = vpop.trf.xlu0
          %v2047 = vpop.trf.xlu0
          %v2048 = vpop.trf.xlu0
          %2049 = vxpose.xlu0.b32.start [1/16] %v1886, 128
          %2050 = vxpose.xlu0.b32.cont [2/16] 0.0, 128
          %2051 = vxpose.xlu0.b32.cont [3/16] 0.0, 128
          %2052 = vxpose.xlu0.b32.cont [4/16] 0.0, 128
          %2053 = vxpose.xlu0.b32.cont [5/16] 0.0, 128
          %2054 = vxpose.xlu0.b32.cont [6/16] 0.0, 128
          %2055 = vxpose.xlu0.b32.cont [7/16] 0.0, 128
          %2056 = vxpose.xlu0.b32.cont [8/16] 0.0, 128
          %2057 = vxpose.xlu0.b32.cont [9/16] 0.0, 128
          %2058 = vxpose.xlu0.b32.cont [10/16] 0.0, 128
          %2059 = vxpose.xlu0.b32.cont [11/16] 0.0, 128
          %2060 = vxpose.xlu0.b32.cont [12/16] 0.0, 128
          %2061 = vxpose.xlu0.b32.cont [13/16] 0.0, 128
          %2062 = vxpose.xlu0.b32.cont [14/16] 0.0, 128
          %2063 = vxpose.xlu0.b32.cont [15/16] 0.0, 128
          %2064 = vxpose.xlu0.b32.end [16/16] 0.0, 128
          %v2065 = vpop.trf.xlu0
          %v2066 = vpop.trf.xlu0
          %v2067 = vpop.trf.xlu0
          %v2068 = vpop.trf.xlu0
          %v2069 = vpop.trf.xlu0
          %v2070 = vpop.trf.xlu0
          %v2071 = vpop.trf.xlu0
          %v2072 = vpop.trf.xlu0
          %v2073 = vpop.trf.xlu0
          %v2074 = vpop.trf.xlu0
          %v2075 = vpop.trf.xlu0
          %v2076 = vpop.trf.xlu0
          %v2077 = vpop.trf.xlu0
          %v2078 = vpop.trf.xlu0
          %v2079 = vpop.trf.xlu0
          %v2080 = vpop.trf.xlu0
          %2081 = vxpose.xlu0.b32.start [1/16] %v1887, 128
          %2082 = vxpose.xlu0.b32.cont [2/16] 0.0, 128
          %2083 = vxpose.xlu0.b32.cont [3/16] 0.0, 128
          %2084 = vxpose.xlu0.b32.cont [4/16] 0.0, 128
          %2085 = vxpose.xlu0.b32.cont [5/16] 0.0, 128
          %2086 = vxpose.xlu0.b32.cont [6/16] 0.0, 128
          %2087 = vxpose.xlu0.b32.cont [7/16] 0.0, 128
          %2088 = vxpose.xlu0.b32.cont [8/16] 0.0, 128
          %2089 = vxpose.xlu0.b32.cont [9/16] 0.0, 128
          %2090 = vxpose.xlu0.b32.cont [10/16] 0.0, 128
          %2091 = vxpose.xlu0.b32.cont [11/16] 0.0, 128
          %2092 = vxpose.xlu0.b32.cont [12/16] 0.0, 128
          %2093 = vxpose.xlu0.b32.cont [13/16] 0.0, 128
          %2094 = vxpose.xlu0.b32.cont [14/16] 0.0, 128
          %2095 = vxpose.xlu0.b32.cont [15/16] 0.0, 128
          %2096 = vxpose.xlu0.b32.end [16/16] 0.0, 128
          %v2097 = vpop.trf.xlu0
          %v2098 = vpop.trf.xlu0
          %v2099 = vpop.trf.xlu0
          %v2100 = vpop.trf.xlu0
          %v2101 = vpop.trf.xlu0
          %v2102 = vpop.trf.xlu0
          %v2103 = vpop.trf.xlu0
          %v2104 = vpop.trf.xlu0
          %v2105 = vpop.trf.xlu0
          %v2106 = vpop.trf.xlu0
          %v2107 = vpop.trf.xlu0
          %v2108 = vpop.trf.xlu0
          %v2109 = vpop.trf.xlu0
          %v2110 = vpop.trf.xlu0
          %v2111 = vpop.trf.xlu0
          %v2112 = vpop.trf.xlu0
          %2113 = vxpose.xlu0.b32.start [1/16] %v1888, 128
          %2114 = vxpose.xlu0.b32.cont [2/16] 0.0, 128
          %2115 = vxpose.xlu0.b32.cont [3/16] 0.0, 128
          %2116 = vxpose.xlu0.b32.cont [4/16] 0.0, 128
          %2117 = vxpose.xlu0.b32.cont [5/16] 0.0, 128
          %2118 = vxpose.xlu0.b32.cont [6/16] 0.0, 128
          %2119 = vxpose.xlu0.b32.cont [7/16] 0.0, 128
          %2120 = vxpose.xlu0.b32.cont [8/16] 0.0, 128
          %2121 = vxpose.xlu0.b32.cont [9/16] 0.0, 128
          %2122 = vxpose.xlu0.b32.cont [10/16] 0.0, 128
          %2123 = vxpose.xlu0.b32.cont [11/16] 0.0, 128
          %2124 = vxpose.xlu0.b32.cont [12/16] 0.0, 128
          %2125 = vxpose.xlu0.b32.cont [13/16] 0.0, 128
          %2126 = vxpose.xlu0.b32.cont [14/16] 0.0, 128
          %2127 = vxpose.xlu0.b32.cont [15/16] 0.0, 128
          %2128 = vxpose.xlu0.b32.end [16/16] 0.0, 128
          %v2129 = vpop.trf.xlu0
          %v2130 = vpop.trf.xlu0
          %v2131 = vpop.trf.xlu0
          %v2132 = vpop.trf.xlu0
          %v2133 = vpop.trf.xlu0
          %v2134 = vpop.trf.xlu0
          %v2135 = vpop.trf.xlu0
          %v2136 = vpop.trf.xlu0
          %v2137 = vpop.trf.xlu0
          %v2138 = vpop.trf.xlu0
          %v2139 = vpop.trf.xlu0
          %v2140 = vpop.trf.xlu0
          %v2141 = vpop.trf.xlu0
          %v2142 = vpop.trf.xlu0
          %v2143 = vpop.trf.xlu0
          %v2144 = vpop.trf.xlu0
          %v2145 = vcombine.low %v1905, %v1969
          %v2147 = vunpack.c.l.s4 1983009808
          %v2148 = vunpack.c.0.s8 %v2147
          %v2149 = vlaneseq
          %v2150 = vshrl.u32 %v2149, 7
          %v2151 = vsub.s32 %v2148, %v2150
          %v2152 = vrot.slane %v2145, %v2151
          %v2153 = vcombine.low %v1937, %v2001
          %v2155 = vunpack.c.l.s4 1983009808
          %v2156 = vunpack.c.0.s8 %v2155
          %v2157 = vlaneseq
          %v2158 = vshrl.u32 %v2157, 7
          %v2159 = vsub.s32 %v2156, %v2158
          %v2160 = vrot.slane %v2153, %v2159
          %v2161 = vcombine.low %v2033, %v2097
          %v2163 = vunpack.c.l.s4 1983009808
          %v2164 = vunpack.c.0.s8 %v2163
          %v2165 = vlaneseq
          %v2166 = vshrl.u32 %v2165, 7
          %v2167 = vsub.s32 %v2164, %v2166
          %v2168 = vrot.slane %v2161, %v2167
          %v2169 = vcombine.low %v2065, %v2129
          %v2171 = vunpack.c.l.s4 1983009808
          %v2172 = vunpack.c.0.s8 %v2171
          %v2173 = vlaneseq
          %v2174 = vshrl.u32 %v2173, 7
          %v2175 = vsub.s32 %v2172, %v2174
          %v2176 = vrot.slane %v2169, %v2175
          %v2177 = vcombine.low %v2152, %v2160
          %v2178 = vcombine.high %v2152, %v2160
          %v2180 = vunpack.c.l.s4 1934713408
          %v2181 = vunpack.c.0.s8 %v2180
          %v2182 = vlaneseq
          %v2183 = vshrl.u32 %v2182, 7
          %v2184 = vsub.s32 %v2181, %v2183
          %v2185 = vrot.slane %v2177, %v2184
          %v2187 = vunpack.c.l.s4 1934713408
          %v2188 = vunpack.c.0.s8 %v2187
          %v2189 = vlaneseq
          %v2190 = vshrl.u32 %v2189, 7
          %v2191 = vsub.s32 %v2188, %v2190
          %v2192 = vrot.slane %v2178, %v2191
          %v2193 = vcombine.low %v2168, %v2176
          %v2194 = vcombine.high %v2168, %v2176
          %v2196 = vunpack.c.l.s4 1934713408
          %v2197 = vunpack.c.0.s8 %v2196
          %v2198 = vlaneseq
          %v2199 = vshrl.u32 %v2198, 7
          %v2200 = vsub.s32 %v2197, %v2199
          %v2201 = vrot.slane %v2193, %v2200
          %v2203 = vunpack.c.l.s4 1934713408
          %v2204 = vunpack.c.0.s8 %v2203
          %v2205 = vlaneseq
          %v2206 = vshrl.u32 %v2205, 7
          %v2207 = vsub.s32 %v2204, %v2206
          %v2208 = vrot.slane %v2194, %v2207
          %v2209 = vcombine.low %v2185, %v2201
          %v2210 = vcombine.high %v2185, %v2201
          %v2211 = vcombine.low %v2192, %v2208
          %v2212 = vcombine.high %v2192, %v2208
          %v2214 = vsel %vm780, %v1493, 0
          %2216 = vmatprep.subr.mxu0 0.0
          %2217 = vmatpush1.msra.mxu0 0.0
          %2218 = vmatprep.subr.mxu0 0.0
          %2219 = vmatpush1.msra.mxu0 0.0
          %2220 = vmatprep.subr.mxu0 0.0
          %2221 = vmatpush1.msra.mxu0 0.0
          %2222 = vmatprep.subr.mxu0 0.0
          %2223 = vmatpush1.msra.mxu0 0.0
          %2224 = vmatprep.subr.mxu0 0.0
          %2225 = vmatpush1.msra.mxu0 0.0
          %2226 = vmatprep.subr.mxu0 0.0
          %2227 = vmatpush1.msra.mxu0 0.0
          %2228 = vmatprep.subr.mxu0 0.0
          %2229 = vmatpush1.msra.mxu0 0.0
          %2230 = vmatprep.subr.mxu0 0.0
          %2231 = vmatpush1.msra.mxu0 0.0
          %2232 = vmatprep.subr.mxu0 0.0
          %2233 = vmatpush1.msra.mxu0 0.0
          %2234 = vmatprep.subr.mxu0 0.0
          %2235 = vmatpush1.msra.mxu0 0.0
          %2236 = vmatprep.subr.mxu0 0.0
          %2237 = vmatpush1.msra.mxu0 0.0
          %2238 = vmatprep.subr.mxu0 0.0
          %2239 = vmatpush1.msra.mxu0 0.0
          %2240 = vmatprep.subr.mxu0 0.0
          %2241 = vmatpush1.msra.mxu0 0.0
          %2242 = vmatprep.subr.mxu0 0.0
          %2243 = vmatpush1.msra.mxu0 0.0
          %2244 = vmatprep.subr.mxu0 0.0
          %2245 = vmatpush1.msra.mxu0 0.0
          %2246 = vmatprep.subr.mxu0 0.0
          %2247 = vmatpush1.msra.mxu0 %v2209
          %2248 = vmatprep.subr.mxu0 0.0
          %2249 = vmatpush2.msra.mxu0 0.0
          %2250 = vmatprep.subr.mxu0 0.0
          %2251 = vmatpush2.msra.mxu0 0.0
          %2252 = vmatprep.subr.mxu0 0.0
          %2253 = vmatpush2.msra.mxu0 0.0
          %2254 = vmatprep.subr.mxu0 0.0
          %2255 = vmatpush2.msra.mxu0 0.0
          %2256 = vmatprep.subr.mxu0 0.0
          %2257 = vmatpush2.msra.mxu0 0.0
          %2258 = vmatprep.subr.mxu0 0.0
          %2259 = vmatpush2.msra.mxu0 0.0
          %2260 = vmatprep.subr.mxu0 0.0
          %2261 = vmatpush2.msra.mxu0 0.0
          %2262 = vmatprep.subr.mxu0 0.0
          %2263 = vmatpush2.msra.mxu0 0.0
          %2264 = vmatprep.subr.mxu0 0.0
          %2265 = vmatpush2.msra.mxu0 0.0
          %2266 = vmatprep.subr.mxu0 0.0
          %2267 = vmatpush2.msra.mxu0 0.0
          %2268 = vmatprep.subr.mxu0 0.0
          %2269 = vmatpush2.msra.mxu0 0.0
          %2270 = vmatprep.subr.mxu0 0.0
          %2271 = vmatpush2.msra.mxu0 0.0
          %2272 = vmatprep.subr.mxu0 0.0
          %2273 = vmatpush2.msra.mxu0 0.0
          %2274 = vmatprep.subr.mxu0 0.0
          %2275 = vmatpush2.msra.mxu0 0.0
          %2276 = vmatprep.subr.mxu0 0.0
          %2277 = vmatpush2.msra.mxu0 0.0
          %2278 = vmatprep.subr.mxu0 0.0
          %2279 = vmatpush2.msra.mxu0 0.0
          %2280 = vmatprep.mubr.f32.mxu0 0.0
          %2281 = vmatmul.mubr.f32.gmra.mxu0 %v2214
          %v2282 = vpop.f32.mrf.mxu0
          %v2283 = vadd.f32 0.0, %v2282
          %v2284 = vpop.f32.mrf.mxu0
          %2285 = vdwg.mxu0
          %v2287 = vsel %vm780, %v1494, 0
          %2289 = vmatprep.subr.mxu0 0.0
          %2290 = vmatpush1.msra.mxu0 0.0
          %2291 = vmatprep.subr.mxu0 0.0
          %2292 = vmatpush1.msra.mxu0 0.0
          %2293 = vmatprep.subr.mxu0 0.0
          %2294 = vmatpush1.msra.mxu0 0.0
          %2295 = vmatprep.subr.mxu0 0.0
          %2296 = vmatpush1.msra.mxu0 0.0
          %2297 = vmatprep.subr.mxu0 0.0
          %2298 = vmatpush1.msra.mxu0 0.0
          %2299 = vmatprep.subr.mxu0 0.0
          %2300 = vmatpush1.msra.mxu0 0.0
          %2301 = vmatprep.subr.mxu0 0.0
          %2302 = vmatpush1.msra.mxu0 0.0
          %2303 = vmatprep.subr.mxu0 0.0
          %2304 = vmatpush1.msra.mxu0 0.0
          %2305 = vmatprep.subr.mxu0 0.0
          %2306 = vmatpush1.msra.mxu0 0.0
          %2307 = vmatprep.subr.mxu0 0.0
          %2308 = vmatpush1.msra.mxu0 0.0
          %2309 = vmatprep.subr.mxu0 0.0
          %2310 = vmatpush1.msra.mxu0 0.0
          %2311 = vmatprep.subr.mxu0 0.0
          %2312 = vmatpush1.msra.mxu0 0.0
          %2313 = vmatprep.subr.mxu0 0.0
          %2314 = vmatpush1.msra.mxu0 0.0
          %2315 = vmatprep.subr.mxu0 0.0
          %2316 = vmatpush1.msra.mxu0 0.0
          %2317 = vmatprep.subr.mxu0 0.0
          %2318 = vmatpush1.msra.mxu0 0.0
          %2319 = vmatprep.subr.mxu0 0.0
          %2320 = vmatpush1.msra.mxu0 %v2210
          %2321 = vmatprep.subr.mxu0 0.0
          %2322 = vmatpush2.msra.mxu0 0.0
          %2323 = vmatprep.subr.mxu0 0.0
          %2324 = vmatpush2.msra.mxu0 0.0
          %2325 = vmatprep.subr.mxu0 0.0
          %2326 = vmatpush2.msra.mxu0 0.0
          %2327 = vmatprep.subr.mxu0 0.0
          %2328 = vmatpush2.msra.mxu0 0.0
          %2329 = vmatprep.subr.mxu0 0.0
          %2330 = vmatpush2.msra.mxu0 0.0
          %2331 = vmatprep.subr.mxu0 0.0
          %2332 = vmatpush2.msra.mxu0 0.0
          %2333 = vmatprep.subr.mxu0 0.0
          %2334 = vmatpush2.msra.mxu0 0.0
          %2335 = vmatprep.subr.mxu0 0.0
          %2336 = vmatpush2.msra.mxu0 0.0
          %2337 = vmatprep.subr.mxu0 0.0
          %2338 = vmatpush2.msra.mxu0 0.0
          %2339 = vmatprep.subr.mxu0 0.0
          %2340 = vmatpush2.msra.mxu0 0.0
          %2341 = vmatprep.subr.mxu0 0.0
          %2342 = vmatpush2.msra.mxu0 0.0
          %2343 = vmatprep.subr.mxu0 0.0
          %2344 = vmatpush2.msra.mxu0 0.0
          %2345 = vmatprep.subr.mxu0 0.0
          %2346 = vmatpush2.msra.mxu0 0.0
          %2347 = vmatprep.subr.mxu0 0.0
          %2348 = vmatpush2.msra.mxu0 0.0
          %2349 = vmatprep.subr.mxu0 0.0
          %2350 = vmatpush2.msra.mxu0 0.0
          %2351 = vmatprep.subr.mxu0 0.0
          %2352 = vmatpush2.msra.mxu0 0.0
          %2353 = vmatprep.mubr.f32.mxu0 0.0
          %2354 = vmatmul.mubr.f32.gmra.mxu0 %v2287
          %v2355 = vpop.f32.mrf.mxu0
          %v2356 = vadd.f32 0.0, %v2355
          %v2357 = vpop.f32.mrf.mxu0
          %2358 = vdwg.mxu0
          %v2360 = vsel %vm780, %v1495, 0
          %2362 = vmatprep.subr.mxu0 0.0
          %2363 = vmatpush1.msra.mxu0 0.0
          %2364 = vmatprep.subr.mxu0 0.0
          %2365 = vmatpush1.msra.mxu0 0.0
          %2366 = vmatprep.subr.mxu0 0.0
          %2367 = vmatpush1.msra.mxu0 0.0
          %2368 = vmatprep.subr.mxu0 0.0
          %2369 = vmatpush1.msra.mxu0 0.0
          %2370 = vmatprep.subr.mxu0 0.0
          %2371 = vmatpush1.msra.mxu0 0.0
          %2372 = vmatprep.subr.mxu0 0.0
          %2373 = vmatpush1.msra.mxu0 0.0
          %2374 = vmatprep.subr.mxu0 0.0
          %2375 = vmatpush1.msra.mxu0 0.0
          %2376 = vmatprep.subr.mxu0 0.0
          %2377 = vmatpush1.msra.mxu0 0.0
          %2378 = vmatprep.subr.mxu0 0.0
          %2379 = vmatpush1.msra.mxu0 0.0
          %2380 = vmatprep.subr.mxu0 0.0
          %2381 = vmatpush1.msra.mxu0 0.0
          %2382 = vmatprep.subr.mxu0 0.0
          %2383 = vmatpush1.msra.mxu0 0.0
          %2384 = vmatprep.subr.mxu0 0.0
          %2385 = vmatpush1.msra.mxu0 0.0
          %2386 = vmatprep.subr.mxu0 0.0
          %2387 = vmatpush1.msra.mxu0 0.0
          %2388 = vmatprep.subr.mxu0 0.0
          %2389 = vmatpush1.msra.mxu0 0.0
          %2390 = vmatprep.subr.mxu0 0.0
          %2391 = vmatpush1.msra.mxu0 0.0
          %2392 = vmatprep.subr.mxu0 0.0
          %2393 = vmatpush1.msra.mxu0 %v2211
          %2394 = vmatprep.subr.mxu0 0.0
          %2395 = vmatpush2.msra.mxu0 0.0
          %2396 = vmatprep.subr.mxu0 0.0
          %2397 = vmatpush2.msra.mxu0 0.0
          %2398 = vmatprep.subr.mxu0 0.0
          %2399 = vmatpush2.msra.mxu0 0.0
          %2400 = vmatprep.subr.mxu0 0.0
          %2401 = vmatpush2.msra.mxu0 0.0
          %2402 = vmatprep.subr.mxu0 0.0
          %2403 = vmatpush2.msra.mxu0 0.0
          %2404 = vmatprep.subr.mxu0 0.0
          %2405 = vmatpush2.msra.mxu0 0.0
          %2406 = vmatprep.subr.mxu0 0.0
          %2407 = vmatpush2.msra.mxu0 0.0
          %2408 = vmatprep.subr.mxu0 0.0
          %2409 = vmatpush2.msra.mxu0 0.0
          %2410 = vmatprep.subr.mxu0 0.0
          %2411 = vmatpush2.msra.mxu0 0.0
          %2412 = vmatprep.subr.mxu0 0.0
          %2413 = vmatpush2.msra.mxu0 0.0
          %2414 = vmatprep.subr.mxu0 0.0
          %2415 = vmatpush2.msra.mxu0 0.0
          %2416 = vmatprep.subr.mxu0 0.0
          %2417 = vmatpush2.msra.mxu0 0.0
          %2418 = vmatprep.subr.mxu0 0.0
          %2419 = vmatpush2.msra.mxu0 0.0
          %2420 = vmatprep.subr.mxu0 0.0
          %2421 = vmatpush2.msra.mxu0 0.0
          %2422 = vmatprep.subr.mxu0 0.0
          %2423 = vmatpush2.msra.mxu0 0.0
          %2424 = vmatprep.subr.mxu0 0.0
          %2425 = vmatpush2.msra.mxu0 0.0
          %2426 = vmatprep.mubr.f32.mxu0 0.0
          %2427 = vmatmul.mubr.f32.gmra.mxu0 %v2360
          %v2428 = vpop.f32.mrf.mxu0
          %v2429 = vadd.f32 0.0, %v2428
          %v2430 = vpop.f32.mrf.mxu0
          %2431 = vdwg.mxu0
          %v2433 = vsel %vm780, %v1496, 0
          %2435 = vmatprep.subr.mxu0 0.0
          %2436 = vmatpush1.msra.mxu0 0.0
          %2437 = vmatprep.subr.mxu0 0.0
          %2438 = vmatpush1.msra.mxu0 0.0
          %2439 = vmatprep.subr.mxu0 0.0
          %2440 = vmatpush1.msra.mxu0 0.0
          %2441 = vmatprep.subr.mxu0 0.0
          %2442 = vmatpush1.msra.mxu0 0.0
          %2443 = vmatprep.subr.mxu0 0.0
          %2444 = vmatpush1.msra.mxu0 0.0
          %2445 = vmatprep.subr.mxu0 0.0
          %2446 = vmatpush1.msra.mxu0 0.0
          %2447 = vmatprep.subr.mxu0 0.0
          %2448 = vmatpush1.msra.mxu0 0.0
          %2449 = vmatprep.subr.mxu0 0.0
          %2450 = vmatpush1.msra.mxu0 0.0
          %2451 = vmatprep.subr.mxu0 0.0
          %2452 = vmatpush1.msra.mxu0 0.0
          %2453 = vmatprep.subr.mxu0 0.0
          %2454 = vmatpush1.msra.mxu0 0.0
          %2455 = vmatprep.subr.mxu0 0.0
          %2456 = vmatpush1.msra.mxu0 0.0
          %2457 = vmatprep.subr.mxu0 0.0
          %2458 = vmatpush1.msra.mxu0 0.0
          %2459 = vmatprep.subr.mxu0 0.0
          %2460 = vmatpush1.msra.mxu0 0.0
          %2461 = vmatprep.subr.mxu0 0.0
          %2462 = vmatpush1.msra.mxu0 0.0
          %2463 = vmatprep.subr.mxu0 0.0
          %2464 = vmatpush1.msra.mxu0 0.0
          %2465 = vmatprep.subr.mxu0 0.0
          %2466 = vmatpush1.msra.mxu0 %v2212
          %2467 = vmatprep.subr.mxu0 0.0
          %2468 = vmatpush2.msra.mxu0 0.0
          %2469 = vmatprep.subr.mxu0 0.0
          %2470 = vmatpush2.msra.mxu0 0.0
          %2471 = vmatprep.subr.mxu0 0.0
          %2472 = vmatpush2.msra.mxu0 0.0
          %2473 = vmatprep.subr.mxu0 0.0
          %2474 = vmatpush2.msra.mxu0 0.0
          %2475 = vmatprep.subr.mxu0 0.0
          %2476 = vmatpush2.msra.mxu0 0.0
          %2477 = vmatprep.subr.mxu0 0.0
          %2478 = vmatpush2.msra.mxu0 0.0
          %2479 = vmatprep.subr.mxu0 0.0
          %2480 = vmatpush2.msra.mxu0 0.0
          %2481 = vmatprep.subr.mxu0 0.0
          %2482 = vmatpush2.msra.mxu0 0.0
          %2483 = vmatprep.subr.mxu0 0.0
          %2484 = vmatpush2.msra.mxu0 0.0
          %2485 = vmatprep.subr.mxu0 0.0
          %2486 = vmatpush2.msra.mxu0 0.0
          %2487 = vmatprep.subr.mxu0 0.0
          %2488 = vmatpush2.msra.mxu0 0.0
          %2489 = vmatprep.subr.mxu0 0.0
          %2490 = vmatpush2.msra.mxu0 0.0
          %2491 = vmatprep.subr.mxu0 0.0
          %2492 = vmatpush2.msra.mxu0 0.0
          %2493 = vmatprep.subr.mxu0 0.0
          %2494 = vmatpush2.msra.mxu0 0.0
          %2495 = vmatprep.subr.mxu0 0.0
          %2496 = vmatpush2.msra.mxu0 0.0
          %2497 = vmatprep.subr.mxu0 0.0
          %2498 = vmatpush2.msra.mxu0 0.0
          %2499 = vmatprep.mubr.f32.mxu0 0.0
          %2500 = vmatmul.mubr.f32.gmra.mxu0 %v2433
          %v2501 = vpop.f32.mrf.mxu0
          %v2502 = vadd.f32 0.0, %v2501
          %v2503 = vpop.f32.mrf.mxu0
          %2504 = vdwg.mxu0
          %v2505 = vmul.f32 %v2283, 0.35355338
          %v2506 = vmul.f32 %v2356, 0.35355338
          %v2507 = vmul.f32 %v2429, 0.35355338
          %v2508 = vmul.f32 %v2502, 0.35355338
          %v2509 = vlaneseq
          %v2510 = vshrl.u32 %v2509, 7
          %v2511 = vstv %s751
          %v2512 = vadd.s32 %v2511, %v2510
          %v2513 = vlaneseq
          %v2514 = vand.u32 %v2513, 127
          %v2515 = vstv %s750
          %v2516 = vadd.s32 %v2515, %v2514
          %vm2517 = vcmp.le.s32.totalorder %v2516, %v2512
          %v2518 = vsel %vm2517, 1, 0
          %vm2519 = vcmp.eq.s32.totalorder %v2518, 1
          %v2520 = vsel %vm2519, %v2505, -1e+30
          %v2521 = vsel %vm2519, %v2506, -1e+30
          %v2522 = vsel %vm2519, %v2507, -1e+30
          %v2523 = vsel %vm2519, %v2508, -1e+30
          %v2524 = vld [vmem:[%s718] sm:$0x1]
          %v2525 = vsub.f32 1.0, %v2524
          %v2526 = vmul.f32 %v2525, -1e+30
          %v2528 = vlaneseq
          %v2529 = vshrl.u32 %v2528, 7
          %v2530 = vsub.s32 0, %v2529
          %v2531 = vrot.slane %v2526, %v2530
          %v2533 = vadd.f32 %v2520, %v2531
          %v2534 = vadd.f32 %v2521, %v2531
          %v2535 = vadd.f32 %v2522, %v2531
          %v2536 = vadd.f32 %v2523, %v2531
          %v2537 = vld [vmem:[#allocation2] sm:$0xff]
          %v2538 = vld [vmem:[#allocation2 + $0x8] sm:$0xff]
          %v2539 = vld [vmem:[#allocation2 + $0x10] sm:$0xff]
          %v2540 = vld [vmem:[#allocation2 + $0x18] sm:$0xff]
          %v2541 = vsel %vm780, %v2533, -inf
          %2542 = vmax.xlane.f32.xlu0 %v2541
          %v2543 = vpop.xlane.xlu0 %2542
          %v2544 = vsel %vm780, %v2534, -inf
          %2545 = vmax.xlane.f32.xlu0 %v2544
          %v2546 = vpop.xlane.xlu0 %2545
          %v2547 = vsel %vm780, %v2535, -inf
          %2548 = vmax.xlane.f32.xlu0 %v2547
          %v2549 = vpop.xlane.xlu0 %2548
          %v2550 = vsel %vm780, %v2536, -inf
          %2551 = vmax.xlane.f32.xlu0 %v2550
          %v2552 = vpop.xlane.xlu0 %2551
          %v2553 = vmax.f32 %v2537, %v2543
          %v2554 = vmax.f32 %v2538, %v2546
          %v2555 = vmax.f32 %v2539, %v2549
          %v2556 = vmax.f32 %v2540, %v2552
          %v2557 = vsub.f32 %v2537, %v2553
          %v2558 = vsub.f32 %v2538, %v2554
          %v2559 = vsub.f32 %v2539, %v2555
          %v2560 = vsub.f32 %v2540, %v2556
          %v2561 = vmul.f32 %v2557, 1.442695
          %v2562 = vpow.pop %v2561
          %v2563 = vmul.f32 %v2558, 1.442695
          %v2564 = vpow.pop %v2563
          %v2565 = vmul.f32 %v2559, 1.442695
          %v2566 = vpow.pop %v2565
          %v2567 = vmul.f32 %v2560, 1.442695
          %v2568 = vpow.pop %v2567
          %2570 = vset.pattern.permute.xlu0 0
          %2571 = vperm.xlu0 %2570, %v2553
          %v2572 = vpop.permute.xlu0 %2571
          %2575 = vset.pattern.permute.xlu0 0
          %2576 = vperm.xlu0 %2575, %v2554
          %v2577 = vpop.permute.xlu0 %2576
          %2580 = vset.pattern.permute.xlu0 0
          %2581 = vperm.xlu0 %2580, %v2555
          %v2582 = vpop.permute.xlu0 %2581
          %2585 = vset.pattern.permute.xlu0 0
          %2586 = vperm.xlu0 %2585, %v2556
          %v2587 = vpop.permute.xlu0 %2586
          %v2589 = vsub.f32 %v2533, %v2572
          %v2590 = vsub.f32 %v2534, %v2577
          %v2591 = vsub.f32 %v2535, %v2582
          %v2592 = vsub.f32 %v2536, %v2587
          %v2593 = vmul.f32 %v2589, 1.442695
          %v2594 = vpow.pop %v2593
          %v2595 = vmul.f32 %v2590, 1.442695
          %v2596 = vpow.pop %v2595
          %v2597 = vmul.f32 %v2591, 1.442695
          %v2598 = vpow.pop %v2597
          %v2599 = vmul.f32 %v2592, 1.442695
          %v2600 = vpow.pop %v2599
          %v2601 = vld [vmem:[#allocation3] sm:$0xff]
          %v2602 = vld [vmem:[#allocation3 + $0x8] sm:$0xff]
          %v2603 = vld [vmem:[#allocation3 + $0x10] sm:$0xff]
          %v2604 = vld [vmem:[#allocation3 + $0x18] sm:$0xff]
          %v2605 = vmul.f32 %v2562, %v2601
          %v2606 = vmul.f32 %v2564, %v2602
          %v2607 = vmul.f32 %v2566, %v2603
          %v2608 = vmul.f32 %v2568, %v2604
          %v2609 = vsel %vm780, %v2594, 0.0
          %2610 = vadd.xlane.f32.xlu0 %v2609
          %v2611 = vpop.xlane.xlu0 %2610
          %v2612 = vsel %vm780, %v2596, 0.0
          %2613 = vadd.xlane.f32.xlu0 %v2612
          %v2614 = vpop.xlane.xlu0 %2613
          %v2615 = vsel %vm780, %v2598, 0.0
          %2616 = vadd.xlane.f32.xlu0 %v2615
          %v2617 = vpop.xlane.xlu0 %2616
          %v2618 = vsel %vm780, %v2600, 0.0
          %2619 = vadd.xlane.f32.xlu0 %v2618
          %v2620 = vpop.xlane.xlu0 %2619
          %v2621 = vadd.f32 %v2605, %v2611
          %v2622 = vadd.f32 %v2606, %v2614
          %v2623 = vadd.f32 %v2607, %v2617
          %v2624 = vadd.f32 %v2608, %v2620
          %vm2625 = vcmask 7168
          %2626 = vst.msk [vmem:[#allocation3] sm:$0xff] %vm2625, %v2621
          %2627 = vst.msk [vmem:[#allocation3 + $0x8] sm:$0xff] %vm2625, %v2622
          %2628 = vst.msk [vmem:[#allocation3 + $0x10] sm:$0xff] %vm2625, %v2623
          %2629 = vst.msk [vmem:[#allocation3 + $0x18] sm:$0xff] %vm2625, %v2624
          %v2630 = vld [vmem:[#allocation4] sm:$0xff]
          %v2631 = vld [vmem:[#allocation4 + $0x8] sm:$0xff]
          %v2632 = vld [vmem:[#allocation4 + $0x10] sm:$0xff]
          %v2633 = vld [vmem:[#allocation4 + $0x18] sm:$0xff]
          %2635 = vset.pattern.permute.xlu0 0
          %2636 = vperm.xlu0 %2635, %v2562
          %v2637 = vpop.permute.xlu0 %2636
          %2640 = vset.pattern.permute.xlu0 0
          %2641 = vperm.xlu0 %2640, %v2564
          %v2642 = vpop.permute.xlu0 %2641
          %2645 = vset.pattern.permute.xlu0 0
          %2646 = vperm.xlu0 %2645, %v2566
          %v2647 = vpop.permute.xlu0 %2646
          %2650 = vset.pattern.permute.xlu0 0
          %2651 = vperm.xlu0 %2650, %v2568
          %v2652 = vpop.permute.xlu0 %2651
          %v2654 = vmul.f32 %v2637, %v2630
          %v2655 = vmul.f32 %v2642, %v2631
          %v2656 = vmul.f32 %v2647, %v2632
          %v2657 = vmul.f32 %v2652, %v2633
          %v2658 = vcombine.low %v1421, %v1423
          %v2660 = vunpack.c.l.s4 1983009808
          %v2661 = vunpack.c.0.s8 %v2660
          %v2662 = vlaneseq
          %v2663 = vshrl.u32 %v2662, 7
          %v2664 = vsub.s32 %v2661, %v2663
          %v2665 = vrot.slane %v2658, %v2664
          %v2666 = vcombine.low %v1422, %v1424
          %v2668 = vunpack.c.l.s4 1983009808
          %v2669 = vunpack.c.0.s8 %v2668
          %v2670 = vlaneseq
          %v2671 = vshrl.u32 %v2670, 7
          %v2672 = vsub.s32 %v2669, %v2671
          %v2673 = vrot.slane %v2666, %v2672
          %v2674 = vcombine.low %v1425, %v1427
          %v2676 = vunpack.c.l.s4 1983009808
          %v2677 = vunpack.c.0.s8 %v2676
          %v2678 = vlaneseq
          %v2679 = vshrl.u32 %v2678, 7
          %v2680 = vsub.s32 %v2677, %v2679
          %v2681 = vrot.slane %v2674, %v2680
          %v2682 = vcombine.low %v1426, %v1428
          %v2684 = vunpack.c.l.s4 1983009808
          %v2685 = vunpack.c.0.s8 %v2684
          %v2686 = vlaneseq
          %v2687 = vshrl.u32 %v2686, 7
          %v2688 = vsub.s32 %v2685, %v2687
          %v2689 = vrot.slane %v2682, %v2688
          %v2690 = vcombine.low %v2665, %v2673
          %v2691 = vcombine.high %v2665, %v2673
          %v2693 = vunpack.c.l.s4 1934713408
          %v2694 = vunpack.c.0.s8 %v2693
          %v2695 = vlaneseq
          %v2696 = vshrl.u32 %v2695, 7
          %v2697 = vsub.s32 %v2694, %v2696
          %v2698 = vrot.slane %v2690, %v2697
          %v2700 = vunpack.c.l.s4 1934713408
          %v2701 = vunpack.c.0.s8 %v2700
          %v2702 = vlaneseq
          %v2703 = vshrl.u32 %v2702, 7
          %v2704 = vsub.s32 %v2701, %v2703
          %v2705 = vrot.slane %v2691, %v2704
          %v2706 = vcombine.low %v2681, %v2689
          %v2707 = vcombine.high %v2681, %v2689
          %v2709 = vunpack.c.l.s4 1934713408
          %v2710 = vunpack.c.0.s8 %v2709
          %v2711 = vlaneseq
          %v2712 = vshrl.u32 %v2711, 7
          %v2713 = vsub.s32 %v2710, %v2712
          %v2714 = vrot.slane %v2706, %v2713
          %v2716 = vunpack.c.l.s4 1934713408
          %v2717 = vunpack.c.0.s8 %v2716
          %v2718 = vlaneseq
          %v2719 = vshrl.u32 %v2718, 7
          %v2720 = vsub.s32 %v2717, %v2719
          %v2721 = vrot.slane %v2707, %v2720
          %v2722 = vcombine.low %v2698, %v2714
          %v2723 = vcombine.high %v2698, %v2714
          %v2724 = vcombine.low %v2705, %v2721
          %v2725 = vcombine.high %v2705, %v2721
          %v2727 = vsel %vm780, %v2594, 0
          %2729 = vmatprep.subr.mxu0 0.0
          %2730 = vmatpush1.msra.mxu0 0.0
          %2731 = vmatprep.subr.mxu0 0.0
          %2732 = vmatpush1.msra.mxu0 0.0
          %2733 = vmatprep.subr.mxu0 0.0
          %2734 = vmatpush1.msra.mxu0 0.0
          %2735 = vmatprep.subr.mxu0 0.0
          %2736 = vmatpush1.msra.mxu0 0.0
          %2737 = vmatprep.subr.mxu0 0.0
          %2738 = vmatpush1.msra.mxu0 0.0
          %2739 = vmatprep.subr.mxu0 0.0
          %2740 = vmatpush1.msra.mxu0 0.0
          %2741 = vmatprep.subr.mxu0 0.0
          %2742 = vmatpush1.msra.mxu0 0.0
          %2743 = vmatprep.subr.mxu0 0.0
          %2744 = vmatpush1.msra.mxu0 0.0
          %2745 = vmatprep.subr.mxu0 0.0
          %2746 = vmatpush1.msra.mxu0 0.0
          %2747 = vmatprep.subr.mxu0 0.0
          %2748 = vmatpush1.msra.mxu0 0.0
          %2749 = vmatprep.subr.mxu0 0.0
          %2750 = vmatpush1.msra.mxu0 0.0
          %2751 = vmatprep.subr.mxu0 0.0
          %2752 = vmatpush1.msra.mxu0 0.0
          %2753 = vmatprep.subr.mxu0 0.0
          %2754 = vmatpush1.msra.mxu0 0.0
          %2755 = vmatprep.subr.mxu0 0.0
          %2756 = vmatpush1.msra.mxu0 0.0
          %2757 = vmatprep.subr.mxu0 0.0
          %2758 = vmatpush1.msra.mxu0 0.0
          %2759 = vmatprep.subr.mxu0 0.0
          %2760 = vmatpush1.msra.mxu0 %v2722
          %2761 = vmatprep.subr.mxu0 0.0
          %2762 = vmatpush2.msra.mxu0 0.0
          %2763 = vmatprep.subr.mxu0 0.0
          %2764 = vmatpush2.msra.mxu0 0.0
          %2765 = vmatprep.subr.mxu0 0.0
          %2766 = vmatpush2.msra.mxu0 0.0
          %2767 = vmatprep.subr.mxu0 0.0
          %2768 = vmatpush2.msra.mxu0 0.0
          %2769 = vmatprep.subr.mxu0 0.0
          %2770 = vmatpush2.msra.mxu0 0.0
          %2771 = vmatprep.subr.mxu0 0.0
          %2772 = vmatpush2.msra.mxu0 0.0
          %2773 = vmatprep.subr.mxu0 0.0
          %2774 = vmatpush2.msra.mxu0 0.0
          %2775 = vmatprep.subr.mxu0 0.0
          %2776 = vmatpush2.msra.mxu0 0.0
          %2777 = vmatprep.subr.mxu0 0.0
          %2778 = vmatpush2.msra.mxu0 0.0
          %2779 = vmatprep.subr.mxu0 0.0
          %2780 = vmatpush2.msra.mxu0 0.0
          %2781 = vmatprep.subr.mxu0 0.0
          %2782 = vmatpush2.msra.mxu0 0.0
          %2783 = vmatprep.subr.mxu0 0.0
          %2784 = vmatpush2.msra.mxu0 0.0
          %2785 = vmatprep.subr.mxu0 0.0
          %2786 = vmatpush2.msra.mxu0 0.0
          %2787 = vmatprep.subr.mxu0 0.0
          %2788 = vmatpush2.msra.mxu0 0.0
          %2789 = vmatprep.subr.mxu0 0.0
          %2790 = vmatpush2.msra.mxu0 0.0
          %2791 = vmatprep.subr.mxu0 0.0
          %2792 = vmatpush2.msra.mxu0 0.0
          %2793 = vmatprep.mubr.f32.mxu0 0.0
          %2794 = vmatmul.mubr.f32.gmra.mxu0 %v2727
          %v2795 = vpop.f32.mrf.mxu0
          %v2796 = vadd.f32 0.0, %v2795
          %v2797 = vpop.f32.mrf.mxu0
          %2798 = vdwg.mxu0
          %v2800 = vsel %vm780, %v2596, 0
          %2802 = vmatprep.subr.mxu0 0.0
          %2803 = vmatpush1.msra.mxu0 0.0
          %2804 = vmatprep.subr.mxu0 0.0
          %2805 = vmatpush1.msra.mxu0 0.0
          %2806 = vmatprep.subr.mxu0 0.0
          %2807 = vmatpush1.msra.mxu0 0.0
          %2808 = vmatprep.subr.mxu0 0.0
          %2809 = vmatpush1.msra.mxu0 0.0
          %2810 = vmatprep.subr.mxu0 0.0
          %2811 = vmatpush1.msra.mxu0 0.0
          %2812 = vmatprep.subr.mxu0 0.0
          %2813 = vmatpush1.msra.mxu0 0.0
          %2814 = vmatprep.subr.mxu0 0.0
          %2815 = vmatpush1.msra.mxu0 0.0
          %2816 = vmatprep.subr.mxu0 0.0
          %2817 = vmatpush1.msra.mxu0 0.0
          %2818 = vmatprep.subr.mxu0 0.0
          %2819 = vmatpush1.msra.mxu0 0.0
          %2820 = vmatprep.subr.mxu0 0.0
          %2821 = vmatpush1.msra.mxu0 0.0
          %2822 = vmatprep.subr.mxu0 0.0
          %2823 = vmatpush1.msra.mxu0 0.0
          %2824 = vmatprep.subr.mxu0 0.0
          %2825 = vmatpush1.msra.mxu0 0.0
          %2826 = vmatprep.subr.mxu0 0.0
          %2827 = vmatpush1.msra.mxu0 0.0
          %2828 = vmatprep.subr.mxu0 0.0
          %2829 = vmatpush1.msra.mxu0 0.0
          %2830 = vmatprep.subr.mxu0 0.0
          %2831 = vmatpush1.msra.mxu0 0.0
          %2832 = vmatprep.subr.mxu0 0.0
          %2833 = vmatpush1.msra.mxu0 %v2723
          %2834 = vmatprep.subr.mxu0 0.0
          %2835 = vmatpush2.msra.mxu0 0.0
          %2836 = vmatprep.subr.mxu0 0.0
          %2837 = vmatpush2.msra.mxu0 0.0
          %2838 = vmatprep.subr.mxu0 0.0
          %2839 = vmatpush2.msra.mxu0 0.0
          %2840 = vmatprep.subr.mxu0 0.0
          %2841 = vmatpush2.msra.mxu0 0.0
          %2842 = vmatprep.subr.mxu0 0.0
          %2843 = vmatpush2.msra.mxu0 0.0
          %2844 = vmatprep.subr.mxu0 0.0
          %2845 = vmatpush2.msra.mxu0 0.0
          %2846 = vmatprep.subr.mxu0 0.0
          %2847 = vmatpush2.msra.mxu0 0.0
          %2848 = vmatprep.subr.mxu0 0.0
          %2849 = vmatpush2.msra.mxu0 0.0
          %2850 = vmatprep.subr.mxu0 0.0
          %2851 = vmatpush2.msra.mxu0 0.0
          %2852 = vmatprep.subr.mxu0 0.0
          %2853 = vmatpush2.msra.mxu0 0.0
          %2854 = vmatprep.subr.mxu0 0.0
          %2855 = vmatpush2.msra.mxu0 0.0
          %2856 = vmatprep.subr.mxu0 0.0
          %2857 = vmatpush2.msra.mxu0 0.0
          %2858 = vmatprep.subr.mxu0 0.0
          %2859 = vmatpush2.msra.mxu0 0.0
          %2860 = vmatprep.subr.mxu0 0.0
          %2861 = vmatpush2.msra.mxu0 0.0
          %2862 = vmatprep.subr.mxu0 0.0
          %2863 = vmatpush2.msra.mxu0 0.0
          %2864 = vmatprep.subr.mxu0 0.0
          %2865 = vmatpush2.msra.mxu0 0.0
          %2866 = vmatprep.mubr.f32.mxu0 0.0
          %2867 = vmatmul.mubr.f32.gmra.mxu0 %v2800
          %v2868 = vpop.f32.mrf.mxu0
          %v2869 = vadd.f32 0.0, %v2868
          %v2870 = vpop.f32.mrf.mxu0
          %2871 = vdwg.mxu0
          %v2873 = vsel %vm780, %v2598, 0
          %2875 = vmatprep.subr.mxu0 0.0
          %2876 = vmatpush1.msra.mxu0 0.0
          %2877 = vmatprep.subr.mxu0 0.0
          %2878 = vmatpush1.msra.mxu0 0.0
          %2879 = vmatprep.subr.mxu0 0.0
          %2880 = vmatpush1.msra.mxu0 0.0
          %2881 = vmatprep.subr.mxu0 0.0
          %2882 = vmatpush1.msra.mxu0 0.0
          %2883 = vmatprep.subr.mxu0 0.0
          %2884 = vmatpush1.msra.mxu0 0.0
          %2885 = vmatprep.subr.mxu0 0.0
          %2886 = vmatpush1.msra.mxu0 0.0
          %2887 = vmatprep.subr.mxu0 0.0
          %2888 = vmatpush1.msra.mxu0 0.0
          %2889 = vmatprep.subr.mxu0 0.0
          %2890 = vmatpush1.msra.mxu0 0.0
          %2891 = vmatprep.subr.mxu0 0.0
          %2892 = vmatpush1.msra.mxu0 0.0
          %2893 = vmatprep.subr.mxu0 0.0
          %2894 = vmatpush1.msra.mxu0 0.0
          %2895 = vmatprep.subr.mxu0 0.0
          %2896 = vmatpush1.msra.mxu0 0.0
          %2897 = vmatprep.subr.mxu0 0.0
          %2898 = vmatpush1.msra.mxu0 0.0
          %2899 = vmatprep.subr.mxu0 0.0
          %2900 = vmatpush1.msra.mxu0 0.0
          %2901 = vmatprep.subr.mxu0 0.0
          %2902 = vmatpush1.msra.mxu0 0.0
          %2903 = vmatprep.subr.mxu0 0.0
          %2904 = vmatpush1.msra.mxu0 0.0
          %2905 = vmatprep.subr.mxu0 0.0
          %2906 = vmatpush1.msra.mxu0 %v2724
          %2907 = vmatprep.subr.mxu0 0.0
          %2908 = vmatpush2.msra.mxu0 0.0
          %2909 = vmatprep.subr.mxu0 0.0
          %2910 = vmatpush2.msra.mxu0 0.0
          %2911 = vmatprep.subr.mxu0 0.0
          %2912 = vmatpush2.msra.mxu0 0.0
          %2913 = vmatprep.subr.mxu0 0.0
          %2914 = vmatpush2.msra.mxu0 0.0
          %2915 = vmatprep.subr.mxu0 0.0
          %2916 = vmatpush2.msra.mxu0 0.0
          %2917 = vmatprep.subr.mxu0 0.0
          %2918 = vmatpush2.msra.mxu0 0.0
          %2919 = vmatprep.subr.mxu0 0.0
          %2920 = vmatpush2.msra.mxu0 0.0
          %2921 = vmatprep.subr.mxu0 0.0
          %2922 = vmatpush2.msra.mxu0 0.0
          %2923 = vmatprep.subr.mxu0 0.0
          %2924 = vmatpush2.msra.mxu0 0.0
          %2925 = vmatprep.subr.mxu0 0.0
          %2926 = vmatpush2.msra.mxu0 0.0
          %2927 = vmatprep.subr.mxu0 0.0
          %2928 = vmatpush2.msra.mxu0 0.0
          %2929 = vmatprep.subr.mxu0 0.0
          %2930 = vmatpush2.msra.mxu0 0.0
          %2931 = vmatprep.subr.mxu0 0.0
          %2932 = vmatpush2.msra.mxu0 0.0
          %2933 = vmatprep.subr.mxu0 0.0
          %2934 = vmatpush2.msra.mxu0 0.0
          %2935 = vmatprep.subr.mxu0 0.0
          %2936 = vmatpush2.msra.mxu0 0.0
          %2937 = vmatprep.subr.mxu0 0.0
          %2938 = vmatpush2.msra.mxu0 0.0
          %2939 = vmatprep.mubr.f32.mxu0 0.0
          %2940 = vmatmul.mubr.f32.gmra.mxu0 %v2873
          %v2941 = vpop.f32.mrf.mxu0
          %v2942 = vadd.f32 0.0, %v2941
          %v2943 = vpop.f32.mrf.mxu0
          %2944 = vdwg.mxu0
          %v2946 = vsel %vm780, %v2600, 0
          %2948 = vmatprep.subr.mxu0 0.0
          %2949 = vmatpush1.msra.mxu0 0.0
          %2950 = vmatprep.subr.mxu0 0.0
          %2951 = vmatpush1.msra.mxu0 0.0
          %2952 = vmatprep.subr.mxu0 0.0
          %2953 = vmatpush1.msra.mxu0 0.0
          %2954 = vmatprep.subr.mxu0 0.0
          %2955 = vmatpush1.msra.mxu0 0.0
          %2956 = vmatprep.subr.mxu0 0.0
          %2957 = vmatpush1.msra.mxu0 0.0
          %2958 = vmatprep.subr.mxu0 0.0
          %2959 = vmatpush1.msra.mxu0 0.0
          %2960 = vmatprep.subr.mxu0 0.0
          %2961 = vmatpush1.msra.mxu0 0.0
          %2962 = vmatprep.subr.mxu0 0.0
          %2963 = vmatpush1.msra.mxu0 0.0
          %2964 = vmatprep.subr.mxu0 0.0
          %2965 = vmatpush1.msra.mxu0 0.0
          %2966 = vmatprep.subr.mxu0 0.0
          %2967 = vmatpush1.msra.mxu0 0.0
          %2968 = vmatprep.subr.mxu0 0.0
          %2969 = vmatpush1.msra.mxu0 0.0
          %2970 = vmatprep.subr.mxu0 0.0
          %2971 = vmatpush1.msra.mxu0 0.0
          %2972 = vmatprep.subr.mxu0 0.0
          %2973 = vmatpush1.msra.mxu0 0.0
          %2974 = vmatprep.subr.mxu0 0.0
          %2975 = vmatpush1.msra.mxu0 0.0
          %2976 = vmatprep.subr.mxu0 0.0
          %2977 = vmatpush1.msra.mxu0 0.0
          %2978 = vmatprep.subr.mxu0 0.0
          %2979 = vmatpush1.msra.mxu0 %v2725
          %2980 = vmatprep.subr.mxu0 0.0
          %2981 = vmatpush2.msra.mxu0 0.0
          %2982 = vmatprep.subr.mxu0 0.0
          %2983 = vmatpush2.msra.mxu0 0.0
          %2984 = vmatprep.subr.mxu0 0.0
          %2985 = vmatpush2.msra.mxu0 0.0
          %2986 = vmatprep.subr.mxu0 0.0
          %2987 = vmatpush2.msra.mxu0 0.0
          %2988 = vmatprep.subr.mxu0 0.0
          %2989 = vmatpush2.msra.mxu0 0.0
          %2990 = vmatprep.subr.mxu0 0.0
          %2991 = vmatpush2.msra.mxu0 0.0
          %2992 = vmatprep.subr.mxu0 0.0
          %2993 = vmatpush2.msra.mxu0 0.0
          %2994 = vmatprep.subr.mxu0 0.0
          %2995 = vmatpush2.msra.mxu0 0.0
          %2996 = vmatprep.subr.mxu0 0.0
          %2997 = vmatpush2.msra.mxu0 0.0
          %2998 = vmatprep.subr.mxu0 0.0
          %2999 = vmatpush2.msra.mxu0 0.0
          %3000 = vmatprep.subr.mxu0 0.0
          %3001 = vmatpush2.msra.mxu0 0.0
          %3002 = vmatprep.subr.mxu0 0.0
          %3003 = vmatpush2.msra.mxu0 0.0
          %3004 = vmatprep.subr.mxu0 0.0
          %3005 = vmatpush2.msra.mxu0 0.0
          %3006 = vmatprep.subr.mxu0 0.0
          %3007 = vmatpush2.msra.mxu0 0.0
          %3008 = vmatprep.subr.mxu0 0.0
          %3009 = vmatpush2.msra.mxu0 0.0
          %3010 = vmatprep.subr.mxu0 0.0
          %3011 = vmatpush2.msra.mxu0 0.0
          %3012 = vmatprep.mubr.f32.mxu0 0.0
          %3013 = vmatmul.mubr.f32.gmra.mxu0 %v2946
          %v3014 = vpop.f32.mrf.mxu0
          %v3015 = vadd.f32 0.0, %v3014
          %v3016 = vpop.f32.mrf.mxu0
          %3017 = vdwg.mxu0
          %v3018 = vadd.f32 %v2654, %v2796
          %v3019 = vadd.f32 %v2655, %v2869
          %v3020 = vadd.f32 %v2656, %v2942
          %v3021 = vadd.f32 %v2657, %v3015
          %3022 = vst.msk [vmem:[#allocation4] sm:$0xff] %vm780, %v3018
          %3023 = vst.msk [vmem:[#allocation4 + $0x8] sm:$0xff] %vm780, %v3019
          %3024 = vst.msk [vmem:[#allocation4 + $0x10] sm:$0xff] %vm780, %v3020
          %3025 = vst.msk [vmem:[#allocation4 + $0x18] sm:$0xff] %vm780, %v3021
          %3026 = vst.msk [vmem:[#allocation2] sm:$0xff] %vm2625, %v2553
          %3027 = vst.msk [vmem:[#allocation2 + $0x8] sm:$0xff] %vm2625, %v2554
          %3028 = vst.msk [vmem:[#allocation2 + $0x10] sm:$0xff] %vm2625, %v2555
          %3029 = vst.msk [vmem:[#allocation2 + $0x18] sm:$0xff] %vm2625, %v2556
        $region187: #{moss_block_forward.5} parent=166 // pred_fallthru
          _
        // Predicated region
        $region188: #{moss_block_forward.5} parent=166 // pred_check
          %p3030 = pneg %p732
        $region189: #{moss_block_forward.5} parent=166 // pred_check_branch
          %3032 = sbr.rel (%p3030) target = $region191
        $region190: #{moss_block_forward.5} parent=166 // pred_region
          %v3033 = vld [vmem:[#allocation4] sm:$0xff]
          %v3034 = vld [vmem:[#allocation4 + $0x8] sm:$0xff]
          %v3035 = vld [vmem:[#allocation4 + $0x10] sm:$0xff]
          %v3036 = vld [vmem:[#allocation4 + $0x18] sm:$0xff]
          %v3037 = vld [vmem:[#allocation3] sm:$0xff]
          %v3038 = vld [vmem:[#allocation3 + $0x8] sm:$0xff]
          %v3039 = vld [vmem:[#allocation3 + $0x10] sm:$0xff]
          %v3040 = vld [vmem:[#allocation3 + $0x18] sm:$0xff]
          %3042 = vset.pattern.permute.xlu0 0
          %3043 = vperm.xlu0 %3042, %v3037
          %v3044 = vpop.permute.xlu0 %3043
          %3047 = vset.pattern.permute.xlu0 0
          %3048 = vperm.xlu0 %3047, %v3038
          %v3049 = vpop.permute.xlu0 %3048
          %3052 = vset.pattern.permute.xlu0 0
          %3053 = vperm.xlu0 %3052, %v3039
          %v3054 = vpop.permute.xlu0 %3053
          %3057 = vset.pattern.permute.xlu0 0
          %3058 = vperm.xlu0 %3057, %v3040
          %v3059 = vpop.permute.xlu0 %3058
          %v3061 = vrcp.pop %v3044
          %v3062 = vmul.f32 %v3033, %v3061
          %v3063 = vrcp.pop %v3049
          %v3064 = vmul.f32 %v3034, %v3063
          %v3065 = vrcp.pop %v3054
          %v3066 = vmul.f32 %v3035, %v3065
          %v3067 = vrcp.pop %v3059
          %v3068 = vmul.f32 %v3036, %v3067
          %v3069 = vcombine.low %v3062, %v3066
          %v3070 = vcombine.high %v3062, %v3066
          %v3072 = vunpack.c.l.s4 1983009808
          %v3073 = vunpack.c.0.s8 %v3072
          %v3074 = vlaneseq
          %v3075 = vshrl.u32 %v3074, 7
          %v3076 = vsub.s32 %v3073, %v3075
          %v3077 = vrot.slane %v3069, %v3076
          %v3079 = vunpack.c.l.s4 1983009808
          %v3080 = vunpack.c.0.s8 %v3079
          %v3081 = vlaneseq
          %v3082 = vshrl.u32 %v3081, 7
          %v3083 = vsub.s32 %v3080, %v3082
          %v3084 = vrot.slane %v3070, %v3083
          %v3085 = vcombine.low %v3064, %v3068
          %v3086 = vcombine.high %v3064, %v3068
          %v3088 = vunpack.c.l.s4 1983009808
          %v3089 = vunpack.c.0.s8 %v3088
          %v3090 = vlaneseq
          %v3091 = vshrl.u32 %v3090, 7
          %v3092 = vsub.s32 %v3089, %v3091
          %v3093 = vrot.slane %v3085, %v3092
          %v3095 = vunpack.c.l.s4 1983009808
          %v3096 = vunpack.c.0.s8 %v3095
          %v3097 = vlaneseq
          %v3098 = vshrl.u32 %v3097, 7
          %v3099 = vsub.s32 %v3096, %v3098
          %v3100 = vrot.slane %v3086, %v3099
          %v3101 = vcombine.low %v3077, %v3093
          %v3102 = vcombine.high %v3077, %v3093
          %v3104 = vunpack.c.l.s4 1934713408
          %v3105 = vunpack.c.0.s8 %v3104
          %v3106 = vlaneseq
          %v3107 = vshrl.u32 %v3106, 7
          %v3108 = vsub.s32 %v3105, %v3107
          %v3109 = vrot.slane %v3101, %v3108
          %v3111 = vunpack.c.l.s4 1934713408
          %v3112 = vunpack.c.0.s8 %v3111
          %v3113 = vlaneseq
          %v3114 = vshrl.u32 %v3113, 7
          %v3115 = vsub.s32 %v3112, %v3114
          %v3116 = vrot.slane %v3102, %v3115
          %v3117 = vcombine.low %v3084, %v3100
          %v3118 = vcombine.high %v3084, %v3100
          %v3120 = vunpack.c.l.s4 1934713408
          %v3121 = vunpack.c.0.s8 %v3120
          %v3122 = vlaneseq
          %v3123 = vshrl.u32 %v3122, 7
          %v3124 = vsub.s32 %v3121, %v3123
          %v3125 = vrot.slane %v3117, %v3124
          %v3127 = vunpack.c.l.s4 1934713408
          %v3128 = vunpack.c.0.s8 %v3127
          %v3129 = vlaneseq
          %v3130 = vshrl.u32 %v3129, 7
          %v3131 = vsub.s32 %v3128, %v3130
          %v3132 = vrot.slane %v3118, %v3131
          %v3133 = vcombine.high %v3109, 0.0
          %v3134 = vcombine.high %v3116, 0.0
          %v3135 = vcombine.high %v3125, 0.0
          %v3136 = vcombine.high %v3132, 0.0
          %vm3137 = vcmask 60416
          %3138 = vst.msk [vmem:[%s730] sm:$0xf] %vm3137, %v3109
          %3139 = vst.msk [vmem:[%s730 + $0x4] sm:$0xf] %vm3137, %v3133
          %3140 = vst.msk [vmem:[%s730 + $0x8] sm:$0xf] %vm3137, %v3116
          %3141 = vst.msk [vmem:[%s730 + $0xc] sm:$0xf] %vm3137, %v3134
          %3142 = vst.msk [vmem:[%s730 + $0x10] sm:$0xf] %vm3137, %v3125
          %3143 = vst.msk [vmem:[%s730 + $0x14] sm:$0xf] %vm3137, %v3135
          %3144 = vst.msk [vmem:[%s730 + $0x18] sm:$0xf] %vm3137, %v3132
          %3145 = vst.msk [vmem:[%s730 + $0x1c] sm:$0xf] %vm3137, %v3136
        $region191: #{moss_block_forward.5} parent=166 // pred_fallthru
          _
        %s3146 = smul.u32 8, %s26
        %p3147 = scmp.lt.s32.totalorder %s25, 1
        %s3148 = scalar_select %p3147, %s25, 1
        %p3149 = scmp.lt.s32.totalorder %s3146, 7
        %s3150 = scalar_select %p3149, %s3146, 7
        %s3151 = smul.addr %s3148, 8
        %s3152 = sadd.s32 %s3150, %s3151
        %s3153 = smul.addr %s3152, 4
        %s3154 = scalar_lea.vmem %s9, %s3153
        // Predicated region
        $region192: #{moss_block_forward.5} parent=166 // pred_check
          %p3155 = pneg %p296
        $region193: #{moss_block_forward.5} parent=166 // pred_check_branch
          %3157 = sbr.rel (%p3155) target = $region195
        $region194: #{moss_block_forward.5} parent=166 // pred_region
          %s3158 = smul.u32 8, %s26
        $region195: #{moss_block_forward.5} parent=166 // pred_fallthru
          _
      $region167: #{moss_block_forward.5} parent=5 // pred_fallthru
        _
      %p3159 = scmp.le.s32.totalorder 2, %s15
      // Predicated region
      $region196: #{moss_block_forward.5} parent=5 // pred_check
        %p3160 = pneg %p3159
      $region197: #{moss_block_forward.5} parent=5 // pred_check_branch
        %3162 = sbr.rel (%p3160) target = $region199
      $region198: #{moss_block_forward.5} parent=5 // pred_region
        %s3163 = ssub.s32 %s15, 2
        // Predicated region
        $region200: #{moss_block_forward.5} parent=198 // pred_check
          %p3164 = pneg %p302
        $region201: #{moss_block_forward.5} parent=198 // pred_check_branch
          %3166 = sbr.rel (%p3164) target = $region203
        $region202: #{moss_block_forward.5} parent=198 // pred_region
          %s3167 = smul.u32 8, %s29
          %p3168 = scmp.lt.s32.totalorder %s28, 1
          %s3169 = scalar_select %p3168, %s28, 1
          %p3170 = scmp.lt.s32.totalorder %s3167, 7
          %s3171 = scalar_select %p3170, %s3167, 7
          %s3172 = smul.addr %s3169, 8
          %s3173 = sadd.s32 %s3171, %s3172
          %s3174 = smul.addr %s3173, 4
          %s3175 = scalar_lea.vmem %s9, %s3174
        $region203: #{moss_block_forward.5} parent=198 // pred_fallthru
          _
      $region199: #{moss_block_forward.5} parent=5 // pred_fallthru
        _
    $region6: #{moss_block_forward.5} parent=1 // loop_footer
      %s19 = sadd.s32 1, %s15
    $region7: #{moss_block_forward.5} parent=1 // loop_footer_branch
      %14 = sbr.rel target = $region3
    $region8: #{moss_block_forward.5} parent=1 // loop_exit
      _

</llo_original>
